<compile_context>
chip_gen: v5e
topology: v5e:2x2
jax: 0.10.0
libtpu: 0.0.40
codegen_flags: <defaults>
</compile_context>

<pallas_src>
import functools
import math

import jax
import jax.numpy as jnp
from jax.experimental import pallas as pl
from jax.experimental.pallas import tpu as pltpu


def _layernorm(x, gamma, beta, eps=1e-5):
    # PyTorch LayerNorm: biased variance over the last axis.
    mu = jnp.mean(x, axis=-1, keepdims=True)
    var = jnp.mean((x - mu) ** 2, axis=-1, keepdims=True)
    return (x - mu) * jax.lax.rsqrt(var + eps) * gamma + beta


def _encoder_layer_kernel(
    # scalar prefetch
    tok_ref,                 # (B*S,) int32 token ids (SMEM)
    # inputs
    emb_ref,                 # (V, D) f32, left in HBM (pl.ANY); rows DMA-gathered
    wqkv_ref, bqkv_ref,      # (1, D, 3D) cdt, (1, 1, 3D) f32   -- this layer's block
    wo_ref, bo_ref,          # (1, D, D)  cdt, (1, 1, D)  f32
    ln1_g_ref, ln1_b_ref,    # (1, 1, D) f32
    w1_ref, b1_ref,          # (1, D, F)  cdt, (1, 1, F)  f32
    w2_ref, b2_ref,          # (1, F, D)  cdt, (1, 1, D)  f32
    ln2_g_ref, ln2_b_ref,    # (1, 1, D) f32
    # output
    o_ref,                   # (BB*S, D) f32, revisited block, written on last layer
    # scratch
    x_ref,                   # VMEM (BB*S, D) f32 -- activation carried across layers
    gather_sem,              # (1,) DMA semaphore for the embedding gather
    *,
    num_heads,
    seq_len,
    compute_dtype,
):
    N, D = o_ref.shape
    S = seq_len
    BB = N // S
    H = num_heads
    Dh = D // H
    cdt = compute_dtype

    b = pl.program_id(0)          # batch block  ("parallel" -> 2 TCs on v7x)
    l = pl.program_id(1)          # encoder layer ("arbitrary", weights stream)

    # ---- Layer 0: embedding gather HBM -> VMEM activation scratch --------
    # Issue all row DMAs, then wait; padding_idx=0 is handled naturally since
    # row 0 of the table is zero (plain lookup semantics, same as nn.Embedding
    # forward).  Out-of-range ids are undefined (PyTorch would raise).
    @pl.when(l == 0)
    def _():
        base = b * N
        copies = []
        for i in range(N):                                   # static, small N
            cp = pltpu.make_async_copy(
                emb_ref.at[pl.ds(tok_ref[base + i], 1)],     # (1, D) row in HBM
                x_ref.at[pl.ds(i, 1)],                       # (1, D) row in VMEM
                gather_sem.at[0],
            )
            cp.start()
            copies.append(cp)
        for cp in copies:
            cp.wait()

    x = x_ref[...]                                            # (N, D) f32

    # ---- Fused, lane-dense QKV projection: (N,D) @ (D,3D) ----------------
    # 1/sqrt(Dh) is folded into Wq / bq host-side (pack_params).
    qkv = (
        jnp.dot(x.astype(cdt), wqkv_ref[0], preferred_element_type=jnp.float32)
        + bqkv_ref[0]
    )                                                         # (N, 3D) f32

    # ---- Multi-head self-attention (heads split only for the SxS part) ---
    ctx_heads = []
    for h in range(H):                                        # static, small H
        qh = qkv[:, h * Dh:(h + 1) * Dh].reshape(BB, S, Dh)
        kh = qkv[:, D + h * Dh:D + (h + 1) * Dh].reshape(BB, S, Dh)
        vh = qkv[:, 2 * D + h * Dh:2 * D + (h + 1) * Dh].reshape(BB, S, Dh)
        s_h = jnp.einsum("bqd,bkd->bqk", qh.astype(cdt), kh.astype(cdt),
                         preferred_element_type=jnp.float32)  # (BB, S, S)
        s_h = s_h - jnp.max(s_h, axis=-1, keepdims=True)
        p_h = jnp.exp(s_h)
        denom = jnp.sum(p_h, axis=-1, keepdims=True)          # (BB, S, 1)
        c_h = jnp.einsum("bqk,bkd->bqd", p_h.astype(cdt), vh.astype(cdt),
                         preferred_element_type=jnp.float32)  # (BB, S, Dh)
        c_h = c_h / denom                                     # exact softmax norm
        ctx_heads.append(c_h.reshape(N, Dh))

    # Heads reassembled along lanes -> ONE lane-dense (N,D)@(D,D) Wo matmul.
    ctx = jnp.concatenate(ctx_heads, axis=-1)                 # (N, D)
    attn = (
        jnp.dot(ctx.astype(cdt), wo_ref[0], preferred_element_type=jnp.float32)
        + bo_ref[0]
    )

    # Residual + LayerNorm 1 (post-norm, PyTorch norm_first=False).
    x = _layernorm(x + attn, ln1_g_ref[0], ln1_b_ref[0])

    # Feed-forward (ReLU), residual + LayerNorm 2.
    hid = jnp.dot(x.astype(cdt), w1_ref[0],
                  preferred_element_type=jnp.float32) + b1_ref[0]
    hid = jnp.maximum(hid, 0.0)
    ff = jnp.dot(hid.astype(cdt), w2_ref[0],
                 preferred_element_type=jnp.float32) + b2_ref[0]
    x = _layernorm(x + ff, ln2_g_ref[0], ln2_b_ref[0])

    # Carry the activation to the next layer grid step.
    x_ref[...] = x

    # Store the final activations once (revisited output block).
    @pl.when(l == pl.num_programs(1) - 1)
    def _():
        o_ref[...] = x


def transformer_encoder(tokens, emb, packed, *, num_heads, num_batch_blocks=1,
                        vmem_limit_bytes=48 * 1024 * 1024):
    """Full encoder forward in one pallas_call with per-layer weight streaming.

    num_batch_blocks=1: whole batch per batch step (v5e / v6e, single TC).
    num_batch_blocks=2: batch split over two "parallel" steps -> v7x's 2 TCs.
    vmem_limit_bytes: explicit scoped-VMEM budget (<=48 MiB keeps headroom on
    v7x's 64 MiB physical VMEM; v5e/v6e have 128 MiB).
    """
    B, S = tokens.shape
    V, D = emb.shape
    L = packed["wqkv"].shape[0]
    assert B % num_batch_blocks == 0
    assert D % num_heads == 0
    BB = B // num_batch_blocks
    N = BB * S

    tok_flat = tokens.reshape(B * S).astype(jnp.int32)        # scalar-prefetch ids

    def layer_spec(arr):
        # One layer's block per grid step; index_map depends only on the layer
        # axis, so the pipeline double-buffers weight DMA against compute.
        blk = (1,) + arr.shape[1:]
        nd = len(blk)
        return pl.BlockSpec(blk, lambda b, l, tok: (l,) + (0,) * (nd - 1))

    names = ("wqkv", "bqkv", "wo", "bo", "ln1_g", "ln1_b",
             "w1", "b1", "w2", "b2", "ln2_g", "ln2_b")
    weights = [packed[n] for n in names]

    in_specs = [pl.BlockSpec(memory_space=pl.ANY)]            # embedding stays in HBM
    in_specs += [layer_spec(w) for w in weights]

    kernel = functools.partial(
        _encoder_layer_kernel,
        num_heads=num_heads,
        seq_len=S,
        compute_dtype=packed["wqkv"].dtype,
    )

    out = pl.pallas_call(
        kernel,
        out_shape=jax.ShapeDtypeStruct((B * S, D), jnp.float32),
        grid_spec=pltpu.PrefetchScalarGridSpec(
            num_scalar_prefetch=1,
            grid=(num_batch_blocks, L),
            in_specs=in_specs,
            # 2-D (rows, d_model) output slab: lane-dense once d_model >= 128.
            out_specs=pl.BlockSpec((N, D), lambda b, l, tok: (b, 0)),
            scratch_shapes=[
                pltpu.VMEM((N, D), jnp.float32),              # activation carry
                pltpu.SemaphoreType.DMA((1,)),                # embedding gather sem
            ],
        ),
        compiler_params=pltpu.CompilerParams(
            dimension_semantics=("parallel", "arbitrary"),
            vmem_limit_bytes=vmem_limit_bytes,
        ),
    )(tok_flat, emb, *weights)
    return out.reshape(B, S, D)


def init_params(key, *, d_model, num_heads, d_ff, num_layers, vocab_size):
    """Random params in the (in_features, out_features) convention: y = x @ W + b."""
    del num_heads
    keys = jax.random.split(key, 1 + num_layers)
    emb = 0.05 * jax.random.normal(keys[0], (vocab_size, d_model), jnp.float32)
    emb = emb.at[0].set(0.0)                                  # padding_idx=0
    s = 0.05
    layers = []
    for l in range(num_layers):
        ks = jax.random.split(keys[1 + l], 12)
        layers.append(dict(
            wq=s * jax.random.normal(ks[0], (d_model, d_model), jnp.float32),
            wk=s * jax.random.normal(ks[1], (d_model, d_model), jnp.float32),
            wv=s * jax.random.normal(ks[2], (d_model, d_model), jnp.float32),
            bq=0.02 * jax.random.normal(ks[3], (d_model,), jnp.float32),
            bk=0.02 * jax.random.normal(ks[4], (d_model,), jnp.float32),
            bv=0.02 * jax.random.normal(ks[5], (d_model,), jnp.float32),
            wo=s * jax.random.normal(ks[6], (d_model, d_model), jnp.float32),
            bo=0.02 * jax.random.normal(ks[7], (d_model,), jnp.float32),
            ln1_g=jnp.ones((d_model,), jnp.float32),
            ln1_b=jnp.zeros((d_model,), jnp.float32),
            w1=s * jax.random.normal(ks[8], (d_model, d_ff), jnp.float32),
            b1=0.02 * jax.random.normal(ks[9], (d_ff,), jnp.float32),
            w2=s * jax.random.normal(ks[10], (d_ff, d_model), jnp.float32),
            b2=0.02 * jax.random.normal(ks[11], (d_model,), jnp.float32),
            ln2_g=jnp.ones((d_model,), jnp.float32),
            ln2_b=jnp.zeros((d_model,), jnp.float32),
        ))
    return emb, layers


def pack_params(emb, layers, *, num_heads, compute_dtype=jnp.float32):
    """Stack per-layer params along a leading L axis for layer streaming.

    Matmul weights (wqkv / wo / w1 / w2) are stored in `compute_dtype`
    (bf16 halves weight DMA + VMEM and doubles MXU throughput on v6e/v7x);
    biases / LayerNorm params stay f32.  1/sqrt(Dh) is folded into Wq, bq.
    """
    H = num_heads
    V, D = emb.shape
    Dh = D // H
    scale = 1.0 / math.sqrt(Dh)
    del V

    names = ("wqkv", "bqkv", "wo", "bo", "ln1_g", "ln1_b",
             "w1", "b1", "w2", "b2", "ln2_g", "ln2_b")
    packed = {k: [] for k in names}
    for p in layers:
        wqkv = jnp.concatenate([p["wq"] * scale, p["wk"], p["wv"]], axis=1)  # (D,3D)
        bqkv = jnp.concatenate([p["bq"] * scale, p["bk"], p["bv"]]).reshape(1, 3 * D)
        packed["wqkv"].append(wqkv.astype(compute_dtype))
        packed["bqkv"].append(bqkv)
        packed["wo"].append(p["wo"].astype(compute_dtype))
        packed["bo"].append(p["bo"].reshape(1, D))
        packed["ln1_g"].append(p["ln1_g"].reshape(1, D))
        packed["ln1_b"].append(p["ln1_b"].reshape(1, D))
        packed["w1"].append(p["w1"].astype(compute_dtype))
        packed["b1"].append(p["b1"].reshape(1, -1))
        packed["w2"].append(p["w2"].astype(compute_dtype))
        packed["b2"].append(p["b2"].reshape(1, D))
        packed["ln2_g"].append(p["ln2_g"].reshape(1, D))
        packed["ln2_b"].append(p["ln2_b"].reshape(1, D))
    return {k: jnp.stack(v, axis=0) for k, v in packed.items()}


def reference_encoder(tokens, emb, layers, *, num_heads):
    """Pure-JAX reference with PyTorch TransformerEncoder (eval) semantics."""
    x = jnp.take(emb, tokens, axis=0)                         # (B, S, D)
    B, S, D = x.shape
    H = num_heads
    Dh = D // H
    for p in layers:
        q = x @ p["wq"] + p["bq"]
        k = x @ p["wk"] + p["bk"]
        v = x @ p["wv"] + p["bv"]
        split = lambda t: t.reshape(B, S, H, Dh).transpose(0, 2, 1, 3)
        qh, kh, vh = split(q), split(k), split(v)
        scores = jnp.einsum("bhsd,bhtd->bhst", qh, kh) / jnp.sqrt(jnp.float32(Dh))
        pr = jax.nn.softmax(scores, axis=-1)
        ctx = jnp.einsum("bhst,bhtd->bhsd", pr, vh)
        ctx = ctx.transpose(0, 2, 1, 3).reshape(B, S, D)
        attn = ctx @ p["wo"] + p["bo"]
        x = _layernorm(x + attn, p["ln1_g"], p["ln1_b"])
        ff = jnp.maximum(x @ p["w1"] + p["b1"], 0.0) @ p["w2"] + p["b2"]
        x = _layernorm(x + ff, p["ln2_g"], p["ln2_b"])
    return x


if __name__ == "__main__":
    d_model, num_heads, d_ff, num_layers, vocab_size = 32, 4, 64, 2, 50
    B, S = 2, 8

    key = jax.random.PRNGKey(0)
    k_param, k_tok = jax.random.split(key)
    emb, layers = init_params(k_param, d_model=d_model, num_heads=num_heads,
                              d_ff=d_ff, num_layers=num_layers,
                              vocab_size=vocab_size)
    tokens = jax.random.randint(k_tok, (B, S), 0, vocab_size, dtype=jnp.int32)

    ref = reference_encoder(tokens, emb, layers, num_heads=num_heads)

    # --- f32 weights: tight correctness check ------------------------------
    packed_f32 = pack_params(emb, layers, num_heads=num_heads,
                             compute_dtype=jnp.float32)
    out_f32 = transformer_encoder(tokens, emb, packed_f32, num_heads=num_heads)
    out_f32 = jax.block_until_ready(out_f32)
    assert out_f32.shape == (B, S, d_model), out_f32.shape
    assert bool(jnp.all(jnp.isfinite(out_f32)))
    assert bool(jnp.allclose(out_f32, ref, atol=1e-2, rtol=1e-2)), \
        float(jnp.max(jnp.abs(out_f32 - ref)))

    # --- bf16 matmul weights (perf config: half weight DMA/VMEM) -----------
    packed_bf16 = pack_params(emb, layers, num_heads=num_heads,
                              compute_dtype=jnp.bfloat16)
    out_bf16 = transformer_encoder(tokens, emb, packed_bf16, num_heads=num_heads)
    out_bf16 = jax.block_until_ready(out_bf16)
    assert bool(jnp.all(jnp.isfinite(out_bf16)))
    assert bool(jnp.allclose(out_bf16, ref, atol=5e-2, rtol=5e-2)), \
        float(jnp.max(jnp.abs(out_bf16 - ref)))

    print("KERNEL_OK")
</pallas_src>

<mosaic_0001>
module attributes {stable_mosaic.version = 11 : i64} {
  func.func @_encoder_layer_kernel(%arg0: i32, %arg1: i32, %arg2: memref<16xi32, #tpu.memory_space<smem>>, %arg3: memref<50x32xf32, #tpu.memory_space<any>>, %arg4: memref<1x32x96xf32, #tpu.memory_space<vmem>>, %arg5: memref<1x1x96xf32, #tpu.memory_space<vmem>>, %arg6: memref<1x32x32xf32, #tpu.memory_space<vmem>>, %arg7: memref<1x1x32xf32, #tpu.memory_space<vmem>>, %arg8: memref<1x1x32xf32, #tpu.memory_space<vmem>>, %arg9: memref<1x1x32xf32, #tpu.memory_space<vmem>>, %arg10: memref<1x32x64xf32, #tpu.memory_space<vmem>>, %arg11: memref<1x1x64xf32, #tpu.memory_space<vmem>>, %arg12: memref<1x64x32xf32, #tpu.memory_space<vmem>>, %arg13: memref<1x1x32xf32, #tpu.memory_space<vmem>>, %arg14: memref<1x1x32xf32, #tpu.memory_space<vmem>>, %arg15: memref<1x1x32xf32, #tpu.memory_space<vmem>>, %arg16: memref<16x32xf32, #tpu.memory_space<vmem>>, %arg17: memref<16x32xf32, #tpu.memory_space<vmem>>, %arg18: memref<1x!tpu.dma_semaphore, #tpu.memory_space<semaphore_mem>>) attributes {dimension_semantics = [#tpu.dimension_semantics<parallel>, #tpu.dimension_semantics<arbitrary>], iteration_bounds = array<i64: 1, 2>, scalar_prefetch = 1 : i64, scratch_operands = 2 : i64, tpu.core_type = #tpu.core_type<tc>, window_params = [{}, {transform_indices = @transform_1, window_bounds = array<i64: 1, 32, 96>}, {transform_indices = @transform_2, window_bounds = array<i64: 1, 1, 96>}, {transform_indices = @transform_3, window_bounds = array<i64: 1, 32, 32>}, {transform_indices = @transform_4, window_bounds = array<i64: 1, 1, 32>}, {transform_indices = @transform_5, window_bounds = array<i64: 1, 1, 32>}, {transform_indices = @transform_6, window_bounds = array<i64: 1, 1, 32>}, {transform_indices = @transform_7, window_bounds = array<i64: 1, 32, 64>}, {transform_indices = @transform_8, window_bounds = array<i64: 1, 1, 64>}, {transform_indices = @transform_9, window_bounds = array<i64: 1, 64, 32>}, {transform_indices = @transform_10, window_bounds = array<i64: 1, 1, 32>}, {transform_indices = @transform_11, window_bounds = array<i64: 1, 1, 32>}, {transform_indices = @transform_12, window_bounds = array<i64: 1, 1, 32>}, {transform_indices = @transform_13, window_bounds = array<i64: 16, 32>}]} {
    %c0_i32 = arith.constant 0 : i32
    %0 = arith.cmpi eq, %arg1, %c0_i32 : i32
    %1 = arith.extui %0 : i1 to i32
    %c0_i32_0 = arith.constant 0 : i32
    %2 = arith.cmpi ne, %1, %c0_i32_0 : i32
    scf.if %2 {
      %c16_i32 = arith.constant 16 : i32
      %165 = arith.muli %arg0, %c16_i32 : i32
      %c0_i32_71 = arith.constant 0 : i32
      %166 = arith.addi %165, %c0_i32_71 : i32
      %167 = arith.index_cast %166 : i32 to index
      %168 = memref.load %arg2[%167] : memref<16xi32, #tpu.memory_space<smem>>
      %c0_i32_72 = arith.constant 0 : i32
      %c0_i32_73 = arith.constant 0 : i32
      %169 = tpu.memref_slice %arg3[%168, %c0_i32_73] : memref<50x32xf32, #tpu.memory_space<any>> -> memref<1x32xf32, #tpu.memory_space<any>>
      %c0_i32_74 = arith.constant 0 : i32
      %c0_i32_75 = arith.constant 0 : i32
      %170 = tpu.memref_slice %arg17[%c0_i32_74, %c0_i32_75] : memref<16x32xf32, #tpu.memory_space<vmem>> -> memref<1x32xf32, #tpu.memory_space<vmem>>
      %171 = tpu.memref_slice %arg18[%c0_i32_72] : memref<1x!tpu.dma_semaphore, #tpu.memory_space<semaphore_mem>> -> memref<1x!tpu.dma_semaphore, #tpu.memory_space<semaphore_mem>>
      %172 = tpu.memref_squeeze %171 : memref<1x!tpu.dma_semaphore, #tpu.memory_space<semaphore_mem>> -> memref<!tpu.dma_semaphore, #tpu.memory_space<semaphore_mem>>
      tpu.enqueue_dma source(%169 : memref<1x32xf32, #tpu.memory_space<any>>) target(%170 : memref<1x32xf32, #tpu.memory_space<vmem>>) target_semaphore(%172 : memref<!tpu.dma_semaphore, #tpu.memory_space<semaphore_mem>>)
      %c1_i32_76 = arith.constant 1 : i32
      %173 = arith.addi %165, %c1_i32_76 : i32
      %174 = arith.index_cast %173 : i32 to index
      %175 = memref.load %arg2[%174] : memref<16xi32, #tpu.memory_space<smem>>
      %c0_i32_77 = arith.constant 0 : i32
      %c0_i32_78 = arith.constant 0 : i32
      %176 = tpu.memref_slice %arg3[%175, %c0_i32_78] : memref<50x32xf32, #tpu.memory_space<any>> -> memref<1x32xf32, #tpu.memory_space<any>>
      %c1_i32_79 = arith.constant 1 : i32
      %c0_i32_80 = arith.constant 0 : i32
      %177 = tpu.memref_slice %arg17[%c1_i32_79, %c0_i32_80] : memref<16x32xf32, #tpu.memory_space<vmem>> -> memref<1x32xf32, #tpu.memory_space<vmem>>
      %178 = tpu.memref_slice %arg18[%c0_i32_77] : memref<1x!tpu.dma_semaphore, #tpu.memory_space<semaphore_mem>> -> memref<1x!tpu.dma_semaphore, #tpu.memory_space<semaphore_mem>>
      %179 = tpu.memref_squeeze %178 : memref<1x!tpu.dma_semaphore, #tpu.memory_space<semaphore_mem>> -> memref<!tpu.dma_semaphore, #tpu.memory_space<semaphore_mem>>
      tpu.enqueue_dma source(%176 : memref<1x32xf32, #tpu.memory_space<any>>) target(%177 : memref<1x32xf32, #tpu.memory_space<vmem>>) target_semaphore(%179 : memref<!tpu.dma_semaphore, #tpu.memory_space<semaphore_mem>>)
      %c2_i32 = arith.constant 2 : i32
      %180 = arith.addi %165, %c2_i32 : i32
      %181 = arith.index_cast %180 : i32 to index
      %182 = memref.load %arg2[%181] : memref<16xi32, #tpu.memory_space<smem>>
      %c0_i32_81 = arith.constant 0 : i32
      %c0_i32_82 = arith.constant 0 : i32
      %183 = tpu.memref_slice %arg3[%182, %c0_i32_82] : memref<50x32xf32, #tpu.memory_space<any>> -> memref<1x32xf32, #tpu.memory_space<any>>
      %c2_i32_83 = arith.constant 2 : i32
      %c0_i32_84 = arith.constant 0 : i32
      %184 = tpu.memref_slice %arg17[%c2_i32_83, %c0_i32_84] : memref<16x32xf32, #tpu.memory_space<vmem>> -> memref<1x32xf32, #tpu.memory_space<vmem>>
      %185 = tpu.memref_slice %arg18[%c0_i32_81] : memref<1x!tpu.dma_semaphore, #tpu.memory_space<semaphore_mem>> -> memref<1x!tpu.dma_semaphore, #tpu.memory_space<semaphore_mem>>
      %186 = tpu.memref_squeeze %185 : memref<1x!tpu.dma_semaphore, #tpu.memory_space<semaphore_mem>> -> memref<!tpu.dma_semaphore, #tpu.memory_space<semaphore_mem>>
      tpu.enqueue_dma source(%183 : memref<1x32xf32, #tpu.memory_space<any>>) target(%184 : memref<1x32xf32, #tpu.memory_space<vmem>>) target_semaphore(%186 : memref<!tpu.dma_semaphore, #tpu.memory_space<semaphore_mem>>)
      %c3_i32 = arith.constant 3 : i32
      %187 = arith.addi %165, %c3_i32 : i32
      %188 = arith.index_cast %187 : i32 to index
      %189 = memref.load %arg2[%188] : memref<16xi32, #tpu.memory_space<smem>>
      %c0_i32_85 = arith.constant 0 : i32
      %c0_i32_86 = arith.constant 0 : i32
      %190 = tpu.memref_slice %arg3[%189, %c0_i32_86] : memref<50x32xf32, #tpu.memory_space<any>> -> memref<1x32xf32, #tpu.memory_space<any>>
      %c3_i32_87 = arith.constant 3 : i32
      %c0_i32_88 = arith.constant 0 : i32
      %191 = tpu.memref_slice %arg17[%c3_i32_87, %c0_i32_88] : memref<16x32xf32, #tpu.memory_space<vmem>> -> memref<1x32xf32, #tpu.memory_space<vmem>>
      %192 = tpu.memref_slice %arg18[%c0_i32_85] : memref<1x!tpu.dma_semaphore, #tpu.memory_space<semaphore_mem>> -> memref<1x!tpu.dma_semaphore, #tpu.memory_space<semaphore_mem>>
      %193 = tpu.memref_squeeze %192 : memref<1x!tpu.dma_semaphore, #tpu.memory_space<semaphore_mem>> -> memref<!tpu.dma_semaphore, #tpu.memory_space<semaphore_mem>>
      tpu.enqueue_dma source(%190 : memref<1x32xf32, #tpu.memory_space<any>>) target(%191 : memref<1x32xf32, #tpu.memory_space<vmem>>) target_semaphore(%193 : memref<!tpu.dma_semaphore, #tpu.memory_space<semaphore_mem>>)
      %c4_i32 = arith.constant 4 : i32
      %194 = arith.addi %165, %c4_i32 : i32
      %195 = arith.index_cast %194 : i32 to index
      %196 = memref.load %arg2[%195] : memref<16xi32, #tpu.memory_space<smem>>
      %c0_i32_89 = arith.constant 0 : i32
      %c0_i32_90 = arith.constant 0 : i32
      %197 = tpu.memref_slice %arg3[%196, %c0_i32_90] : memref<50x32xf32, #tpu.memory_space<any>> -> memref<1x32xf32, #tpu.memory_space<any>>
      %c4_i32_91 = arith.constant 4 : i32
      %c0_i32_92 = arith.constant 0 : i32
      %198 = tpu.memref_slice %arg17[%c4_i32_91, %c0_i32_92] : memref<16x32xf32, #tpu.memory_space<vmem>> -> memref<1x32xf32, #tpu.memory_space<vmem>>
      %199 = tpu.memref_slice %arg18[%c0_i32_89] : memref<1x!tpu.dma_semaphore, #tpu.memory_space<semaphore_mem>> -> memref<1x!tpu.dma_semaphore, #tpu.memory_space<semaphore_mem>>
      %200 = tpu.memref_squeeze %199 : memref<1x!tpu.dma_semaphore, #tpu.memory_space<semaphore_mem>> -> memref<!tpu.dma_semaphore, #tpu.memory_space<semaphore_mem>>
      tpu.enqueue_dma source(%197 : memref<1x32xf32, #tpu.memory_space<any>>) target(%198 : memref<1x32xf32, #tpu.memory_space<vmem>>) target_semaphore(%200 : memref<!tpu.dma_semaphore, #tpu.memory_space<semaphore_mem>>)
      %c5_i32 = arith.constant 5 : i32
      %201 = arith.addi %165, %c5_i32 : i32
      %202 = arith.index_cast %201 : i32 to index
      %203 = memref.load %arg2[%202] : memref<16xi32, #tpu.memory_space<smem>>
      %c0_i32_93 = arith.constant 0 : i32
      %c0_i32_94 = arith.constant 0 : i32
      %204 = tpu.memref_slice %arg3[%203, %c0_i32_94] : memref<50x32xf32, #tpu.memory_space<any>> -> memref<1x32xf32, #tpu.memory_space<any>>
      %c5_i32_95 = arith.constant 5 : i32
      %c0_i32_96 = arith.constant 0 : i32
      %205 = tpu.memref_slice %arg17[%c5_i32_95, %c0_i32_96] : memref<16x32xf32, #tpu.memory_space<vmem>> -> memref<1x32xf32, #tpu.memory_space<vmem>>
      %206 = tpu.memref_slice %arg18[%c0_i32_93] : memref<1x!tpu.dma_semaphore, #tpu.memory_space<semaphore_mem>> -> memref<1x!tpu.dma_semaphore, #tpu.memory_space<semaphore_mem>>
      %207 = tpu.memref_squeeze %206 : memref<1x!tpu.dma_semaphore, #tpu.memory_space<semaphore_mem>> -> memref<!tpu.dma_semaphore, #tpu.memory_space<semaphore_mem>>
      tpu.enqueue_dma source(%204 : memref<1x32xf32, #tpu.memory_space<any>>) target(%205 : memref<1x32xf32, #tpu.memory_space<vmem>>) target_semaphore(%207 : memref<!tpu.dma_semaphore, #tpu.memory_space<semaphore_mem>>)
      %c6_i32 = arith.constant 6 : i32
      %208 = arith.addi %165, %c6_i32 : i32
      %209 = arith.index_cast %208 : i32 to index
      %210 = memref.load %arg2[%209] : memref<16xi32, #tpu.memory_space<smem>>
      %c0_i32_97 = arith.constant 0 : i32
      %c0_i32_98 = arith.constant 0 : i32
      %211 = tpu.memref_slice %arg3[%210, %c0_i32_98] : memref<50x32xf32, #tpu.memory_space<any>> -> memref<1x32xf32, #tpu.memory_space<any>>
      %c6_i32_99 = arith.constant 6 : i32
      %c0_i32_100 = arith.constant 0 : i32
      %212 = tpu.memref_slice %arg17[%c6_i32_99, %c0_i32_100] : memref<16x32xf32, #tpu.memory_space<vmem>> -> memref<1x32xf32, #tpu.memory_space<vmem>>
      %213 = tpu.memref_slice %arg18[%c0_i32_97] : memref<1x!tpu.dma_semaphore, #tpu.memory_space<semaphore_mem>> -> memref<1x!tpu.dma_semaphore, #tpu.memory_space<semaphore_mem>>
      %214 = tpu.memref_squeeze %213 : memref<1x!tpu.dma_semaphore, #tpu.memory_space<semaphore_mem>> -> memref<!tpu.dma_semaphore, #tpu.memory_space<semaphore_mem>>
      tpu.enqueue_dma source(%211 : memref<1x32xf32, #tpu.memory_space<any>>) target(%212 : memref<1x32xf32, #tpu.memory_space<vmem>>) target_semaphore(%214 : memref<!tpu.dma_semaphore, #tpu.memory_space<semaphore_mem>>)
      %c7_i32 = arith.constant 7 : i32
      %215 = arith.addi %165, %c7_i32 : i32
      %216 = arith.index_cast %215 : i32 to index
      %217 = memref.load %arg2[%216] : memref<16xi32, #tpu.memory_space<smem>>
      %c0_i32_101 = arith.constant 0 : i32
      %c0_i32_102 = arith.constant 0 : i32
      %218 = tpu.memref_slice %arg3[%217, %c0_i32_102] : memref<50x32xf32, #tpu.memory_space<any>> -> memref<1x32xf32, #tpu.memory_space<any>>
      %c7_i32_103 = arith.constant 7 : i32
      %c0_i32_104 = arith.constant 0 : i32
      %219 = tpu.memref_slice %arg17[%c7_i32_103, %c0_i32_104] : memref<16x32xf32, #tpu.memory_space<vmem>> -> memref<1x32xf32, #tpu.memory_space<vmem>>
      %220 = tpu.memref_slice %arg18[%c0_i32_101] : memref<1x!tpu.dma_semaphore, #tpu.memory_space<semaphore_mem>> -> memref<1x!tpu.dma_semaphore, #tpu.memory_space<semaphore_mem>>
      %221 = tpu.memref_squeeze %220 : memref<1x!tpu.dma_semaphore, #tpu.memory_space<semaphore_mem>> -> memref<!tpu.dma_semaphore, #tpu.memory_space<semaphore_mem>>
      tpu.enqueue_dma source(%218 : memref<1x32xf32, #tpu.memory_space<any>>) target(%219 : memref<1x32xf32, #tpu.memory_space<vmem>>) target_semaphore(%221 : memref<!tpu.dma_semaphore, #tpu.memory_space<semaphore_mem>>)
      %c8_i32 = arith.constant 8 : i32
      %222 = arith.addi %165, %c8_i32 : i32
      %223 = arith.index_cast %222 : i32 to index
      %224 = memref.load %arg2[%223] : memref<16xi32, #tpu.memory_space<smem>>
      %c0_i32_105 = arith.constant 0 : i32
      %c0_i32_106 = arith.constant 0 : i32
      %225 = tpu.memref_slice %arg3[%224, %c0_i32_106] : memref<50x32xf32, #tpu.memory_space<any>> -> memref<1x32xf32, #tpu.memory_space<any>>
      %c8_i32_107 = arith.constant 8 : i32
      %c0_i32_108 = arith.constant 0 : i32
      %226 = tpu.memref_slice %arg17[%c8_i32_107, %c0_i32_108] : memref<16x32xf32, #tpu.memory_space<vmem>> -> memref<1x32xf32, #tpu.memory_space<vmem>>
      %227 = tpu.memref_slice %arg18[%c0_i32_105] : memref<1x!tpu.dma_semaphore, #tpu.memory_space<semaphore_mem>> -> memref<1x!tpu.dma_semaphore, #tpu.memory_space<semaphore_mem>>
      %228 = tpu.memref_squeeze %227 : memref<1x!tpu.dma_semaphore, #tpu.memory_space<semaphore_mem>> -> memref<!tpu.dma_semaphore, #tpu.memory_space<semaphore_mem>>
      tpu.enqueue_dma source(%225 : memref<1x32xf32, #tpu.memory_space<any>>) target(%226 : memref<1x32xf32, #tpu.memory_space<vmem>>) target_semaphore(%228 : memref<!tpu.dma_semaphore, #tpu.memory_space<semaphore_mem>>)
      %c9_i32 = arith.constant 9 : i32
      %229 = arith.addi %165, %c9_i32 : i32
      %230 = arith.index_cast %229 : i32 to index
      %231 = memref.load %arg2[%230] : memref<16xi32, #tpu.memory_space<smem>>
      %c0_i32_109 = arith.constant 0 : i32
      %c0_i32_110 = arith.constant 0 : i32
      %232 = tpu.memref_slice %arg3[%231, %c0_i32_110] : memref<50x32xf32, #tpu.memory_space<any>> -> memref<1x32xf32, #tpu.memory_space<any>>
      %c9_i32_111 = arith.constant 9 : i32
      %c0_i32_112 = arith.constant 0 : i32
      %233 = tpu.memref_slice %arg17[%c9_i32_111, %c0_i32_112] : memref<16x32xf32, #tpu.memory_space<vmem>> -> memref<1x32xf32, #tpu.memory_space<vmem>>
      %234 = tpu.memref_slice %arg18[%c0_i32_109] : memref<1x!tpu.dma_semaphore, #tpu.memory_space<semaphore_mem>> -> memref<1x!tpu.dma_semaphore, #tpu.memory_space<semaphore_mem>>
      %235 = tpu.memref_squeeze %234 : memref<1x!tpu.dma_semaphore, #tpu.memory_space<semaphore_mem>> -> memref<!tpu.dma_semaphore, #tpu.memory_space<semaphore_mem>>
      tpu.enqueue_dma source(%232 : memref<1x32xf32, #tpu.memory_space<any>>) target(%233 : memref<1x32xf32, #tpu.memory_space<vmem>>) target_semaphore(%235 : memref<!tpu.dma_semaphore, #tpu.memory_space<semaphore_mem>>)
      %c10_i32 = arith.constant 10 : i32
      %236 = arith.addi %165, %c10_i32 : i32
      %237 = arith.index_cast %236 : i32 to index
      %238 = memref.load %arg2[%237] : memref<16xi32, #tpu.memory_space<smem>>
      %c0_i32_113 = arith.constant 0 : i32
      %c0_i32_114 = arith.constant 0 : i32
      %239 = tpu.memref_slice %arg3[%238, %c0_i32_114] : memref<50x32xf32, #tpu.memory_space<any>> -> memref<1x32xf32, #tpu.memory_space<any>>
      %c10_i32_115 = arith.constant 10 : i32
      %c0_i32_116 = arith.constant 0 : i32
      %240 = tpu.memref_slice %arg17[%c10_i32_115, %c0_i32_116] : memref<16x32xf32, #tpu.memory_space<vmem>> -> memref<1x32xf32, #tpu.memory_space<vmem>>
      %241 = tpu.memref_slice %arg18[%c0_i32_113] : memref<1x!tpu.dma_semaphore, #tpu.memory_space<semaphore_mem>> -> memref<1x!tpu.dma_semaphore, #tpu.memory_space<semaphore_mem>>
      %242 = tpu.memref_squeeze %241 : memref<1x!tpu.dma_semaphore, #tpu.memory_space<semaphore_mem>> -> memref<!tpu.dma_semaphore, #tpu.memory_space<semaphore_mem>>
      tpu.enqueue_dma source(%239 : memref<1x32xf32, #tpu.memory_space<any>>) target(%240 : memref<1x32xf32, #tpu.memory_space<vmem>>) target_semaphore(%242 : memref<!tpu.dma_semaphore, #tpu.memory_space<semaphore_mem>>)
      %c11_i32 = arith.constant 11 : i32
      %243 = arith.addi %165, %c11_i32 : i32
      %244 = arith.index_cast %243 : i32 to index
      %245 = memref.load %arg2[%244] : memref<16xi32, #tpu.memory_space<smem>>
      %c0_i32_117 = arith.constant 0 : i32
      %c0_i32_118 = arith.constant 0 : i32
      %246 = tpu.memref_slice %arg3[%245, %c0_i32_118] : memref<50x32xf32, #tpu.memory_space<any>> -> memref<1x32xf32, #tpu.memory_space<any>>
      %c11_i32_119 = arith.constant 11 : i32
      %c0_i32_120 = arith.constant 0 : i32
      %247 = tpu.memref_slice %arg17[%c11_i32_119, %c0_i32_120] : memref<16x32xf32, #tpu.memory_space<vmem>> -> memref<1x32xf32, #tpu.memory_space<vmem>>
      %248 = tpu.memref_slice %arg18[%c0_i32_117] : memref<1x!tpu.dma_semaphore, #tpu.memory_space<semaphore_mem>> -> memref<1x!tpu.dma_semaphore, #tpu.memory_space<semaphore_mem>>
      %249 = tpu.memref_squeeze %248 : memref<1x!tpu.dma_semaphore, #tpu.memory_space<semaphore_mem>> -> memref<!tpu.dma_semaphore, #tpu.memory_space<semaphore_mem>>
      tpu.enqueue_dma source(%246 : memref<1x32xf32, #tpu.memory_space<any>>) target(%247 : memref<1x32xf32, #tpu.memory_space<vmem>>) target_semaphore(%249 : memref<!tpu.dma_semaphore, #tpu.memory_space<semaphore_mem>>)
      %c12_i32 = arith.constant 12 : i32
      %250 = arith.addi %165, %c12_i32 : i32
      %251 = arith.index_cast %250 : i32 to index
      %252 = memref.load %arg2[%251] : memref<16xi32, #tpu.memory_space<smem>>
      %c0_i32_121 = arith.constant 0 : i32
      %c0_i32_122 = arith.constant 0 : i32
      %253 = tpu.memref_slice %arg3[%252, %c0_i32_122] : memref<50x32xf32, #tpu.memory_space<any>> -> memref<1x32xf32, #tpu.memory_space<any>>
      %c12_i32_123 = arith.constant 12 : i32
      %c0_i32_124 = arith.constant 0 : i32
      %254 = tpu.memref_slice %arg17[%c12_i32_123, %c0_i32_124] : memref<16x32xf32, #tpu.memory_space<vmem>> -> memref<1x32xf32, #tpu.memory_space<vmem>>
      %255 = tpu.memref_slice %arg18[%c0_i32_121] : memref<1x!tpu.dma_semaphore, #tpu.memory_space<semaphore_mem>> -> memref<1x!tpu.dma_semaphore, #tpu.memory_space<semaphore_mem>>
      %256 = tpu.memref_squeeze %255 : memref<1x!tpu.dma_semaphore, #tpu.memory_space<semaphore_mem>> -> memref<!tpu.dma_semaphore, #tpu.memory_space<semaphore_mem>>
      tpu.enqueue_dma source(%253 : memref<1x32xf32, #tpu.memory_space<any>>) target(%254 : memref<1x32xf32, #tpu.memory_space<vmem>>) target_semaphore(%256 : memref<!tpu.dma_semaphore, #tpu.memory_space<semaphore_mem>>)
      %c13_i32 = arith.constant 13 : i32
      %257 = arith.addi %165, %c13_i32 : i32
      %258 = arith.index_cast %257 : i32 to index
      %259 = memref.load %arg2[%258] : memref<16xi32, #tpu.memory_space<smem>>
      %c0_i32_125 = arith.constant 0 : i32
      %c0_i32_126 = arith.constant 0 : i32
      %260 = tpu.memref_slice %arg3[%259, %c0_i32_126] : memref<50x32xf32, #tpu.memory_space<any>> -> memref<1x32xf32, #tpu.memory_space<any>>
      %c13_i32_127 = arith.constant 13 : i32
      %c0_i32_128 = arith.constant 0 : i32
      %261 = tpu.memref_slice %arg17[%c13_i32_127, %c0_i32_128] : memref<16x32xf32, #tpu.memory_space<vmem>> -> memref<1x32xf32, #tpu.memory_space<vmem>>
      %262 = tpu.memref_slice %arg18[%c0_i32_125] : memref<1x!tpu.dma_semaphore, #tpu.memory_space<semaphore_mem>> -> memref<1x!tpu.dma_semaphore, #tpu.memory_space<semaphore_mem>>
      %263 = tpu.memref_squeeze %262 : memref<1x!tpu.dma_semaphore, #tpu.memory_space<semaphore_mem>> -> memref<!tpu.dma_semaphore, #tpu.memory_space<semaphore_mem>>
      tpu.enqueue_dma source(%260 : memref<1x32xf32, #tpu.memory_space<any>>) target(%261 : memref<1x32xf32, #tpu.memory_space<vmem>>) target_semaphore(%263 : memref<!tpu.dma_semaphore, #tpu.memory_space<semaphore_mem>>)
      %c14_i32 = arith.constant 14 : i32
      %264 = arith.addi %165, %c14_i32 : i32
      %265 = arith.index_cast %264 : i32 to index
      %266 = memref.load %arg2[%265] : memref<16xi32, #tpu.memory_space<smem>>
      %c0_i32_129 = arith.constant 0 : i32
      %c0_i32_130 = arith.constant 0 : i32
      %267 = tpu.memref_slice %arg3[%266, %c0_i32_130] : memref<50x32xf32, #tpu.memory_space<any>> -> memref<1x32xf32, #tpu.memory_space<any>>
      %c14_i32_131 = arith.constant 14 : i32
      %c0_i32_132 = arith.constant 0 : i32
      %268 = tpu.memref_slice %arg17[%c14_i32_131, %c0_i32_132] : memref<16x32xf32, #tpu.memory_space<vmem>> -> memref<1x32xf32, #tpu.memory_space<vmem>>
      %269 = tpu.memref_slice %arg18[%c0_i32_129] : memref<1x!tpu.dma_semaphore, #tpu.memory_space<semaphore_mem>> -> memref<1x!tpu.dma_semaphore, #tpu.memory_space<semaphore_mem>>
      %270 = tpu.memref_squeeze %269 : memref<1x!tpu.dma_semaphore, #tpu.memory_space<semaphore_mem>> -> memref<!tpu.dma_semaphore, #tpu.memory_space<semaphore_mem>>
      tpu.enqueue_dma source(%267 : memref<1x32xf32, #tpu.memory_space<any>>) target(%268 : memref<1x32xf32, #tpu.memory_space<vmem>>) target_semaphore(%270 : memref<!tpu.dma_semaphore, #tpu.memory_space<semaphore_mem>>)
      %c15_i32 = arith.constant 15 : i32
      %271 = arith.addi %165, %c15_i32 : i32
      %272 = arith.index_cast %271 : i32 to index
      %273 = memref.load %arg2[%272] : memref<16xi32, #tpu.memory_space<smem>>
      %c0_i32_133 = arith.constant 0 : i32
      %c0_i32_134 = arith.constant 0 : i32
      %274 = tpu.memref_slice %arg3[%273, %c0_i32_134] : memref<50x32xf32, #tpu.memory_space<any>> -> memref<1x32xf32, #tpu.memory_space<any>>
      %c15_i32_135 = arith.constant 15 : i32
      %c0_i32_136 = arith.constant 0 : i32
      %275 = tpu.memref_slice %arg17[%c15_i32_135, %c0_i32_136] : memref<16x32xf32, #tpu.memory_space<vmem>> -> memref<1x32xf32, #tpu.memory_space<vmem>>
      %276 = tpu.memref_slice %arg18[%c0_i32_133] : memref<1x!tpu.dma_semaphore, #tpu.memory_space<semaphore_mem>> -> memref<1x!tpu.dma_semaphore, #tpu.memory_space<semaphore_mem>>
      %277 = tpu.memref_squeeze %276 : memref<1x!tpu.dma_semaphore, #tpu.memory_space<semaphore_mem>> -> memref<!tpu.dma_semaphore, #tpu.memory_space<semaphore_mem>>
      tpu.enqueue_dma source(%274 : memref<1x32xf32, #tpu.memory_space<any>>) target(%275 : memref<1x32xf32, #tpu.memory_space<vmem>>) target_semaphore(%277 : memref<!tpu.dma_semaphore, #tpu.memory_space<semaphore_mem>>)
      %c0_i32_137 = arith.constant 0 : i32
      %c0_i32_138 = arith.constant 0 : i32
      %278 = tpu.memref_slice %arg3[%168, %c0_i32_138] : memref<50x32xf32, #tpu.memory_space<any>> -> memref<1x32xf32, #tpu.memory_space<any>>
      %c0_i32_139 = arith.constant 0 : i32
      %c0_i32_140 = arith.constant 0 : i32
      %279 = tpu.memref_slice %arg17[%c0_i32_139, %c0_i32_140] : memref<16x32xf32, #tpu.memory_space<vmem>> -> memref<1x32xf32, #tpu.memory_space<vmem>>
      %280 = tpu.memref_slice %arg18[%c0_i32_137] : memref<1x!tpu.dma_semaphore, #tpu.memory_space<semaphore_mem>> -> memref<1x!tpu.dma_semaphore, #tpu.memory_space<semaphore_mem>>
      %281 = tpu.memref_squeeze %280 : memref<1x!tpu.dma_semaphore, #tpu.memory_space<semaphore_mem>> -> memref<!tpu.dma_semaphore, #tpu.memory_space<semaphore_mem>>
      tpu.wait_dma2 semaphore(%281 : memref<!tpu.dma_semaphore, #tpu.memory_space<semaphore_mem>>) src(%278 : memref<1x32xf32, #tpu.memory_space<any>>) dst(%279 : memref<1x32xf32, #tpu.memory_space<vmem>>)
      %c0_i32_141 = arith.constant 0 : i32
      %c0_i32_142 = arith.constant 0 : i32
      %282 = tpu.memref_slice %arg3[%175, %c0_i32_142] : memref<50x32xf32, #tpu.memory_space<any>> -> memref<1x32xf32, #tpu.memory_space<any>>
      %c1_i32_143 = arith.constant 1 : i32
      %c0_i32_144 = arith.constant 0 : i32
      %283 = tpu.memref_slice %arg17[%c1_i32_143, %c0_i32_144] : memref<16x32xf32, #tpu.memory_space<vmem>> -> memref<1x32xf32, #tpu.memory_space<vmem>>
      %284 = tpu.memref_slice %arg18[%c0_i32_141] : memref<1x!tpu.dma_semaphore, #tpu.memory_space<semaphore_mem>> -> memref<1x!tpu.dma_semaphore, #tpu.memory_space<semaphore_mem>>
      %285 = tpu.memref_squeeze %284 : memref<1x!tpu.dma_semaphore, #tpu.memory_space<semaphore_mem>> -> memref<!tpu.dma_semaphore, #tpu.memory_space<semaphore_mem>>
      tpu.wait_dma2 semaphore(%285 : memref<!tpu.dma_semaphore, #tpu.memory_space<semaphore_mem>>) src(%282 : memref<1x32xf32, #tpu.memory_space<any>>) dst(%283 : memref<1x32xf32, #tpu.memory_space<vmem>>)
      %c0_i32_145 = arith.constant 0 : i32
      %c0_i32_146 = arith.constant 0 : i32
      %286 = tpu.memref_slice %arg3[%182, %c0_i32_146] : memref<50x32xf32, #tpu.memory_space<any>> -> memref<1x32xf32, #tpu.memory_space<any>>
      %c2_i32_147 = arith.constant 2 : i32
      %c0_i32_148 = arith.constant 0 : i32
      %287 = tpu.memref_slice %arg17[%c2_i32_147, %c0_i32_148] : memref<16x32xf32, #tpu.memory_space<vmem>> -> memref<1x32xf32, #tpu.memory_space<vmem>>
      %288 = tpu.memref_slice %arg18[%c0_i32_145] : memref<1x!tpu.dma_semaphore, #tpu.memory_space<semaphore_mem>> -> memref<1x!tpu.dma_semaphore, #tpu.memory_space<semaphore_mem>>
      %289 = tpu.memref_squeeze %288 : memref<1x!tpu.dma_semaphore, #tpu.memory_space<semaphore_mem>> -> memref<!tpu.dma_semaphore, #tpu.memory_space<semaphore_mem>>
      tpu.wait_dma2 semaphore(%289 : memref<!tpu.dma_semaphore, #tpu.memory_space<semaphore_mem>>) src(%286 : memref<1x32xf32, #tpu.memory_space<any>>) dst(%287 : memref<1x32xf32, #tpu.memory_space<vmem>>)
      %c0_i32_149 = arith.constant 0 : i32
      %c0_i32_150 = arith.constant 0 : i32
      %290 = tpu.memref_slice %arg3[%189, %c0_i32_150] : memref<50x32xf32, #tpu.memory_space<any>> -> memref<1x32xf32, #tpu.memory_space<any>>
      %c3_i32_151 = arith.constant 3 : i32
      %c0_i32_152 = arith.constant 0 : i32
      %291 = tpu.memref_slice %arg17[%c3_i32_151, %c0_i32_152] : memref<16x32xf32, #tpu.memory_space<vmem>> -> memref<1x32xf32, #tpu.memory_space<vmem>>
      %292 = tpu.memref_slice %arg18[%c0_i32_149] : memref<1x!tpu.dma_semaphore, #tpu.memory_space<semaphore_mem>> -> memref<1x!tpu.dma_semaphore, #tpu.memory_space<semaphore_mem>>
      %293 = tpu.memref_squeeze %292 : memref<1x!tpu.dma_semaphore, #tpu.memory_space<semaphore_mem>> -> memref<!tpu.dma_semaphore, #tpu.memory_space<semaphore_mem>>
      tpu.wait_dma2 semaphore(%293 : memref<!tpu.dma_semaphore, #tpu.memory_space<semaphore_mem>>) src(%290 : memref<1x32xf32, #tpu.memory_space<any>>) dst(%291 : memref<1x32xf32, #tpu.memory_space<vmem>>)
      %c0_i32_153 = arith.constant 0 : i32
      %c0_i32_154 = arith.constant 0 : i32
      %294 = tpu.memref_slice %arg3[%196, %c0_i32_154] : memref<50x32xf32, #tpu.memory_space<any>> -> memref<1x32xf32, #tpu.memory_space<any>>
      %c4_i32_155 = arith.constant 4 : i32
      %c0_i32_156 = arith.constant 0 : i32
      %295 = tpu.memref_slice %arg17[%c4_i32_155, %c0_i32_156] : memref<16x32xf32, #tpu.memory_space<vmem>> -> memref<1x32xf32, #tpu.memory_space<vmem>>
      %296 = tpu.memref_slice %arg18[%c0_i32_153] : memref<1x!tpu.dma_semaphore, #tpu.memory_space<semaphore_mem>> -> memref<1x!tpu.dma_semaphore, #tpu.memory_space<semaphore_mem>>
      %297 = tpu.memref_squeeze %296 : memref<1x!tpu.dma_semaphore, #tpu.memory_space<semaphore_mem>> -> memref<!tpu.dma_semaphore, #tpu.memory_space<semaphore_mem>>
      tpu.wait_dma2 semaphore(%297 : memref<!tpu.dma_semaphore, #tpu.memory_space<semaphore_mem>>) src(%294 : memref<1x32xf32, #tpu.memory_space<any>>) dst(%295 : memref<1x32xf32, #tpu.memory_space<vmem>>)
      %c0_i32_157 = arith.constant 0 : i32
      %c0_i32_158 = arith.constant 0 : i32
      %298 = tpu.memref_slice %arg3[%203, %c0_i32_158] : memref<50x32xf32, #tpu.memory_space<any>> -> memref<1x32xf32, #tpu.memory_space<any>>
      %c5_i32_159 = arith.constant 5 : i32
      %c0_i32_160 = arith.constant 0 : i32
      %299 = tpu.memref_slice %arg17[%c5_i32_159, %c0_i32_160] : memref<16x32xf32, #tpu.memory_space<vmem>> -> memref<1x32xf32, #tpu.memory_space<vmem>>
      %300 = tpu.memref_slice %arg18[%c0_i32_157] : memref<1x!tpu.dma_semaphore, #tpu.memory_space<semaphore_mem>> -> memref<1x!tpu.dma_semaphore, #tpu.memory_space<semaphore_mem>>
      %301 = tpu.memref_squeeze %300 : memref<1x!tpu.dma_semaphore, #tpu.memory_space<semaphore_mem>> -> memref<!tpu.dma_semaphore, #tpu.memory_space<semaphore_mem>>
      tpu.wait_dma2 semaphore(%301 : memref<!tpu.dma_semaphore, #tpu.memory_space<semaphore_mem>>) src(%298 : memref<1x32xf32, #tpu.memory_space<any>>) dst(%299 : memref<1x32xf32, #tpu.memory_space<vmem>>)
      %c0_i32_161 = arith.constant 0 : i32
      %c0_i32_162 = arith.constant 0 : i32
      %302 = tpu.memref_slice %arg3[%210, %c0_i32_162] : memref<50x32xf32, #tpu.memory_space<any>> -> memref<1x32xf32, #tpu.memory_space<any>>
      %c6_i32_163 = arith.constant 6 : i32
      %c0_i32_164 = arith.constant 0 : i32
      %303 = tpu.memref_slice %arg17[%c6_i32_163, %c0_i32_164] : memref<16x32xf32, #tpu.memory_space<vmem>> -> memref<1x32xf32, #tpu.memory_space<vmem>>
      %304 = tpu.memref_slice %arg18[%c0_i32_161] : memref<1x!tpu.dma_semaphore, #tpu.memory_space<semaphore_mem>> -> memref<1x!tpu.dma_semaphore, #tpu.memory_space<semaphore_mem>>
      %305 = tpu.memref_squeeze %304 : memref<1x!tpu.dma_semaphore, #tpu.memory_space<semaphore_mem>> -> memref<!tpu.dma_semaphore, #tpu.memory_space<semaphore_mem>>
      tpu.wait_dma2 semaphore(%305 : memref<!tpu.dma_semaphore, #tpu.memory_space<semaphore_mem>>) src(%302 : memref<1x32xf32, #tpu.memory_space<any>>) dst(%303 : memref<1x32xf32, #tpu.memory_space<vmem>>)
      %c0_i32_165 = arith.constant 0 : i32
      %c0_i32_166 = arith.constant 0 : i32
      %306 = tpu.memref_slice %arg3[%217, %c0_i32_166] : memref<50x32xf32, #tpu.memory_space<any>> -> memref<1x32xf32, #tpu.memory_space<any>>
      %c7_i32_167 = arith.constant 7 : i32
      %c0_i32_168 = arith.constant 0 : i32
      %307 = tpu.memref_slice %arg17[%c7_i32_167, %c0_i32_168] : memref<16x32xf32, #tpu.memory_space<vmem>> -> memref<1x32xf32, #tpu.memory_space<vmem>>
      %308 = tpu.memref_slice %arg18[%c0_i32_165] : memref<1x!tpu.dma_semaphore, #tpu.memory_space<semaphore_mem>> -> memref<1x!tpu.dma_semaphore, #tpu.memory_space<semaphore_mem>>
      %309 = tpu.memref_squeeze %308 : memref<1x!tpu.dma_semaphore, #tpu.memory_space<semaphore_mem>> -> memref<!tpu.dma_semaphore, #tpu.memory_space<semaphore_mem>>
      tpu.wait_dma2 semaphore(%309 : memref<!tpu.dma_semaphore, #tpu.memory_space<semaphore_mem>>) src(%306 : memref<1x32xf32, #tpu.memory_space<any>>) dst(%307 : memref<1x32xf32, #tpu.memory_space<vmem>>)
      %c0_i32_169 = arith.constant 0 : i32
      %c0_i32_170 = arith.constant 0 : i32
      %310 = tpu.memref_slice %arg3[%224, %c0_i32_170] : memref<50x32xf32, #tpu.memory_space<any>> -> memref<1x32xf32, #tpu.memory_space<any>>
      %c8_i32_171 = arith.constant 8 : i32
      %c0_i32_172 = arith.constant 0 : i32
      %311 = tpu.memref_slice %arg17[%c8_i32_171, %c0_i32_172] : memref<16x32xf32, #tpu.memory_space<vmem>> -> memref<1x32xf32, #tpu.memory_space<vmem>>
      %312 = tpu.memref_slice %arg18[%c0_i32_169] : memref<1x!tpu.dma_semaphore, #tpu.memory_space<semaphore_mem>> -> memref<1x!tpu.dma_semaphore, #tpu.memory_space<semaphore_mem>>
      %313 = tpu.memref_squeeze %312 : memref<1x!tpu.dma_semaphore, #tpu.memory_space<semaphore_mem>> -> memref<!tpu.dma_semaphore, #tpu.memory_space<semaphore_mem>>
      tpu.wait_dma2 semaphore(%313 : memref<!tpu.dma_semaphore, #tpu.memory_space<semaphore_mem>>) src(%310 : memref<1x32xf32, #tpu.memory_space<any>>) dst(%311 : memref<1x32xf32, #tpu.memory_space<vmem>>)
      %c0_i32_173 = arith.constant 0 : i32
      %c0_i32_174 = arith.constant 0 : i32
      %314 = tpu.memref_slice %arg3[%231, %c0_i32_174] : memref<50x32xf32, #tpu.memory_space<any>> -> memref<1x32xf32, #tpu.memory_space<any>>
      %c9_i32_175 = arith.constant 9 : i32
      %c0_i32_176 = arith.constant 0 : i32
      %315 = tpu.memref_slice %arg17[%c9_i32_175, %c0_i32_176] : memref<16x32xf32, #tpu.memory_space<vmem>> -> memref<1x32xf32, #tpu.memory_space<vmem>>
      %316 = tpu.memref_slice %arg18[%c0_i32_173] : memref<1x!tpu.dma_semaphore, #tpu.memory_space<semaphore_mem>> -> memref<1x!tpu.dma_semaphore, #tpu.memory_space<semaphore_mem>>
      %317 = tpu.memref_squeeze %316 : memref<1x!tpu.dma_semaphore, #tpu.memory_space<semaphore_mem>> -> memref<!tpu.dma_semaphore, #tpu.memory_space<semaphore_mem>>
      tpu.wait_dma2 semaphore(%317 : memref<!tpu.dma_semaphore, #tpu.memory_space<semaphore_mem>>) src(%314 : memref<1x32xf32, #tpu.memory_space<any>>) dst(%315 : memref<1x32xf32, #tpu.memory_space<vmem>>)
      %c0_i32_177 = arith.constant 0 : i32
      %c0_i32_178 = arith.constant 0 : i32
      %318 = tpu.memref_slice %arg3[%238, %c0_i32_178] : memref<50x32xf32, #tpu.memory_space<any>> -> memref<1x32xf32, #tpu.memory_space<any>>
      %c10_i32_179 = arith.constant 10 : i32
      %c0_i32_180 = arith.constant 0 : i32
      %319 = tpu.memref_slice %arg17[%c10_i32_179, %c0_i32_180] : memref<16x32xf32, #tpu.memory_space<vmem>> -> memref<1x32xf32, #tpu.memory_space<vmem>>
      %320 = tpu.memref_slice %arg18[%c0_i32_177] : memref<1x!tpu.dma_semaphore, #tpu.memory_space<semaphore_mem>> -> memref<1x!tpu.dma_semaphore, #tpu.memory_space<semaphore_mem>>
      %321 = tpu.memref_squeeze %320 : memref<1x!tpu.dma_semaphore, #tpu.memory_space<semaphore_mem>> -> memref<!tpu.dma_semaphore, #tpu.memory_space<semaphore_mem>>
      tpu.wait_dma2 semaphore(%321 : memref<!tpu.dma_semaphore, #tpu.memory_space<semaphore_mem>>) src(%318 : memref<1x32xf32, #tpu.memory_space<any>>) dst(%319 : memref<1x32xf32, #tpu.memory_space<vmem>>)
      %c0_i32_181 = arith.constant 0 : i32
      %c0_i32_182 = arith.constant 0 : i32
      %322 = tpu.memref_slice %arg3[%245, %c0_i32_182] : memref<50x32xf32, #tpu.memory_space<any>> -> memref<1x32xf32, #tpu.memory_space<any>>
      %c11_i32_183 = arith.constant 11 : i32
      %c0_i32_184 = arith.constant 0 : i32
      %323 = tpu.memref_slice %arg17[%c11_i32_183, %c0_i32_184] : memref<16x32xf32, #tpu.memory_space<vmem>> -> memref<1x32xf32, #tpu.memory_space<vmem>>
      %324 = tpu.memref_slice %arg18[%c0_i32_181] : memref<1x!tpu.dma_semaphore, #tpu.memory_space<semaphore_mem>> -> memref<1x!tpu.dma_semaphore, #tpu.memory_space<semaphore_mem>>
      %325 = tpu.memref_squeeze %324 : memref<1x!tpu.dma_semaphore, #tpu.memory_space<semaphore_mem>> -> memref<!tpu.dma_semaphore, #tpu.memory_space<semaphore_mem>>
      tpu.wait_dma2 semaphore(%325 : memref<!tpu.dma_semaphore, #tpu.memory_space<semaphore_mem>>) src(%322 : memref<1x32xf32, #tpu.memory_space<any>>) dst(%323 : memref<1x32xf32, #tpu.memory_space<vmem>>)
      %c0_i32_185 = arith.constant 0 : i32
      %c0_i32_186 = arith.constant 0 : i32
      %326 = tpu.memref_slice %arg3[%252, %c0_i32_186] : memref<50x32xf32, #tpu.memory_space<any>> -> memref<1x32xf32, #tpu.memory_space<any>>
      %c12_i32_187 = arith.constant 12 : i32
      %c0_i32_188 = arith.constant 0 : i32
      %327 = tpu.memref_slice %arg17[%c12_i32_187, %c0_i32_188] : memref<16x32xf32, #tpu.memory_space<vmem>> -> memref<1x32xf32, #tpu.memory_space<vmem>>
      %328 = tpu.memref_slice %arg18[%c0_i32_185] : memref<1x!tpu.dma_semaphore, #tpu.memory_space<semaphore_mem>> -> memref<1x!tpu.dma_semaphore, #tpu.memory_space<semaphore_mem>>
      %329 = tpu.memref_squeeze %328 : memref<1x!tpu.dma_semaphore, #tpu.memory_space<semaphore_mem>> -> memref<!tpu.dma_semaphore, #tpu.memory_space<semaphore_mem>>
      tpu.wait_dma2 semaphore(%329 : memref<!tpu.dma_semaphore, #tpu.memory_space<semaphore_mem>>) src(%326 : memref<1x32xf32, #tpu.memory_space<any>>) dst(%327 : memref<1x32xf32, #tpu.memory_space<vmem>>)
      %c0_i32_189 = arith.constant 0 : i32
      %c0_i32_190 = arith.constant 0 : i32
      %330 = tpu.memref_slice %arg3[%259, %c0_i32_190] : memref<50x32xf32, #tpu.memory_space<any>> -> memref<1x32xf32, #tpu.memory_space<any>>
      %c13_i32_191 = arith.constant 13 : i32
      %c0_i32_192 = arith.constant 0 : i32
      %331 = tpu.memref_slice %arg17[%c13_i32_191, %c0_i32_192] : memref<16x32xf32, #tpu.memory_space<vmem>> -> memref<1x32xf32, #tpu.memory_space<vmem>>
      %332 = tpu.memref_slice %arg18[%c0_i32_189] : memref<1x!tpu.dma_semaphore, #tpu.memory_space<semaphore_mem>> -> memref<1x!tpu.dma_semaphore, #tpu.memory_space<semaphore_mem>>
      %333 = tpu.memref_squeeze %332 : memref<1x!tpu.dma_semaphore, #tpu.memory_space<semaphore_mem>> -> memref<!tpu.dma_semaphore, #tpu.memory_space<semaphore_mem>>
      tpu.wait_dma2 semaphore(%333 : memref<!tpu.dma_semaphore, #tpu.memory_space<semaphore_mem>>) src(%330 : memref<1x32xf32, #tpu.memory_space<any>>) dst(%331 : memref<1x32xf32, #tpu.memory_space<vmem>>)
      %c0_i32_193 = arith.constant 0 : i32
      %c0_i32_194 = arith.constant 0 : i32
      %334 = tpu.memref_slice %arg3[%266, %c0_i32_194] : memref<50x32xf32, #tpu.memory_space<any>> -> memref<1x32xf32, #tpu.memory_space<any>>
      %c14_i32_195 = arith.constant 14 : i32
      %c0_i32_196 = arith.constant 0 : i32
      %335 = tpu.memref_slice %arg17[%c14_i32_195, %c0_i32_196] : memref<16x32xf32, #tpu.memory_space<vmem>> -> memref<1x32xf32, #tpu.memory_space<vmem>>
      %336 = tpu.memref_slice %arg18[%c0_i32_193] : memref<1x!tpu.dma_semaphore, #tpu.memory_space<semaphore_mem>> -> memref<1x!tpu.dma_semaphore, #tpu.memory_space<semaphore_mem>>
      %337 = tpu.memref_squeeze %336 : memref<1x!tpu.dma_semaphore, #tpu.memory_space<semaphore_mem>> -> memref<!tpu.dma_semaphore, #tpu.memory_space<semaphore_mem>>
      tpu.wait_dma2 semaphore(%337 : memref<!tpu.dma_semaphore, #tpu.memory_space<semaphore_mem>>) src(%334 : memref<1x32xf32, #tpu.memory_space<any>>) dst(%335 : memref<1x32xf32, #tpu.memory_space<vmem>>)
      %c0_i32_197 = arith.constant 0 : i32
      %c0_i32_198 = arith.constant 0 : i32
      %338 = tpu.memref_slice %arg3[%273, %c0_i32_198] : memref<50x32xf32, #tpu.memory_space<any>> -> memref<1x32xf32, #tpu.memory_space<any>>
      %c15_i32_199 = arith.constant 15 : i32
      %c0_i32_200 = arith.constant 0 : i32
      %339 = tpu.memref_slice %arg17[%c15_i32_199, %c0_i32_200] : memref<16x32xf32, #tpu.memory_space<vmem>> -> memref<1x32xf32, #tpu.memory_space<vmem>>
      %340 = tpu.memref_slice %arg18[%c0_i32_197] : memref<1x!tpu.dma_semaphore, #tpu.memory_space<semaphore_mem>> -> memref<1x!tpu.dma_semaphore, #tpu.memory_space<semaphore_mem>>
      %341 = tpu.memref_squeeze %340 : memref<1x!tpu.dma_semaphore, #tpu.memory_space<semaphore_mem>> -> memref<!tpu.dma_semaphore, #tpu.memory_space<semaphore_mem>>
      tpu.wait_dma2 semaphore(%341 : memref<!tpu.dma_semaphore, #tpu.memory_space<semaphore_mem>>) src(%338 : memref<1x32xf32, #tpu.memory_space<any>>) dst(%339 : memref<1x32xf32, #tpu.memory_space<vmem>>)
    } else {
    }
    %c0 = arith.constant 0 : index
    %c0_1 = arith.constant 0 : index
    %3 = vector.load %arg17[%c0, %c0_1] : memref<16x32xf32, #tpu.memory_space<vmem>>, vector<16x32xf32>
    %c0_2 = arith.constant 0 : index
    %c0_3 = arith.constant 0 : index
    %c0_4 = arith.constant 0 : index
    %4 = vector.load %arg4[%c0_2, %c0_3, %c0_4] : memref<1x32x96xf32, #tpu.memory_space<vmem>>, vector<1x32x96xf32>
    %5 = vector.shape_cast %4 : vector<1x32x96xf32> to vector<32x96xf32>
    %cst = arith.constant dense<0.000000e+00> : vector<16x96xf32>
    %6 = tpu.matmul %3, %5, %cst {dimension_numbers = #tpu.dot_dimension_numbers<[1], [0], [0], [1], [0, 0, 1, 1], [], []>} : vector<16x32xf32>, vector<32x96xf32>, vector<16x96xf32> -> vector<16x96xf32>
    %c0_5 = arith.constant 0 : index
    %c0_6 = arith.constant 0 : index
    %c0_7 = arith.constant 0 : index
    %7 = vector.load %arg5[%c0_5, %c0_6, %c0_7] : memref<1x1x96xf32, #tpu.memory_space<vmem>>, vector<1x1x96xf32>
    %8 = vector.shape_cast %7 : vector<1x1x96xf32> to vector<1x96xf32>
    %9 = vector.broadcast %8 : vector<1x96xf32> to vector<16x96xf32>
    %10 = arith.addf %6, %9 : vector<16x96xf32>
    %11 = vector.extract_strided_slice %10 {offsets = [0, 0], sizes = [16, 8], strides = [1, 1]} : vector<16x96xf32> to vector<16x8xf32>
    %12 = vector.shape_cast %11 : vector<16x8xf32> to vector<2x8x8xf32>
    %13 = vector.extract_strided_slice %10 {offsets = [0, 32], sizes = [16, 8], strides = [1, 1]} : vector<16x96xf32> to vector<16x8xf32>
    %14 = vector.shape_cast %13 : vector<16x8xf32> to vector<2x8x8xf32>
    %15 = vector.extract_strided_slice %10 {offsets = [0, 64], sizes = [16, 8], strides = [1, 1]} : vector<16x96xf32> to vector<16x8xf32>
    %16 = vector.shape_cast %15 : vector<16x8xf32> to vector<2x8x8xf32>
    "tpu.trace_start"() <{level = 10 : i32, message = "bqd,bkd->bqk"}> : () -> ()
    %cst_8 = arith.constant dense<0.000000e+00> : vector<2x8x8xf32>
    %17 = tpu.matmul %12, %14, %cst_8 {dimension_numbers = #tpu.dot_dimension_numbers<[2], [2], [1], [1], [0, 0, 0, 1, 1, 1], [0], [0]>} : vector<2x8x8xf32>, vector<2x8x8xf32>, vector<2x8x8xf32> -> vector<2x8x8xf32>
    "tpu.trace_stop"() : () -> ()
    %cst_9 = arith.constant dense<0xFF800000> : vector<2x8xf32>
    %18 = vector.multi_reduction <maximumf>, %17, %cst_9 [2] : vector<2x8x8xf32> to vector<2x8xf32>
    %19 = vector.shape_cast %18 : vector<2x8xf32> to vector<2x8x1xf32>
    %20 = vector.broadcast %19 : vector<2x8x1xf32> to vector<2x8x8xf32>
    %21 = arith.subf %17, %20 : vector<2x8x8xf32>
    %22 = math.exp %21 : vector<2x8x8xf32>
    %cst_10 = arith.constant dense<0.000000e+00> : vector<2x8xf32>
    %23 = vector.multi_reduction <add>, %22, %cst_10 [2] : vector<2x8x8xf32> to vector<2x8xf32>
    %24 = vector.shape_cast %23 : vector<2x8xf32> to vector<2x8x1xf32>
    "tpu.trace_start"() <{level = 10 : i32, message = "bqk,bkd->bqd"}> : () -> ()
    %cst_11 = arith.constant dense<0.000000e+00> : vector<2x8x8xf32>
    %25 = tpu.matmul %22, %16, %cst_11 {dimension_numbers = #tpu.dot_dimension_numbers<[2], [1], [1], [2], [0, 0, 0, 1, 1, 2], [0], [0]>} : vector<2x8x8xf32>, vector<2x8x8xf32>, vector<2x8x8xf32> -> vector<2x8x8xf32>
    "tpu.trace_stop"() : () -> ()
    %26 = vector.broadcast %24 : vector<2x8x1xf32> to vector<2x8x8xf32>
    %27 = arith.divf %25, %26 : vector<2x8x8xf32>
    %28 = vector.shape_cast %27 : vector<2x8x8xf32> to vector<16x8xf32>
    %29 = vector.extract_strided_slice %10 {offsets = [0, 8], sizes = [16, 8], strides = [1, 1]} : vector<16x96xf32> to vector<16x8xf32>
    %30 = vector.shape_cast %29 : vector<16x8xf32> to vector<2x8x8xf32>
    %31 = vector.extract_strided_slice %10 {offsets = [0, 40], sizes = [16, 8], strides = [1, 1]} : vector<16x96xf32> to vector<16x8xf32>
    %32 = vector.shape_cast %31 : vector<16x8xf32> to vector<2x8x8xf32>
    %33 = vector.extract_strided_slice %10 {offsets = [0, 72], sizes = [16, 8], strides = [1, 1]} : vector<16x96xf32> to vector<16x8xf32>
    %34 = vector.shape_cast %33 : vector<16x8xf32> to vector<2x8x8xf32>
    "tpu.trace_start"() <{level = 10 : i32, message = "bqd,bkd->bqk"}> : () -> ()
    %cst_12 = arith.constant dense<0.000000e+00> : vector<2x8x8xf32>
    %35 = tpu.matmul %30, %32, %cst_12 {dimension_numbers = #tpu.dot_dimension_numbers<[2], [2], [1], [1], [0, 0, 0, 1, 1, 1], [0], [0]>} : vector<2x8x8xf32>, vector<2x8x8xf32>, vector<2x8x8xf32> -> vector<2x8x8xf32>
    "tpu.trace_stop"() : () -> ()
    %cst_13 = arith.constant dense<0xFF800000> : vector<2x8xf32>
    %36 = vector.multi_reduction <maximumf>, %35, %cst_13 [2] : vector<2x8x8xf32> to vector<2x8xf32>
    %37 = vector.shape_cast %36 : vector<2x8xf32> to vector<2x8x1xf32>
    %38 = vector.broadcast %37 : vector<2x8x1xf32> to vector<2x8x8xf32>
    %39 = arith.subf %35, %38 : vector<2x8x8xf32>
    %40 = math.exp %39 : vector<2x8x8xf32>
    %cst_14 = arith.constant dense<0.000000e+00> : vector<2x8xf32>
    %41 = vector.multi_reduction <add>, %40, %cst_14 [2] : vector<2x8x8xf32> to vector<2x8xf32>
    %42 = vector.shape_cast %41 : vector<2x8xf32> to vector<2x8x1xf32>
    "tpu.trace_start"() <{level = 10 : i32, message = "bqk,bkd->bqd"}> : () -> ()
    %cst_15 = arith.constant dense<0.000000e+00> : vector<2x8x8xf32>
    %43 = tpu.matmul %40, %34, %cst_15 {dimension_numbers = #tpu.dot_dimension_numbers<[2], [1], [1], [2], [0, 0, 0, 1, 1, 2], [0], [0]>} : vector<2x8x8xf32>, vector<2x8x8xf32>, vector<2x8x8xf32> -> vector<2x8x8xf32>
    "tpu.trace_stop"() : () -> ()
    %44 = vector.broadcast %42 : vector<2x8x1xf32> to vector<2x8x8xf32>
    %45 = arith.divf %43, %44 : vector<2x8x8xf32>
    %46 = vector.shape_cast %45 : vector<2x8x8xf32> to vector<16x8xf32>
    %47 = vector.extract_strided_slice %10 {offsets = [0, 16], sizes = [16, 8], strides = [1, 1]} : vector<16x96xf32> to vector<16x8xf32>
    %48 = vector.shape_cast %47 : vector<16x8xf32> to vector<2x8x8xf32>
    %49 = vector.extract_strided_slice %10 {offsets = [0, 48], sizes = [16, 8], strides = [1, 1]} : vector<16x96xf32> to vector<16x8xf32>
    %50 = vector.shape_cast %49 : vector<16x8xf32> to vector<2x8x8xf32>
    %51 = vector.extract_strided_slice %10 {offsets = [0, 80], sizes = [16, 8], strides = [1, 1]} : vector<16x96xf32> to vector<16x8xf32>
    %52 = vector.shape_cast %51 : vector<16x8xf32> to vector<2x8x8xf32>
    "tpu.trace_start"() <{level = 10 : i32, message = "bqd,bkd->bqk"}> : () -> ()
    %cst_16 = arith.constant dense<0.000000e+00> : vector<2x8x8xf32>
    %53 = tpu.matmul %48, %50, %cst_16 {dimension_numbers = #tpu.dot_dimension_numbers<[2], [2], [1], [1], [0, 0, 0, 1, 1, 1], [0], [0]>} : vector<2x8x8xf32>, vector<2x8x8xf32>, vector<2x8x8xf32> -> vector<2x8x8xf32>
    "tpu.trace_stop"() : () -> ()
    %cst_17 = arith.constant dense<0xFF800000> : vector<2x8xf32>
    %54 = vector.multi_reduction <maximumf>, %53, %cst_17 [2] : vector<2x8x8xf32> to vector<2x8xf32>
    %55 = vector.shape_cast %54 : vector<2x8xf32> to vector<2x8x1xf32>
    %56 = vector.broadcast %55 : vector<2x8x1xf32> to vector<2x8x8xf32>
    %57 = arith.subf %53, %56 : vector<2x8x8xf32>
    %58 = math.exp %57 : vector<2x8x8xf32>
    %cst_18 = arith.constant dense<0.000000e+00> : vector<2x8xf32>
    %59 = vector.multi_reduction <add>, %58, %cst_18 [2] : vector<2x8x8xf32> to vector<2x8xf32>
    %60 = vector.shape_cast %59 : vector<2x8xf32> to vector<2x8x1xf32>
    "tpu.trace_start"() <{level = 10 : i32, message = "bqk,bkd->bqd"}> : () -> ()
    %cst_19 = arith.constant dense<0.000000e+00> : vector<2x8x8xf32>
    %61 = tpu.matmul %58, %52, %cst_19 {dimension_numbers = #tpu.dot_dimension_numbers<[2], [1], [1], [2], [0, 0, 0, 1, 1, 2], [0], [0]>} : vector<2x8x8xf32>, vector<2x8x8xf32>, vector<2x8x8xf32> -> vector<2x8x8xf32>
    "tpu.trace_stop"() : () -> ()
    %62 = vector.broadcast %60 : vector<2x8x1xf32> to vector<2x8x8xf32>
    %63 = arith.divf %61, %62 : vector<2x8x8xf32>
    %64 = vector.shape_cast %63 : vector<2x8x8xf32> to vector<16x8xf32>
    %65 = vector.extract_strided_slice %10 {offsets = [0, 24], sizes = [16, 8], strides = [1, 1]} : vector<16x96xf32> to vector<16x8xf32>
    %66 = vector.shape_cast %65 : vector<16x8xf32> to vector<2x8x8xf32>
    %67 = vector.extract_strided_slice %10 {offsets = [0, 56], sizes = [16, 8], strides = [1, 1]} : vector<16x96xf32> to vector<16x8xf32>
    %68 = vector.shape_cast %67 : vector<16x8xf32> to vector<2x8x8xf32>
    %69 = vector.extract_strided_slice %10 {offsets = [0, 88], sizes = [16, 8], strides = [1, 1]} : vector<16x96xf32> to vector<16x8xf32>
    %70 = vector.shape_cast %69 : vector<16x8xf32> to vector<2x8x8xf32>
    "tpu.trace_start"() <{level = 10 : i32, message = "bqd,bkd->bqk"}> : () -> ()
    %cst_20 = arith.constant dense<0.000000e+00> : vector<2x8x8xf32>
    %71 = tpu.matmul %66, %68, %cst_20 {dimension_numbers = #tpu.dot_dimension_numbers<[2], [2], [1], [1], [0, 0, 0, 1, 1, 1], [0], [0]>} : vector<2x8x8xf32>, vector<2x8x8xf32>, vector<2x8x8xf32> -> vector<2x8x8xf32>
    "tpu.trace_stop"() : () -> ()
    %cst_21 = arith.constant dense<0xFF800000> : vector<2x8xf32>
    %72 = vector.multi_reduction <maximumf>, %71, %cst_21 [2] : vector<2x8x8xf32> to vector<2x8xf32>
    %73 = vector.shape_cast %72 : vector<2x8xf32> to vector<2x8x1xf32>
    %74 = vector.broadcast %73 : vector<2x8x1xf32> to vector<2x8x8xf32>
    %75 = arith.subf %71, %74 : vector<2x8x8xf32>
    %76 = math.exp %75 : vector<2x8x8xf32>
    %cst_22 = arith.constant dense<0.000000e+00> : vector<2x8xf32>
    %77 = vector.multi_reduction <add>, %76, %cst_22 [2] : vector<2x8x8xf32> to vector<2x8xf32>
    %78 = vector.shape_cast %77 : vector<2x8xf32> to vector<2x8x1xf32>
    "tpu.trace_start"() <{level = 10 : i32, message = "bqk,bkd->bqd"}> : () -> ()
    %cst_23 = arith.constant dense<0.000000e+00> : vector<2x8x8xf32>
    %79 = tpu.matmul %76, %70, %cst_23 {dimension_numbers = #tpu.dot_dimension_numbers<[2], [1], [1], [2], [0, 0, 0, 1, 1, 2], [0], [0]>} : vector<2x8x8xf32>, vector<2x8x8xf32>, vector<2x8x8xf32> -> vector<2x8x8xf32>
    "tpu.trace_stop"() : () -> ()
    %80 = vector.broadcast %78 : vector<2x8x1xf32> to vector<2x8x8xf32>
    %81 = arith.divf %79, %80 : vector<2x8x8xf32>
    %82 = vector.shape_cast %81 : vector<2x8x8xf32> to vector<16x8xf32>
    %83 = tpu.concatenate %28, %46, %64, %82 in 1 : vector<16x8xf32>, vector<16x8xf32>, vector<16x8xf32>, vector<16x8xf32> -> vector<16x32xf32>
    %c0_24 = arith.constant 0 : index
    %c0_25 = arith.constant 0 : index
    %c0_26 = arith.constant 0 : index
    %84 = vector.load %arg6[%c0_24, %c0_25, %c0_26] : memref<1x32x32xf32, #tpu.memory_space<vmem>>, vector<1x32x32xf32>
    %85 = vector.shape_cast %84 : vector<1x32x32xf32> to vector<32x32xf32>
    %cst_27 = arith.constant dense<0.000000e+00> : vector<16x32xf32>
    %86 = tpu.matmul %83, %85, %cst_27 {dimension_numbers = #tpu.dot_dimension_numbers<[1], [0], [0], [1], [0, 0, 1, 1], [], []>} : vector<16x32xf32>, vector<32x32xf32>, vector<16x32xf32> -> vector<16x32xf32>
    %c0_28 = arith.constant 0 : index
    %c0_29 = arith.constant 0 : index
    %c0_30 = arith.constant 0 : index
    %87 = vector.load %arg7[%c0_28, %c0_29, %c0_30] : memref<1x1x32xf32, #tpu.memory_space<vmem>>, vector<1x1x32xf32>
    %88 = vector.shape_cast %87 : vector<1x1x32xf32> to vector<1x32xf32>
    %89 = vector.broadcast %88 : vector<1x32xf32> to vector<16x32xf32>
    %90 = arith.addf %86, %89 : vector<16x32xf32>
    %91 = arith.addf %3, %90 : vector<16x32xf32>
    %c0_31 = arith.constant 0 : index
    %c0_32 = arith.constant 0 : index
    %c0_33 = arith.constant 0 : index
    %92 = vector.load %arg8[%c0_31, %c0_32, %c0_33] : memref<1x1x32xf32, #tpu.memory_space<vmem>>, vector<1x1x32xf32>
    %93 = vector.shape_cast %92 : vector<1x1x32xf32> to vector<1x32xf32>
    %c0_34 = arith.constant 0 : index
    %c0_35 = arith.constant 0 : index
    %c0_36 = arith.constant 0 : index
    %94 = vector.load %arg9[%c0_34, %c0_35, %c0_36] : memref<1x1x32xf32, #tpu.memory_space<vmem>>, vector<1x1x32xf32>
    %95 = vector.shape_cast %94 : vector<1x1x32xf32> to vector<1x32xf32>
    %cst_37 = arith.constant dense<0.000000e+00> : vector<16xf32>
    %96 = vector.multi_reduction <add>, %91, %cst_37 [1] : vector<16x32xf32> to vector<16xf32>
    %97 = vector.shape_cast %96 : vector<16xf32> to vector<16x1xf32>
    %cst_38 = arith.constant 3.200000e+01 : f32
    %98 = vector.broadcast %cst_38 : f32 to vector<16x1xf32>
    %99 = arith.divf %97, %98 : vector<16x1xf32>
    %100 = vector.broadcast %99 : vector<16x1xf32> to vector<16x32xf32>
    %101 = arith.subf %91, %100 : vector<16x32xf32>
    %102 = arith.mulf %101, %101 : vector<16x32xf32>
    %cst_39 = arith.constant dense<0.000000e+00> : vector<16xf32>
    %103 = vector.multi_reduction <add>, %102, %cst_39 [1] : vector<16x32xf32> to vector<16xf32>
    %104 = vector.shape_cast %103 : vector<16xf32> to vector<16x1xf32>
    %cst_40 = arith.constant 3.200000e+01 : f32
    %105 = vector.broadcast %cst_40 : f32 to vector<16x1xf32>
    %106 = arith.divf %104, %105 : vector<16x1xf32>
    %107 = vector.broadcast %99 : vector<16x1xf32> to vector<16x32xf32>
    %108 = arith.subf %91, %107 : vector<16x32xf32>
    %cst_41 = arith.constant 9.99999974E-6 : f32
    %109 = vector.broadcast %cst_41 : f32 to vector<16x1xf32>
    %110 = arith.addf %106, %109 : vector<16x1xf32>
    %111 = math.rsqrt %110 : vector<16x1xf32>
    %112 = vector.broadcast %111 : vector<16x1xf32> to vector<16x32xf32>
    %113 = arith.mulf %108, %112 : vector<16x32xf32>
    %114 = vector.broadcast %93 : vector<1x32xf32> to vector<16x32xf32>
    %115 = arith.mulf %113, %114 : vector<16x32xf32>
    %116 = vector.broadcast %95 : vector<1x32xf32> to vector<16x32xf32>
    %117 = arith.addf %115, %116 : vector<16x32xf32>
    %c0_42 = arith.constant 0 : index
    %c0_43 = arith.constant 0 : index
    %c0_44 = arith.constant 0 : index
    %118 = vector.load %arg10[%c0_42, %c0_43, %c0_44] : memref<1x32x64xf32, #tpu.memory_space<vmem>>, vector<1x32x64xf32>
    %119 = vector.shape_cast %118 : vector<1x32x64xf32> to vector<32x64xf32>
    %cst_45 = arith.constant dense<0.000000e+00> : vector<16x64xf32>
    %120 = tpu.matmul %117, %119, %cst_45 {dimension_numbers = #tpu.dot_dimension_numbers<[1], [0], [0], [1], [0, 0, 1, 1], [], []>} : vector<16x32xf32>, vector<32x64xf32>, vector<16x64xf32> -> vector<16x64xf32>
    %c0_46 = arith.constant 0 : index
    %c0_47 = arith.constant 0 : index
    %c0_48 = arith.constant 0 : index
    %121 = vector.load %arg11[%c0_46, %c0_47, %c0_48] : memref<1x1x64xf32, #tpu.memory_space<vmem>>, vector<1x1x64xf32>
    %122 = vector.shape_cast %121 : vector<1x1x64xf32> to vector<1x64xf32>
    %123 = vector.broadcast %122 : vector<1x64xf32> to vector<16x64xf32>
    %124 = arith.addf %120, %123 : vector<16x64xf32>
    %cst_49 = arith.constant 0.000000e+00 : f32
    %125 = vector.broadcast %cst_49 : f32 to vector<16x64xf32>
    %126 = arith.maximumf %124, %125 : vector<16x64xf32>
    %c0_50 = arith.constant 0 : index
    %c0_51 = arith.constant 0 : index
    %c0_52 = arith.constant 0 : index
    %127 = vector.load %arg12[%c0_50, %c0_51, %c0_52] : memref<1x64x32xf32, #tpu.memory_space<vmem>>, vector<1x64x32xf32>
    %128 = vector.shape_cast %127 : vector<1x64x32xf32> to vector<64x32xf32>
    %cst_53 = arith.constant dense<0.000000e+00> : vector<16x32xf32>
    %129 = tpu.matmul %126, %128, %cst_53 {dimension_numbers = #tpu.dot_dimension_numbers<[1], [0], [0], [1], [0, 0, 1, 1], [], []>} : vector<16x64xf32>, vector<64x32xf32>, vector<16x32xf32> -> vector<16x32xf32>
    %c0_54 = arith.constant 0 : index
    %c0_55 = arith.constant 0 : index
    %c0_56 = arith.constant 0 : index
    %130 = vector.load %arg13[%c0_54, %c0_55, %c0_56] : memref<1x1x32xf32, #tpu.memory_space<vmem>>, vector<1x1x32xf32>
    %131 = vector.shape_cast %130 : vector<1x1x32xf32> to vector<1x32xf32>
    %132 = vector.broadcast %131 : vector<1x32xf32> to vector<16x32xf32>
    %133 = arith.addf %129, %132 : vector<16x32xf32>
    %134 = arith.addf %117, %133 : vector<16x32xf32>
    %c0_57 = arith.constant 0 : index
    %c0_58 = arith.constant 0 : index
    %c0_59 = arith.constant 0 : index
    %135 = vector.load %arg14[%c0_57, %c0_58, %c0_59] : memref<1x1x32xf32, #tpu.memory_space<vmem>>, vector<1x1x32xf32>
    %136 = vector.shape_cast %135 : vector<1x1x32xf32> to vector<1x32xf32>
    %c0_60 = arith.constant 0 : index
    %c0_61 = arith.constant 0 : index
    %c0_62 = arith.constant 0 : index
    %137 = vector.load %arg15[%c0_60, %c0_61, %c0_62] : memref<1x1x32xf32, #tpu.memory_space<vmem>>, vector<1x1x32xf32>
    %138 = vector.shape_cast %137 : vector<1x1x32xf32> to vector<1x32xf32>
    %cst_63 = arith.constant dense<0.000000e+00> : vector<16xf32>
    %139 = vector.multi_reduction <add>, %134, %cst_63 [1] : vector<16x32xf32> to vector<16xf32>
    %140 = vector.shape_cast %139 : vector<16xf32> to vector<16x1xf32>
    %cst_64 = arith.constant 3.200000e+01 : f32
    %141 = vector.broadcast %cst_64 : f32 to vector<16x1xf32>
    %142 = arith.divf %140, %141 : vector<16x1xf32>
    %143 = vector.broadcast %142 : vector<16x1xf32> to vector<16x32xf32>
    %144 = arith.subf %134, %143 : vector<16x32xf32>
    %145 = arith.mulf %144, %144 : vector<16x32xf32>
    %cst_65 = arith.constant dense<0.000000e+00> : vector<16xf32>
    %146 = vector.multi_reduction <add>, %145, %cst_65 [1] : vector<16x32xf32> to vector<16xf32>
    %147 = vector.shape_cast %146 : vector<16xf32> to vector<16x1xf32>
    %cst_66 = arith.constant 3.200000e+01 : f32
    %148 = vector.broadcast %cst_66 : f32 to vector<16x1xf32>
    %149 = arith.divf %147, %148 : vector<16x1xf32>
    %150 = vector.broadcast %142 : vector<16x1xf32> to vector<16x32xf32>
    %151 = arith.subf %134, %150 : vector<16x32xf32>
    %cst_67 = arith.constant 9.99999974E-6 : f32
    %152 = vector.broadcast %cst_67 : f32 to vector<16x1xf32>
    %153 = arith.addf %149, %152 : vector<16x1xf32>
    %154 = math.rsqrt %153 : vector<16x1xf32>
    %155 = vector.broadcast %154 : vector<16x1xf32> to vector<16x32xf32>
    %156 = arith.mulf %151, %155 : vector<16x32xf32>
    %157 = vector.broadcast %136 : vector<1x32xf32> to vector<16x32xf32>
    %158 = arith.mulf %156, %157 : vector<16x32xf32>
    %159 = vector.broadcast %138 : vector<1x32xf32> to vector<16x32xf32>
    %160 = arith.addf %158, %159 : vector<16x32xf32>
    %c0_68 = arith.constant 0 : index
    %c0_69 = arith.constant 0 : index
    %161 = vector.load %arg17[%c0_68, %c0_69] : memref<16x32xf32, #tpu.memory_space<vmem>>, vector<16x32xf32>
    tpu.vector_store %arg17[%c0_68, %c0_69], %160 {strides = array<i32>} : memref<16x32xf32, #tpu.memory_space<vmem>>, vector<16x32xf32>,
    %c1_i32 = arith.constant 1 : i32
    %162 = arith.cmpi eq, %arg1, %c1_i32 : i32
    %163 = arith.extui %162 : i1 to i32
    %c0_i32_70 = arith.constant 0 : i32
    %164 = arith.cmpi ne, %163, %c0_i32_70 : i32
    scf.if %164 {
      %c0_71 = arith.constant 0 : index
      %c0_72 = arith.constant 0 : index
      %165 = vector.load %arg16[%c0_71, %c0_72] : memref<16x32xf32, #tpu.memory_space<vmem>>, vector<16x32xf32>
      tpu.vector_store %arg16[%c0_71, %c0_72], %160 {strides = array<i32>} : memref<16x32xf32, #tpu.memory_space<vmem>>, vector<16x32xf32>,
    } else {
    }
    return
  }
  func.func @transform_1(%arg0: i32, %arg1: i32, %arg2: memref<16xi32, #tpu.memory_space<smem>>) -> (i32, i32, i32) {
    %c0_i32 = arith.constant 0 : i32
    %c0_i32_0 = arith.constant 0 : i32
    %c0_i32_1 = arith.constant 0 : i32
    return %arg1, %c0_i32, %c0_i32_0 : i32, i32, i32
  }
  func.func @transform_2(%arg0: i32, %arg1: i32, %arg2: memref<16xi32, #tpu.memory_space<smem>>) -> (i32, i32, i32) {
    %c0_i32 = arith.constant 0 : i32
    %c0_i32_0 = arith.constant 0 : i32
    %c0_i32_1 = arith.constant 0 : i32
    return %arg1, %c0_i32, %c0_i32_0 : i32, i32, i32
  }
  func.func @transform_3(%arg0: i32, %arg1: i32, %arg2: memref<16xi32, #tpu.memory_space<smem>>) -> (i32, i32, i32) {
    %c0_i32 = arith.constant 0 : i32
    %c0_i32_0 = arith.constant 0 : i32
    %c0_i32_1 = arith.constant 0 : i32
    return %arg1, %c0_i32, %c0_i32_0 : i32, i32, i32
  }
  func.func @transform_4(%arg0: i32, %arg1: i32, %arg2: memref<16xi32, #tpu.memory_space<smem>>) -> (i32, i32, i32) {
    %c0_i32 = arith.constant 0 : i32
    %c0_i32_0 = arith.constant 0 : i32
    %c0_i32_1 = arith.constant 0 : i32
    return %arg1, %c0_i32, %c0_i32_0 : i32, i32, i32
  }
  func.func @transform_5(%arg0: i32, %arg1: i32, %arg2: memref<16xi32, #tpu.memory_space<smem>>) -> (i32, i32, i32) {
    %c0_i32 = arith.constant 0 : i32
    %c0_i32_0 = arith.constant 0 : i32
    %c0_i32_1 = arith.constant 0 : i32
    return %arg1, %c0_i32, %c0_i32_0 : i32, i32, i32
  }
  func.func @transform_6(%arg0: i32, %arg1: i32, %arg2: memref<16xi32, #tpu.memory_space<smem>>) -> (i32, i32, i32) {
    %c0_i32 = arith.constant 0 : i32
    %c0_i32_0 = arith.constant 0 : i32
    %c0_i32_1 = arith.constant 0 : i32
    return %arg1, %c0_i32, %c0_i32_0 : i32, i32, i32
  }
  func.func @transform_7(%arg0: i32, %arg1: i32, %arg2: memref<16xi32, #tpu.memory_space<smem>>) -> (i32, i32, i32) {
    %c0_i32 = arith.constant 0 : i32
    %c0_i32_0 = arith.constant 0 : i32
    %c0_i32_1 = arith.constant 0 : i32
    return %arg1, %c0_i32, %c0_i32_0 : i32, i32, i32
  }
  func.func @transform_8(%arg0: i32, %arg1: i32, %arg2: memref<16xi32, #tpu.memory_space<smem>>) -> (i32, i32, i32) {
    %c0_i32 = arith.constant 0 : i32
    %c0_i32_0 = arith.constant 0 : i32
    %c0_i32_1 = arith.constant 0 : i32
    return %arg1, %c0_i32, %c0_i32_0 : i32, i32, i32
  }
  func.func @transform_9(%arg0: i32, %arg1: i32, %arg2: memref<16xi32, #tpu.memory_space<smem>>) -> (i32, i32, i32) {
    %c0_i32 = arith.constant 0 : i32
    %c0_i32_0 = arith.constant 0 : i32
    %c0_i32_1 = arith.constant 0 : i32
    return %arg1, %c0_i32, %c0_i32_0 : i32, i32, i32
  }
  func.func @transform_10(%arg0: i32, %arg1: i32, %arg2: memref<16xi32, #tpu.memory_space<smem>>) -> (i32, i32, i32) {
    %c0_i32 = arith.constant 0 : i32
    %c0_i32_0 = arith.constant 0 : i32
    %c0_i32_1 = arith.constant 0 : i32
    return %arg1, %c0_i32, %c0_i32_0 : i32, i32, i32
  }
  func.func @transform_11(%arg0: i32, %arg1: i32, %arg2: memref<16xi32, #tpu.memory_space<smem>>) -> (i32, i32, i32) {
    %c0_i32 = arith.constant 0 : i32
    %c0_i32_0 = arith.constant 0 : i32
    %c0_i32_1 = arith.constant 0 : i32
    return %arg1, %c0_i32, %c0_i32_0 : i32, i32, i32
  }
  func.func @transform_12(%arg0: i32, %arg1: i32, %arg2: memref<16xi32, #tpu.memory_space<smem>>) -> (i32, i32, i32) {
    %c0_i32 = arith.constant 0 : i32
    %c0_i32_0 = arith.constant 0 : i32
    %c0_i32_1 = arith.constant 0 : i32
    return %arg1, %c0_i32, %c0_i32_0 : i32, i32, i32
  }
  func.func @transform_13(%arg0: i32, %arg1: i32, %arg2: memref<16xi32, #tpu.memory_space<smem>>) -> (i32, i32) {
    %c0_i32 = arith.constant 0 : i32
    %c0_i32_0 = arith.constant 0 : i32
    return %arg0, %c0_i32 : i32, i32
  }
}

</mosaic_0001>

<llo_original>
// kernel: tpu_custom_call.1
$region0: #{tpu_custom_call.1}
  #allocation0 [shape = 'u32[]', space=smem, size = 0x4, offset = 0x4, fixed_abs, tag = 'smem constant byte address 0x4 - core index']
  #allocation1 [shape = 'u32[72,128]{1,0:T(1,128)}', space=vmem, size = 0x9000, scoped, tag = 'internal scratch']
  #allocation2 [shape = 'f32[16,32]{1,0:T(8,128)}', space=vmem, size = 0x2000, scoped, tag = 'scratch operand']
  #allocation3 [shape = 's32[1]{0}', space=sflag, size = 0x4, scoped, tag = 'scratch operand']
  #allocation4 [shape = 's32[1]{0}', space=sflag, size = 0x4, scoped, tag = 'scoped memory for tpu_custom_call.1']
  #allocation5 [shape = 'u8[512]{0}', space=smem, size = 0x200, scoped, tag = 'prefetched SMEM operand 0']
  #allocation8 [shape = 's32[]', space=sflag, size = 0x4, offset = 0, fixed_abs, tag = 'sflag constant byte address 0x0 - dummy sync flag']
  #allocation9 [shape = 's32[]', space=sflag, size = 0x4, offset = 0, fixed_abs, tag = 'sflag constant byte address 0x0 - dummy sync flag']
  #allocation10 [shape = 's32[]', space=sflag, size = 0x4, offset = 0, fixed_abs, tag = 'sflag constant byte address 0x0 - dummy sync flag']
  #allocation11 [shape = 's32[]', space=sflag, size = 0x4, offset = 0, fixed_abs, tag = 'sflag constant byte address 0x0 - dummy sync flag']
  #allocation12 [shape = 's32[]', space=sflag, size = 0x4, offset = 0, fixed_abs, tag = 'sflag constant byte address 0x0 - dummy sync flag']
  #allocation13 [shape = 's32[]', space=sflag, size = 0x4, offset = 0, fixed_abs, tag = 'sflag constant byte address 0x0 - dummy sync flag']
  #allocation14 [shape = 's32[]', space=sflag, size = 0x4, offset = 0, fixed_abs, tag = 'sflag constant byte address 0x0 - dummy sync flag']
  #allocation15 [shape = 's32[]', space=sflag, size = 0x4, offset = 0, fixed_abs, tag = 'sflag constant byte address 0x0 - dummy sync flag']
  #allocation16 [shape = 's32[]', space=sflag, size = 0x4, offset = 0, fixed_abs, tag = 'sflag constant byte address 0x0 - dummy sync flag']
  #allocation17 [shape = 's32[]', space=sflag, size = 0x4, offset = 0, fixed_abs, tag = 'sflag constant byte address 0x0 - dummy sync flag']
  #allocation18 [shape = 's32[]', space=sflag, size = 0x4, offset = 0, fixed_abs, tag = 'sflag constant byte address 0x0 - dummy sync flag']
  #allocation19 [shape = 's32[]', space=sflag, size = 0x4, offset = 0, fixed_abs, tag = 'sflag constant byte address 0x0 - dummy sync flag']
  #allocation20 [shape = 's32[]', space=sflag, size = 0x4, offset = 0, fixed_abs, tag = 'sflag constant byte address 0x0 - dummy sync flag']
  #allocation21 [shape = 's32[]', space=sflag, size = 0x4, offset = 0, fixed_abs, tag = 'sflag constant byte address 0x0 - dummy sync flag']
  #allocation22 [shape = 's32[]', space=sflag, size = 0x4, offset = 0, fixed_abs, tag = 'sflag constant byte address 0x0 - dummy sync flag']
  #allocation23 [shape = 's32[]', space=sflag, size = 0x4, offset = 0, fixed_abs, tag = 'sflag constant byte address 0x0 - dummy sync flag']
  %s0 = inlined_call_operand.vmem [shape: s32[16], index: 0, kind: input, shape index: {}]
  %s1 = inlined_call_operand.vmem [shape: f32[50,32], index: 1, kind: input, shape index: {}]
  %s2 = inlined_call_operand.vmem [shape: f32[2,32,96], index: 2, kind: input, shape index: {}]
  %s3 = inlined_call_operand.vmem [shape: f32[2,1,96], index: 3, kind: input, shape index: {}]
  %s4 = inlined_call_operand.vmem [shape: f32[2,32,32], index: 4, kind: input, shape index: {}]
  %s5 = inlined_call_operand.vmem [shape: f32[2,1,32], index: 5, kind: input, shape index: {}]
  %s6 = inlined_call_operand.vmem [shape: f32[2,1,32], index: 6, kind: input, shape index: {}]
  %s7 = inlined_call_operand.vmem [shape: f32[2,1,32], index: 7, kind: input, shape index: {}]
  %s8 = inlined_call_operand.vmem [shape: f32[2,32,64], index: 8, kind: input, shape index: {}]
  %s9 = inlined_call_operand.vmem [shape: f32[2,1,64], index: 9, kind: input, shape index: {}]
  %s10 = inlined_call_operand.vmem [shape: f32[2,64,32], index: 10, kind: input, shape index: {}]
  %s11 = inlined_call_operand.vmem [shape: f32[2,1,32], index: 11, kind: input, shape index: {}]
  %s12 = inlined_call_operand.vmem [shape: f32[2,1,32], index: 12, kind: input, shape index: {}]
  %s13 = inlined_call_operand.vmem [shape: f32[2,1,32], index: 13, kind: input, shape index: {}]
  %s14 = inlined_call_operand.hbm [shape: f32[16,32], index: 14, kind: output, shape index: {}]
  %s15 = sld [smem:[#allocation0]]
  $region569: #{tpu_custom_call.1} parent=0
    _
  %s17 = ssub.s32 1, %s15
  %s18 = scalar_select 0, %s17, %s15
  %s20 = sshll.u32 %s0, 4
  %s21 = int_to_ptr.vmem [resolvable:$true] %s20
  %23 = dma.vmem_to_smem %s21, 16, [#allocation5], [#allocation4]
  %25 = dma.done [#allocation4], 16
  %26 = sfence
  $region1: #{tpu_custom_call.1} parent=0
    #allocation6 [shape = 'u8[8192]{0}', space=vmem, size = 0x2000, scoped, tag = 'output window, operand 0, single buffered']
    #allocation7 [shape = 's32[2]{0}', space=sflag, size = 0x8, scoped, tag = 'scoped memory for tpu_custom_call.1']
    %27 = vsyncpa [#allocation7], 0
    loop: start=0, step=1, limit=4
    $region2: #{tpu_custom_call.1} parent=1 // loop_pre_header
      _
    $region3: #{tpu_custom_call.1} parent=1 // loop_header
      %s29 = sphi 0, %s33
      %p30 = scmp.ge.s32.totalorder %s29, 4
      %s36 = sphi 0, %s48
      %s37 = sphi 0, %s44
      %s38 = sphi 0, %s36
      %s39 = sphi 0, %s37
      %s40 = sphi 0, %s38
      %s41 = sphi 0, %s39
      %s51 = sphi 0, %s53
      %s54 = sphi 0, %s51
      %s55 = sphi 0, %s54
      %s71 = sphi 0, %s55
      %s77 = sphi 0, %s79
      %s80 = sphi 0, %s77
      %s81 = sphi 0, %s80
      %s97 = sphi 0, %s81
      %s103 = sphi 0, %s105
      %s106 = sphi 0, %s103
      %s107 = sphi 0, %s106
      %s123 = sphi 0, %s107
      %s129 = sphi 0, %s131
      %s132 = sphi 0, %s129
      %s133 = sphi 0, %s132
      %s149 = sphi 0, %s133
      %s155 = sphi 0, %s157
      %s158 = sphi 0, %s155
      %s159 = sphi 0, %s158
      %s175 = sphi 0, %s159
      %s181 = sphi 0, %s183
      %s184 = sphi 0, %s181
      %s185 = sphi 0, %s184
      %s201 = sphi 0, %s185
      %s207 = sphi 0, %s209
      %s210 = sphi 0, %s207
      %s211 = sphi 0, %s210
      %s227 = sphi 0, %s211
      %s233 = sphi 0, %s235
      %s236 = sphi 0, %s233
      %s237 = sphi 0, %s236
      %s253 = sphi 0, %s237
      %s259 = sphi 0, %s261
      %s262 = sphi 0, %s259
      %s263 = sphi 0, %s262
      %s279 = sphi 0, %s263
      %s285 = sphi 0, %s287
      %s288 = sphi 0, %s285
      %s289 = sphi 0, %s288
      %s305 = sphi 0, %s289
      %s311 = sphi 0, %s313
      %s314 = sphi 0, %s311
      %s315 = sphi 0, %s314
      %s331 = sphi 0, %s315
      %s337 = sphi 0, %s339
      %s340 = sphi 0, %s337
      %s341 = sphi 0, %s340
      %s357 = sphi 0, %s341
      %s363 = sphi 0, %s365
      %s366 = sphi 0, %s363
      %s367 = sphi 0, %s366
      %s383 = sphi 0, %s367
    $region4: #{tpu_custom_call.1} parent=1 // loop_header_branch
      %32 = sbr.rel (%p30) target = $region8
    $region5: #{tpu_custom_call.1} parent=1 // loop_body
      %s34 = ssub.s32 %s29, 1
      %s35 = ssub.s32 %s29, 2
      %s42 = sadd.s32 1, %s37
      %p43 = scmp.ge.s32.totalorder %s42, 2
      %s44 = scalar_select %p43, 0, %s42
      %s45 = sadd.s32 1, %s36
      %s46 = scalar_select %p43, %s45, %s36
      %p47 = scmp.ge.s32.totalorder %s46, 1
      %s48 = scalar_select %p47, 0, %s46
      %s49 = ssub.s32 %s37, %s44
      %p50 = scmp.eq.s32.totalorder %s49, 0
      %s52 = sadd.s32 %s51, 1
      %s53 = scalar_select %p50, %s51, %s52
      %p56 = pneg %p50
      %p57 = scmp.eq.s32.totalorder %s29, 1
      %p58 = por %p56, %p57
      %p59 = scmp.ne.s32.totalorder %s51, %s54
      %p60 = scmp.eq.s32.totalorder %s29, 0
      %p61 = por %p59, %p60
      %p62 = scmp.ne.s32.totalorder %s51, %s54
      %p63 = scmp.eq.s32.totalorder %s34, 1
      %p64 = por %p62, %p63
      %p65 = scmp.ne.s32.totalorder %s54, %s55
      %p66 = scmp.eq.s32.totalorder %s34, 0
      %p67 = por %p65, %p66
      %p68 = scmp.ne.s32.totalorder %s54, %s55
      %p69 = scmp.eq.s32.totalorder %s35, 1
      %p70 = por %p68, %p69
      %p72 = scmp.ne.s32.totalorder %s55, %s71
      %p73 = scmp.eq.s32.totalorder %s35, 0
      %p74 = por %p72, %p73
      %s75 = ssub.s32 %s37, %s44
      %p76 = scmp.eq.s32.totalorder %s75, 0
      %s78 = sadd.s32 %s77, 1
      %s79 = scalar_select %p76, %s77, %s78
      %p82 = pneg %p76
      %p83 = scmp.eq.s32.totalorder %s29, 1
      %p84 = por %p82, %p83
      %p85 = scmp.ne.s32.totalorder %s77, %s80
      %p86 = scmp.eq.s32.totalorder %s29, 0
      %p87 = por %p85, %p86
      %p88 = scmp.ne.s32.totalorder %s77, %s80
      %p89 = scmp.eq.s32.totalorder %s34, 1
      %p90 = por %p88, %p89
      %p91 = scmp.ne.s32.totalorder %s80, %s81
      %p92 = scmp.eq.s32.totalorder %s34, 0
      %p93 = por %p91, %p92
      %p94 = scmp.ne.s32.totalorder %s80, %s81
      %p95 = scmp.eq.s32.totalorder %s35, 1
      %p96 = por %p94, %p95
      %p98 = scmp.ne.s32.totalorder %s81, %s97
      %p99 = scmp.eq.s32.totalorder %s35, 0
      %p100 = por %p98, %p99
      %s101 = ssub.s32 %s37, %s44
      %p102 = scmp.eq.s32.totalorder %s101, 0
      %s104 = sadd.s32 %s103, 1
      %s105 = scalar_select %p102, %s103, %s104
      %p108 = pneg %p102
      %p109 = scmp.eq.s32.totalorder %s29, 1
      %p110 = por %p108, %p109
      %p111 = scmp.ne.s32.totalorder %s103, %s106
      %p112 = scmp.eq.s32.totalorder %s29, 0
      %p113 = por %p111, %p112
      %p114 = scmp.ne.s32.totalorder %s103, %s106
      %p115 = scmp.eq.s32.totalorder %s34, 1
      %p116 = por %p114, %p115
      %p117 = scmp.ne.s32.totalorder %s106, %s107
      %p118 = scmp.eq.s32.totalorder %s34, 0
      %p119 = por %p117, %p118
      %p120 = scmp.ne.s32.totalorder %s106, %s107
      %p121 = scmp.eq.s32.totalorder %s35, 1
      %p122 = por %p120, %p121
      %p124 = scmp.ne.s32.totalorder %s107, %s123
      %p125 = scmp.eq.s32.totalorder %s35, 0
      %p126 = por %p124, %p125
      %s127 = ssub.s32 %s37, %s44
      %p128 = scmp.eq.s32.totalorder %s127, 0
      %s130 = sadd.s32 %s129, 1
      %s131 = scalar_select %p128, %s129, %s130
      %p134 = pneg %p128
      %p135 = scmp.eq.s32.totalorder %s29, 1
      %p136 = por %p134, %p135
      %p137 = scmp.ne.s32.totalorder %s129, %s132
      %p138 = scmp.eq.s32.totalorder %s29, 0
      %p139 = por %p137, %p138
      %p140 = scmp.ne.s32.totalorder %s129, %s132
      %p141 = scmp.eq.s32.totalorder %s34, 1
      %p142 = por %p140, %p141
      %p143 = scmp.ne.s32.totalorder %s132, %s133
      %p144 = scmp.eq.s32.totalorder %s34, 0
      %p145 = por %p143, %p144
      %p146 = scmp.ne.s32.totalorder %s132, %s133
      %p147 = scmp.eq.s32.totalorder %s35, 1
      %p148 = por %p146, %p147
      %p150 = scmp.ne.s32.totalorder %s133, %s149
      %p151 = scmp.eq.s32.totalorder %s35, 0
      %p152 = por %p150, %p151
      %s153 = ssub.s32 %s37, %s44
      %p154 = scmp.eq.s32.totalorder %s153, 0
      %s156 = sadd.s32 %s155, 1
      %s157 = scalar_select %p154, %s155, %s156
      %p160 = pneg %p154
      %p161 = scmp.eq.s32.totalorder %s29, 1
      %p162 = por %p160, %p161
      %p163 = scmp.ne.s32.totalorder %s155, %s158
      %p164 = scmp.eq.s32.totalorder %s29, 0
      %p165 = por %p163, %p164
      %p166 = scmp.ne.s32.totalorder %s155, %s158
      %p167 = scmp.eq.s32.totalorder %s34, 1
      %p168 = por %p166, %p167
      %p169 = scmp.ne.s32.totalorder %s158, %s159
      %p170 = scmp.eq.s32.totalorder %s34, 0
      %p171 = por %p169, %p170
      %p172 = scmp.ne.s32.totalorder %s158, %s159
      %p173 = scmp.eq.s32.totalorder %s35, 1
      %p174 = por %p172, %p173
      %p176 = scmp.ne.s32.totalorder %s159, %s175
      %p177 = scmp.eq.s32.totalorder %s35, 0
      %p178 = por %p176, %p177
      %s179 = ssub.s32 %s37, %s44
      %p180 = scmp.eq.s32.totalorder %s179, 0
      %s182 = sadd.s32 %s181, 1
      %s183 = scalar_select %p180, %s181, %s182
      %p186 = pneg %p180
      %p187 = scmp.eq.s32.totalorder %s29, 1
      %p188 = por %p186, %p187
      %p189 = scmp.ne.s32.totalorder %s181, %s184
      %p190 = scmp.eq.s32.totalorder %s29, 0
      %p191 = por %p189, %p190
      %p192 = scmp.ne.s32.totalorder %s181, %s184
      %p193 = scmp.eq.s32.totalorder %s34, 1
      %p194 = por %p192, %p193
      %p195 = scmp.ne.s32.totalorder %s184, %s185
      %p196 = scmp.eq.s32.totalorder %s34, 0
      %p197 = por %p195, %p196
      %p198 = scmp.ne.s32.totalorder %s184, %s185
      %p199 = scmp.eq.s32.totalorder %s35, 1
      %p200 = por %p198, %p199
      %p202 = scmp.ne.s32.totalorder %s185, %s201
      %p203 = scmp.eq.s32.totalorder %s35, 0
      %p204 = por %p202, %p203
      %s205 = ssub.s32 %s37, %s44
      %p206 = scmp.eq.s32.totalorder %s205, 0
      %s208 = sadd.s32 %s207, 1
      %s209 = scalar_select %p206, %s207, %s208
      %p212 = pneg %p206
      %p213 = scmp.eq.s32.totalorder %s29, 1
      %p214 = por %p212, %p213
      %p215 = scmp.ne.s32.totalorder %s207, %s210
      %p216 = scmp.eq.s32.totalorder %s29, 0
      %p217 = por %p215, %p216
      %p218 = scmp.ne.s32.totalorder %s207, %s210
      %p219 = scmp.eq.s32.totalorder %s34, 1
      %p220 = por %p218, %p219
      %p221 = scmp.ne.s32.totalorder %s210, %s211
      %p222 = scmp.eq.s32.totalorder %s34, 0
      %p223 = por %p221, %p222
      %p224 = scmp.ne.s32.totalorder %s210, %s211
      %p225 = scmp.eq.s32.totalorder %s35, 1
      %p226 = por %p224, %p225
      %p228 = scmp.ne.s32.totalorder %s211, %s227
      %p229 = scmp.eq.s32.totalorder %s35, 0
      %p230 = por %p228, %p229
      %s231 = ssub.s32 %s37, %s44
      %p232 = scmp.eq.s32.totalorder %s231, 0
      %s234 = sadd.s32 %s233, 1
      %s235 = scalar_select %p232, %s233, %s234
      %p238 = pneg %p232
      %p239 = scmp.eq.s32.totalorder %s29, 1
      %p240 = por %p238, %p239
      %p241 = scmp.ne.s32.totalorder %s233, %s236
      %p242 = scmp.eq.s32.totalorder %s29, 0
      %p243 = por %p241, %p242
      %p244 = scmp.ne.s32.totalorder %s233, %s236
      %p245 = scmp.eq.s32.totalorder %s34, 1
      %p246 = por %p244, %p245
      %p247 = scmp.ne.s32.totalorder %s236, %s237
      %p248 = scmp.eq.s32.totalorder %s34, 0
      %p249 = por %p247, %p248
      %p250 = scmp.ne.s32.totalorder %s236, %s237
      %p251 = scmp.eq.s32.totalorder %s35, 1
      %p252 = por %p250, %p251
      %p254 = scmp.ne.s32.totalorder %s237, %s253
      %p255 = scmp.eq.s32.totalorder %s35, 0
      %p256 = por %p254, %p255
      %s257 = ssub.s32 %s37, %s44
      %p258 = scmp.eq.s32.totalorder %s257, 0
      %s260 = sadd.s32 %s259, 1
      %s261 = scalar_select %p258, %s259, %s260
      %p264 = pneg %p258
      %p265 = scmp.eq.s32.totalorder %s29, 1
      %p266 = por %p264, %p265
      %p267 = scmp.ne.s32.totalorder %s259, %s262
      %p268 = scmp.eq.s32.totalorder %s29, 0
      %p269 = por %p267, %p268
      %p270 = scmp.ne.s32.totalorder %s259, %s262
      %p271 = scmp.eq.s32.totalorder %s34, 1
      %p272 = por %p270, %p271
      %p273 = scmp.ne.s32.totalorder %s262, %s263
      %p274 = scmp.eq.s32.totalorder %s34, 0
      %p275 = por %p273, %p274
      %p276 = scmp.ne.s32.totalorder %s262, %s263
      %p277 = scmp.eq.s32.totalorder %s35, 1
      %p278 = por %p276, %p277
      %p280 = scmp.ne.s32.totalorder %s263, %s279
      %p281 = scmp.eq.s32.totalorder %s35, 0
      %p282 = por %p280, %p281
      %s283 = ssub.s32 %s37, %s44
      %p284 = scmp.eq.s32.totalorder %s283, 0
      %s286 = sadd.s32 %s285, 1
      %s287 = scalar_select %p284, %s285, %s286
      %p290 = pneg %p284
      %p291 = scmp.eq.s32.totalorder %s29, 1
      %p292 = por %p290, %p291
      %p293 = scmp.ne.s32.totalorder %s285, %s288
      %p294 = scmp.eq.s32.totalorder %s29, 0
      %p295 = por %p293, %p294
      %p296 = scmp.ne.s32.totalorder %s285, %s288
      %p297 = scmp.eq.s32.totalorder %s34, 1
      %p298 = por %p296, %p297
      %p299 = scmp.ne.s32.totalorder %s288, %s289
      %p300 = scmp.eq.s32.totalorder %s34, 0
      %p301 = por %p299, %p300
      %p302 = scmp.ne.s32.totalorder %s288, %s289
      %p303 = scmp.eq.s32.totalorder %s35, 1
      %p304 = por %p302, %p303
      %p306 = scmp.ne.s32.totalorder %s289, %s305
      %p307 = scmp.eq.s32.totalorder %s35, 0
      %p308 = por %p306, %p307
      %s309 = ssub.s32 %s37, %s44
      %p310 = scmp.eq.s32.totalorder %s309, 0
      %s312 = sadd.s32 %s311, 1
      %s313 = scalar_select %p310, %s311, %s312
      %p316 = pneg %p310
      %p317 = scmp.eq.s32.totalorder %s29, 1
      %p318 = por %p316, %p317
      %p319 = scmp.ne.s32.totalorder %s311, %s314
      %p320 = scmp.eq.s32.totalorder %s29, 0
      %p321 = por %p319, %p320
      %p322 = scmp.ne.s32.totalorder %s311, %s314
      %p323 = scmp.eq.s32.totalorder %s34, 1
      %p324 = por %p322, %p323
      %p325 = scmp.ne.s32.totalorder %s314, %s315
      %p326 = scmp.eq.s32.totalorder %s34, 0
      %p327 = por %p325, %p326
      %p328 = scmp.ne.s32.totalorder %s314, %s315
      %p329 = scmp.eq.s32.totalorder %s35, 1
      %p330 = por %p328, %p329
      %p332 = scmp.ne.s32.totalorder %s315, %s331
      %p333 = scmp.eq.s32.totalorder %s35, 0
      %p334 = por %p332, %p333
      %s335 = ssub.s32 %s37, %s44
      %p336 = scmp.eq.s32.totalorder %s335, 0
      %s338 = sadd.s32 %s337, 1
      %s339 = scalar_select %p336, %s337, %s338
      %p342 = pneg %p336
      %p343 = scmp.eq.s32.totalorder %s29, 1
      %p344 = por %p342, %p343
      %p345 = scmp.ne.s32.totalorder %s337, %s340
      %p346 = scmp.eq.s32.totalorder %s29, 0
      %p347 = por %p345, %p346
      %p348 = scmp.ne.s32.totalorder %s337, %s340
      %p349 = scmp.eq.s32.totalorder %s34, 1
      %p350 = por %p348, %p349
      %p351 = scmp.ne.s32.totalorder %s340, %s341
      %p352 = scmp.eq.s32.totalorder %s34, 0
      %p353 = por %p351, %p352
      %p354 = scmp.ne.s32.totalorder %s340, %s341
      %p355 = scmp.eq.s32.totalorder %s35, 1
      %p356 = por %p354, %p355
      %p358 = scmp.ne.s32.totalorder %s341, %s357
      %p359 = scmp.eq.s32.totalorder %s35, 0
      %p360 = por %p358, %p359
      %s361 = ssub.s32 %s36, %s48
      %p362 = scmp.eq.s32.totalorder %s361, 0
      %s364 = sadd.s32 %s363, 1
      %s365 = scalar_select %p362, %s363, %s364
      %p368 = pneg %p362
      %p369 = scmp.eq.s32.totalorder %s29, 1
      %p370 = por %p368, %p369
      %p371 = scmp.ne.s32.totalorder %s363, %s366
      %p372 = scmp.eq.s32.totalorder %s29, 0
      %p373 = por %p371, %p372
      %p374 = scmp.ne.s32.totalorder %s363, %s366
      %p375 = scmp.eq.s32.totalorder %s34, 1
      %p376 = por %p374, %p375
      %p377 = scmp.ne.s32.totalorder %s366, %s367
      %p378 = scmp.eq.s32.totalorder %s34, 0
      %p379 = por %p377, %p378
      %p380 = scmp.ne.s32.totalorder %s366, %s367
      %p381 = scmp.eq.s32.totalorder %s35, 1
      %p382 = por %p380, %p381
      %p384 = scmp.ne.s32.totalorder %s367, %s383
      %p385 = scmp.eq.s32.totalorder %s35, 0
      %p386 = por %p384, %p385
      %p387 = scmp.le.s32.totalorder 1, %s29
      %p388 = scmp.lt.s32.totalorder %s29, 3
      %p389 = pnand %p387, %p388
      %p390 = pneg %p389
      // Predicated region
      $region9: #{tpu_custom_call.1} parent=5 // pred_check
        _
      $region10: #{tpu_custom_call.1} parent=5 // pred_check_branch
        %392 = sbr.rel (%p389) target = $region12
      $region11: #{tpu_custom_call.1} parent=5 // pred_region
        %s393 = ssub.s32 %s29, 1
      $region12: #{tpu_custom_call.1} parent=5 // pred_fallthru
        _
      %p394 = scmp.lt.s32.totalorder %s29, 2
      // Predicated region
      $region13: #{tpu_custom_call.1} parent=5 // pred_check
        %p395 = pneg %p394
      $region14: #{tpu_custom_call.1} parent=5 // pred_check_branch
        %397 = sbr.rel (%p395) target = $region16
      $region15: #{tpu_custom_call.1} parent=5 // pred_region
        // Predicated region
        $region17: #{tpu_custom_call.1} parent=15 // pred_check
          %p398 = pneg %p61
        $region18: #{tpu_custom_call.1} parent=15 // pred_check_branch
          %400 = sbr.rel (%p398) target = $region20
        $region19: #{tpu_custom_call.1} parent=15 // pred_region
          %p401 = scmp.lt.s32.totalorder %s37, 1
          %s402 = scalar_select %p401, %s37, 1
          %s403 = smul.addr %s402, 4
          %s404 = smul.addr %s403, 8
          %s405 = scalar_lea.vmem %s2, %s404
        $region20: #{tpu_custom_call.1} parent=15 // pred_fallthru
          _
        // Predicated region
        $region21: #{tpu_custom_call.1} parent=15 // pred_check
          %p406 = pneg %p87
        $region22: #{tpu_custom_call.1} parent=15 // pred_check_branch
          %408 = sbr.rel (%p406) target = $region24
        $region23: #{tpu_custom_call.1} parent=15 // pred_region
          %p409 = scmp.lt.s32.totalorder %s37, 1
          %s410 = scalar_select %p409, %s37, 1
          %s411 = scalar_lea.vmem %s3, %s410
        $region24: #{tpu_custom_call.1} parent=15 // pred_fallthru
          _
        // Predicated region
        $region25: #{tpu_custom_call.1} parent=15 // pred_check
          %p412 = pneg %p113
        $region26: #{tpu_custom_call.1} parent=15 // pred_check_branch
          %414 = sbr.rel (%p412) target = $region28
        $region27: #{tpu_custom_call.1} parent=15 // pred_region
          %p415 = scmp.lt.s32.totalorder %s37, 1
          %s416 = scalar_select %p415, %s37, 1
          %s417 = smul.addr %s416, 4
          %s418 = smul.addr %s417, 8
          %s419 = scalar_lea.vmem %s4, %s418
        $region28: #{tpu_custom_call.1} parent=15 // pred_fallthru
          _
        // Predicated region
        $region29: #{tpu_custom_call.1} parent=15 // pred_check
          %p420 = pneg %p139
        $region30: #{tpu_custom_call.1} parent=15 // pred_check_branch
          %422 = sbr.rel (%p420) target = $region32
        $region31: #{tpu_custom_call.1} parent=15 // pred_region
          %p423 = scmp.lt.s32.totalorder %s37, 1
          %s424 = scalar_select %p423, %s37, 1
          %s425 = scalar_lea.vmem %s5, %s424
        $region32: #{tpu_custom_call.1} parent=15 // pred_fallthru
          _
        // Predicated region
        $region33: #{tpu_custom_call.1} parent=15 // pred_check
          %p426 = pneg %p165
        $region34: #{tpu_custom_call.1} parent=15 // pred_check_branch
          %428 = sbr.rel (%p426) target = $region36
        $region35: #{tpu_custom_call.1} parent=15 // pred_region
          %p429 = scmp.lt.s32.totalorder %s37, 1
          %s430 = scalar_select %p429, %s37, 1
          %s431 = scalar_lea.vmem %s6, %s430
        $region36: #{tpu_custom_call.1} parent=15 // pred_fallthru
          _
        // Predicated region
        $region37: #{tpu_custom_call.1} parent=15 // pred_check
          %p432 = pneg %p191
        $region38: #{tpu_custom_call.1} parent=15 // pred_check_branch
          %434 = sbr.rel (%p432) target = $region40
        $region39: #{tpu_custom_call.1} parent=15 // pred_region
          %p435 = scmp.lt.s32.totalorder %s37, 1
          %s436 = scalar_select %p435, %s37, 1
          %s437 = scalar_lea.vmem %s7, %s436
        $region40: #{tpu_custom_call.1} parent=15 // pred_fallthru
          _
        // Predicated region
        $region41: #{tpu_custom_call.1} parent=15 // pred_check
          %p438 = pneg %p217
        $region42: #{tpu_custom_call.1} parent=15 // pred_check_branch
          %440 = sbr.rel (%p438) target = $region44
        $region43: #{tpu_custom_call.1} parent=15 // pred_region
          %p441 = scmp.lt.s32.totalorder %s37, 1
          %s442 = scalar_select %p441, %s37, 1
          %s443 = smul.addr %s442, 4
          %s444 = smul.addr %s443, 8
          %s445 = scalar_lea.vmem %s8, %s444
        $region44: #{tpu_custom_call.1} parent=15 // pred_fallthru
          _
        // Predicated region
        $region45: #{tpu_custom_call.1} parent=15 // pred_check
          %p446 = pneg %p243
        $region46: #{tpu_custom_call.1} parent=15 // pred_check_branch
          %448 = sbr.rel (%p446) target = $region48
        $region47: #{tpu_custom_call.1} parent=15 // pred_region
          %p449 = scmp.lt.s32.totalorder %s37, 1
          %s450 = scalar_select %p449, %s37, 1
          %s451 = scalar_lea.vmem %s9, %s450
        $region48: #{tpu_custom_call.1} parent=15 // pred_fallthru
          _
        // Predicated region
        $region49: #{tpu_custom_call.1} parent=15 // pred_check
          %p452 = pneg %p269
        $region50: #{tpu_custom_call.1} parent=15 // pred_check_branch
          %454 = sbr.rel (%p452) target = $region52
        $region51: #{tpu_custom_call.1} parent=15 // pred_region
          %p455 = scmp.lt.s32.totalorder %s37, 1
          %s456 = scalar_select %p455, %s37, 1
          %s457 = smul.addr %s456, 8
          %s458 = smul.addr %s457, 8
          %s459 = scalar_lea.vmem %s10, %s458
        $region52: #{tpu_custom_call.1} parent=15 // pred_fallthru
          _
        // Predicated region
        $region53: #{tpu_custom_call.1} parent=15 // pred_check
          %p460 = pneg %p295
        $region54: #{tpu_custom_call.1} parent=15 // pred_check_branch
          %462 = sbr.rel (%p460) target = $region56
        $region55: #{tpu_custom_call.1} parent=15 // pred_region
          %p463 = scmp.lt.s32.totalorder %s37, 1
          %s464 = scalar_select %p463, %s37, 1
          %s465 = scalar_lea.vmem %s11, %s464
        $region56: #{tpu_custom_call.1} parent=15 // pred_fallthru
          _
        // Predicated region
        $region57: #{tpu_custom_call.1} parent=15 // pred_check
          %p466 = pneg %p321
        $region58: #{tpu_custom_call.1} parent=15 // pred_check_branch
          %468 = sbr.rel (%p466) target = $region60
        $region59: #{tpu_custom_call.1} parent=15 // pred_region
          %p469 = scmp.lt.s32.totalorder %s37, 1
          %s470 = scalar_select %p469, %s37, 1
          %s471 = scalar_lea.vmem %s12, %s470
        $region60: #{tpu_custom_call.1} parent=15 // pred_fallthru
          _
        // Predicated region
        $region61: #{tpu_custom_call.1} parent=15 // pred_check
          %p472 = pneg %p347
        $region62: #{tpu_custom_call.1} parent=15 // pred_check_branch
          %474 = sbr.rel (%p472) target = $region64
        $region63: #{tpu_custom_call.1} parent=15 // pred_region
          %p475 = scmp.lt.s32.totalorder %s37, 1
          %s476 = scalar_select %p475, %s37, 1
          %s477 = scalar_lea.vmem %s13, %s476
        $region64: #{tpu_custom_call.1} parent=15 // pred_fallthru
          _
      $region16: #{tpu_custom_call.1} parent=5 // pred_fallthru
        _
      %p478 = scmp.le.s32.totalorder 1, %s29
      %p479 = scmp.lt.s32.totalorder %s29, 3
      %p480 = pnand %p478, %p479
      %p481 = pneg %p480
      // Predicated region
      $region65: #{tpu_custom_call.1} parent=5 // pred_check
        _
      $region66: #{tpu_custom_call.1} parent=5 // pred_check_branch
        %483 = sbr.rel (%p480) target = $region68
      $region67: #{tpu_custom_call.1} parent=5 // pred_region
        %s484 = ssub.s32 %s29, 1
        %p485 = scmp.lt.s32.totalorder %s39, 1
        %s486 = scalar_select %p485, %s39, 1
        %s487 = smul.addr %s486, 4
        %s488 = smul.addr %s487, 8
        %s489 = scalar_lea.vmem %s2, %s488
        %p490 = pneg %p67
        %p491 = pneg %p64
        %p492 = scmp.lt.s32.totalorder %s39, 1
        %s493 = scalar_select %p492, %s39, 1
        %s494 = scalar_lea.vmem %s3, %s493
        %p495 = pneg %p93
        %p496 = pneg %p90
        %p497 = scmp.lt.s32.totalorder %s39, 1
        %s498 = scalar_select %p497, %s39, 1
        %s499 = smul.addr %s498, 4
        %s500 = smul.addr %s499, 8
        %s501 = scalar_lea.vmem %s4, %s500
        %p502 = pneg %p119
        %p503 = pneg %p116
        %p504 = scmp.lt.s32.totalorder %s39, 1
        %s505 = scalar_select %p504, %s39, 1
        %s506 = scalar_lea.vmem %s5, %s505
        %p507 = pneg %p145
        %p508 = pneg %p142
        %p509 = scmp.lt.s32.totalorder %s39, 1
        %s510 = scalar_select %p509, %s39, 1
        %s511 = scalar_lea.vmem %s6, %s510
        %p512 = pneg %p171
        %p513 = pneg %p168
        %p514 = scmp.lt.s32.totalorder %s39, 1
        %s515 = scalar_select %p514, %s39, 1
        %s516 = scalar_lea.vmem %s7, %s515
        %p517 = pneg %p197
        %p518 = pneg %p194
        %p519 = scmp.lt.s32.totalorder %s39, 1
        %s520 = scalar_select %p519, %s39, 1
        %s521 = smul.addr %s520, 4
        %s522 = smul.addr %s521, 8
        %s523 = scalar_lea.vmem %s8, %s522
        %p524 = pneg %p223
        %p525 = pneg %p220
        %p526 = scmp.lt.s32.totalorder %s39, 1
        %s527 = scalar_select %p526, %s39, 1
        %s528 = scalar_lea.vmem %s9, %s527
        %p529 = pneg %p249
        %p530 = pneg %p246
        %p531 = scmp.lt.s32.totalorder %s39, 1
        %s532 = scalar_select %p531, %s39, 1
        %s533 = smul.addr %s532, 8
        %s534 = smul.addr %s533, 8
        %s535 = scalar_lea.vmem %s10, %s534
        %p536 = pneg %p275
        %p537 = pneg %p272
        %p538 = scmp.lt.s32.totalorder %s39, 1
        %s539 = scalar_select %p538, %s39, 1
        %s540 = scalar_lea.vmem %s11, %s539
        %p541 = pneg %p301
        %p542 = pneg %p298
        %p543 = scmp.lt.s32.totalorder %s39, 1
        %s544 = scalar_select %p543, %s39, 1
        %s545 = scalar_lea.vmem %s12, %s544
        %p546 = pneg %p327
        %p547 = pneg %p324
        %p548 = scmp.lt.s32.totalorder %s39, 1
        %s549 = scalar_select %p548, %s39, 1
        %s550 = scalar_lea.vmem %s13, %s549
        %p551 = pneg %p353
        %p552 = pneg %p350
        %p553 = pneg %p379
        %p554 = pneg %p376
        %p555 = scmp.lt.s32.totalorder %s39, 1
        %s556 = scalar_select %p555, %s39, 1
        %s557 = smul.addr %s556, 4
        %s558 = smul.addr %s557, 8
        %s559 = scalar_lea.vmem %s2, %s558
        %p560 = scmp.lt.s32.totalorder %s39, 1
        %s561 = scalar_select %p560, %s39, 1
        %s562 = scalar_lea.vmem %s3, %s561
        %p563 = scmp.lt.s32.totalorder %s39, 1
        %s564 = scalar_select %p563, %s39, 1
        %s565 = smul.addr %s564, 4
        %s566 = smul.addr %s565, 8
        %s567 = scalar_lea.vmem %s4, %s566
        %p568 = scmp.lt.s32.totalorder %s39, 1
        %s569 = scalar_select %p568, %s39, 1
        %s570 = scalar_lea.vmem %s5, %s569
        %p571 = scmp.lt.s32.totalorder %s39, 1
        %s572 = scalar_select %p571, %s39, 1
        %s573 = scalar_lea.vmem %s6, %s572
        %p574 = scmp.lt.s32.totalorder %s39, 1
        %s575 = scalar_select %p574, %s39, 1
        %s576 = scalar_lea.vmem %s7, %s575
        %p577 = scmp.lt.s32.totalorder %s39, 1
        %s578 = scalar_select %p577, %s39, 1
        %s579 = smul.addr %s578, 4
        %s580 = smul.addr %s579, 8
        %s581 = scalar_lea.vmem %s8, %s580
        %p582 = scmp.lt.s32.totalorder %s39, 1
        %s583 = scalar_select %p582, %s39, 1
        %s584 = scalar_lea.vmem %s9, %s583
        %p585 = scmp.lt.s32.totalorder %s39, 1
        %s586 = scalar_select %p585, %s39, 1
        %s587 = smul.addr %s586, 8
        %s588 = smul.addr %s587, 8
        %s589 = scalar_lea.vmem %s10, %s588
        %p590 = scmp.lt.s32.totalorder %s39, 1
        %s591 = scalar_select %p590, %s39, 1
        %s592 = scalar_lea.vmem %s11, %s591
        %p593 = scmp.lt.s32.totalorder %s39, 1
        %s594 = scalar_select %p593, %s39, 1
        %s595 = scalar_lea.vmem %s12, %s594
        %p596 = scmp.lt.s32.totalorder %s39, 1
        %s597 = scalar_select %p596, %s39, 1
        %s598 = scalar_lea.vmem %s13, %s597
        %s599 = smul.u32 2, %s38
        %p600 = scmp.eq.s32.totalorder %s39, 0
        // Predicated region
        $region69: #{tpu_custom_call.1} parent=67 // pred_check
          %p601 = pneg %p600
        $region70: #{tpu_custom_call.1} parent=67 // pred_check_branch
          %603 = sbr.rel (%p601) target = $region72
        $region71: #{tpu_custom_call.1} parent=67 // pred_region
          %s604 = smul.u32 %s38, 16
          %s605 = sld [smem:[#allocation5 + %s604]]
          %s606 = scalar_lea.vmem %s1, %s605
          // Predicated region
          $region73: #{tpu_custom_call.1} parent=71 // pred_check
            _
          $region74: #{tpu_custom_call.1} parent=71 // pred_check_branch
            %608 = sbr.rel target = $region76
          $region75: #{tpu_custom_call.1} parent=71 // pred_region
            // Predicated region
            $region88: #{tpu_custom_call.1} parent=75 // pred_check
              _
            $region89: #{tpu_custom_call.1} parent=75 // pred_check_branch
              %624 = sbr.rel (0) target = $region91
            $region90: #{tpu_custom_call.1} parent=75 // pred_region
              %s626 = ssub.s32 2, 1
              loop: start=0, step=1, limit=1
              $region92: #{tpu_custom_call.1} parent=90 // loop_pre_header
                _
              $region93: #{tpu_custom_call.1} parent=90 // loop_header
                %s628 = sphi 0, %s632
                %p629 = scmp.ge.s32.totalorder %s628, 1
                %s633 = sphi %s606, %s606
                %s634 = sphi [#allocation2], [#allocation2]
              $region94: #{tpu_custom_call.1} parent=90 // loop_header_branch
                %631 = sbr.rel (%p629) target = $region98
              $region95: #{tpu_custom_call.1} parent=90 // loop_body
                %v635 = vld [vmem:[%s633] sm:%s626]
                %636 = vst [vmem:[%s634] sm:%s626] %v635
              $region96: #{tpu_custom_call.1} parent=90 // loop_footer
                %s632 = sadd.s32 1, %s628
              $region97: #{tpu_custom_call.1} parent=90 // loop_footer_branch
                %627 = sbr.rel target = $region93
              $region98: #{tpu_custom_call.1} parent=90 // loop_exit
                _
            $region91: #{tpu_custom_call.1} parent=75 // pred_fallthru
              _
          $region76: #{tpu_custom_call.1} parent=71 // pred_fallthru
            _
          // Predicated region
          $region77: #{tpu_custom_call.1} parent=71 // pred_check
            _
          $region78: #{tpu_custom_call.1} parent=71 // pred_check_branch
            %610 = sbr.rel (0) target = $region80
          $region79: #{tpu_custom_call.1} parent=71 // pred_region
            %s612 = ssub.s32 2, 1
            loop: start=0, step=1, limit=1
            $region81: #{tpu_custom_call.1} parent=79 // loop_pre_header
              _
            $region82: #{tpu_custom_call.1} parent=79 // loop_header
              %s614 = sphi 0, %s618
              %p615 = scmp.ge.s32.totalorder %s614, 1
              %s619 = sphi %s606, %s606
              %s620 = sphi [#allocation2], [#allocation2]
            $region83: #{tpu_custom_call.1} parent=79 // loop_header_branch
              %617 = sbr.rel (%p615) target = $region87
            $region84: #{tpu_custom_call.1} parent=79 // loop_body
              %v621 = vld [vmem:[%s619] sm:%s612]
              %622 = vst [vmem:[%s620] sm:%s612] %v621
            $region85: #{tpu_custom_call.1} parent=79 // loop_footer
              %s618 = sadd.s32 1, %s614
            $region86: #{tpu_custom_call.1} parent=79 // loop_footer_branch
              %613 = sbr.rel target = $region82
            $region87: #{tpu_custom_call.1} parent=79 // loop_exit
              _
          $region80: #{tpu_custom_call.1} parent=71 // pred_fallthru
            _
          // Predicated region
          $region99: #{tpu_custom_call.1} parent=71 // pred_check
            _
          $region100: #{tpu_custom_call.1} parent=71 // pred_check_branch
            %639 = sbr.rel (0) target = $region102
          $region101: #{tpu_custom_call.1} parent=71 // pred_region
            %640 = vsyncadd [#allocation3], 16
          $region102: #{tpu_custom_call.1} parent=71 // pred_fallthru
            _
          %s641 = sadd.s32 %s604, 1
          %s642 = sld [smem:[#allocation5 + %s641]]
          %s643 = scalar_lea.vmem %s1, %s642
          %s644 = scalar_lea.vmem [#allocation2], 1
          // Predicated region
          $region103: #{tpu_custom_call.1} parent=71 // pred_check
            _
          $region104: #{tpu_custom_call.1} parent=71 // pred_check_branch
            %646 = sbr.rel target = $region106
          $region105: #{tpu_custom_call.1} parent=71 // pred_region
            // Predicated region
            $region118: #{tpu_custom_call.1} parent=105 // pred_check
              _
            $region119: #{tpu_custom_call.1} parent=105 // pred_check_branch
              %662 = sbr.rel (0) target = $region121
            $region120: #{tpu_custom_call.1} parent=105 // pred_region
              %s664 = ssub.s32 2, 1
              loop: start=0, step=1, limit=1
              $region122: #{tpu_custom_call.1} parent=120 // loop_pre_header
                _
              $region123: #{tpu_custom_call.1} parent=120 // loop_header
                %s666 = sphi 0, %s670
                %p667 = scmp.ge.s32.totalorder %s666, 1
                %s671 = sphi %s643, %s643
                %s672 = sphi %s644, %s644
              $region124: #{tpu_custom_call.1} parent=120 // loop_header_branch
                %669 = sbr.rel (%p667) target = $region128
              $region125: #{tpu_custom_call.1} parent=120 // loop_body
                %v673 = vld [vmem:[%s671] sm:%s664]
                %674 = vst [vmem:[%s672] sm:%s664] %v673
              $region126: #{tpu_custom_call.1} parent=120 // loop_footer
                %s670 = sadd.s32 1, %s666
              $region127: #{tpu_custom_call.1} parent=120 // loop_footer_branch
                %665 = sbr.rel target = $region123
              $region128: #{tpu_custom_call.1} parent=120 // loop_exit
                _
            $region121: #{tpu_custom_call.1} parent=105 // pred_fallthru
              _
          $region106: #{tpu_custom_call.1} parent=71 // pred_fallthru
            _
          // Predicated region
          $region107: #{tpu_custom_call.1} parent=71 // pred_check
            _
          $region108: #{tpu_custom_call.1} parent=71 // pred_check_branch
            %648 = sbr.rel (0) target = $region110
          $region109: #{tpu_custom_call.1} parent=71 // pred_region
            %s650 = ssub.s32 2, 1
            loop: start=0, step=1, limit=1
            $region111: #{tpu_custom_call.1} parent=109 // loop_pre_header
              _
            $region112: #{tpu_custom_call.1} parent=109 // loop_header
              %s652 = sphi 0, %s656
              %p653 = scmp.ge.s32.totalorder %s652, 1
              %s657 = sphi %s643, %s643
              %s658 = sphi %s644, %s644
            $region113: #{tpu_custom_call.1} parent=109 // loop_header_branch
              %655 = sbr.rel (%p653) target = $region117
            $region114: #{tpu_custom_call.1} parent=109 // loop_body
              %v659 = vld [vmem:[%s657] sm:%s650]
              %660 = vst [vmem:[%s658] sm:%s650] %v659
            $region115: #{tpu_custom_call.1} parent=109 // loop_footer
              %s656 = sadd.s32 1, %s652
            $region116: #{tpu_custom_call.1} parent=109 // loop_footer_branch
              %651 = sbr.rel target = $region112
            $region117: #{tpu_custom_call.1} parent=109 // loop_exit
              _
          $region110: #{tpu_custom_call.1} parent=71 // pred_fallthru
            _
          // Predicated region
          $region129: #{tpu_custom_call.1} parent=71 // pred_check
            _
          $region130: #{tpu_custom_call.1} parent=71 // pred_check_branch
            %677 = sbr.rel (0) target = $region132
          $region131: #{tpu_custom_call.1} parent=71 // pred_region
            %678 = vsyncadd [#allocation3], 16
          $region132: #{tpu_custom_call.1} parent=71 // pred_fallthru
            _
          %s679 = sadd.s32 %s604, 2
          %s680 = sld [smem:[#allocation5 + %s679]]
          %s681 = scalar_lea.vmem %s1, %s680
          %s682 = scalar_lea.vmem [#allocation2], 2
          // Predicated region
          $region133: #{tpu_custom_call.1} parent=71 // pred_check
            _
          $region134: #{tpu_custom_call.1} parent=71 // pred_check_branch
            %684 = sbr.rel target = $region136
          $region135: #{tpu_custom_call.1} parent=71 // pred_region
            // Predicated region
            $region148: #{tpu_custom_call.1} parent=135 // pred_check
              _
            $region149: #{tpu_custom_call.1} parent=135 // pred_check_branch
              %700 = sbr.rel (0) target = $region151
            $region150: #{tpu_custom_call.1} parent=135 // pred_region
              %s702 = ssub.s32 2, 1
              loop: start=0, step=1, limit=1
              $region152: #{tpu_custom_call.1} parent=150 // loop_pre_header
                _
              $region153: #{tpu_custom_call.1} parent=150 // loop_header
                %s704 = sphi 0, %s708
                %p705 = scmp.ge.s32.totalorder %s704, 1
                %s709 = sphi %s681, %s681
                %s710 = sphi %s682, %s682
              $region154: #{tpu_custom_call.1} parent=150 // loop_header_branch
                %707 = sbr.rel (%p705) target = $region158
              $region155: #{tpu_custom_call.1} parent=150 // loop_body
                %v711 = vld [vmem:[%s709] sm:%s702]
                %712 = vst [vmem:[%s710] sm:%s702] %v711
              $region156: #{tpu_custom_call.1} parent=150 // loop_footer
                %s708 = sadd.s32 1, %s704
              $region157: #{tpu_custom_call.1} parent=150 // loop_footer_branch
                %703 = sbr.rel target = $region153
              $region158: #{tpu_custom_call.1} parent=150 // loop_exit
                _
            $region151: #{tpu_custom_call.1} parent=135 // pred_fallthru
              _
          $region136: #{tpu_custom_call.1} parent=71 // pred_fallthru
            _
          // Predicated region
          $region137: #{tpu_custom_call.1} parent=71 // pred_check
            _
          $region138: #{tpu_custom_call.1} parent=71 // pred_check_branch
            %686 = sbr.rel (0) target = $region140
          $region139: #{tpu_custom_call.1} parent=71 // pred_region
            %s688 = ssub.s32 2, 1
            loop: start=0, step=1, limit=1
            $region141: #{tpu_custom_call.1} parent=139 // loop_pre_header
              _
            $region142: #{tpu_custom_call.1} parent=139 // loop_header
              %s690 = sphi 0, %s694
              %p691 = scmp.ge.s32.totalorder %s690, 1
              %s695 = sphi %s681, %s681
              %s696 = sphi %s682, %s682
            $region143: #{tpu_custom_call.1} parent=139 // loop_header_branch
              %693 = sbr.rel (%p691) target = $region147
            $region144: #{tpu_custom_call.1} parent=139 // loop_body
              %v697 = vld [vmem:[%s695] sm:%s688]
              %698 = vst [vmem:[%s696] sm:%s688] %v697
            $region145: #{tpu_custom_call.1} parent=139 // loop_footer
              %s694 = sadd.s32 1, %s690
            $region146: #{tpu_custom_call.1} parent=139 // loop_footer_branch
              %689 = sbr.rel target = $region142
            $region147: #{tpu_custom_call.1} parent=139 // loop_exit
              _
          $region140: #{tpu_custom_call.1} parent=71 // pred_fallthru
            _
          // Predicated region
          $region159: #{tpu_custom_call.1} parent=71 // pred_check
            _
          $region160: #{tpu_custom_call.1} parent=71 // pred_check_branch
            %715 = sbr.rel (0) target = $region162
          $region161: #{tpu_custom_call.1} parent=71 // pred_region
            %716 = vsyncadd [#allocation3], 16
          $region162: #{tpu_custom_call.1} parent=71 // pred_fallthru
            _
          %s717 = sadd.s32 %s604, 3
          %s718 = sld [smem:[#allocation5 + %s717]]
          %s719 = scalar_lea.vmem %s1, %s718
          %s720 = scalar_lea.vmem [#allocation2], 3
          // Predicated region
          $region163: #{tpu_custom_call.1} parent=71 // pred_check
            _
          $region164: #{tpu_custom_call.1} parent=71 // pred_check_branch
            %722 = sbr.rel target = $region166
          $region165: #{tpu_custom_call.1} parent=71 // pred_region
            // Predicated region
            $region178: #{tpu_custom_call.1} parent=165 // pred_check
              _
            $region179: #{tpu_custom_call.1} parent=165 // pred_check_branch
              %738 = sbr.rel (0) target = $region181
            $region180: #{tpu_custom_call.1} parent=165 // pred_region
              %s740 = ssub.s32 2, 1
              loop: start=0, step=1, limit=1
              $region182: #{tpu_custom_call.1} parent=180 // loop_pre_header
                _
              $region183: #{tpu_custom_call.1} parent=180 // loop_header
                %s742 = sphi 0, %s746
                %p743 = scmp.ge.s32.totalorder %s742, 1
                %s747 = sphi %s719, %s719
                %s748 = sphi %s720, %s720
              $region184: #{tpu_custom_call.1} parent=180 // loop_header_branch
                %745 = sbr.rel (%p743) target = $region188
              $region185: #{tpu_custom_call.1} parent=180 // loop_body
                %v749 = vld [vmem:[%s747] sm:%s740]
                %750 = vst [vmem:[%s748] sm:%s740] %v749
              $region186: #{tpu_custom_call.1} parent=180 // loop_footer
                %s746 = sadd.s32 1, %s742
              $region187: #{tpu_custom_call.1} parent=180 // loop_footer_branch
                %741 = sbr.rel target = $region183
              $region188: #{tpu_custom_call.1} parent=180 // loop_exit
                _
            $region181: #{tpu_custom_call.1} parent=165 // pred_fallthru
              _
          $region166: #{tpu_custom_call.1} parent=71 // pred_fallthru
            _
          // Predicated region
          $region167: #{tpu_custom_call.1} parent=71 // pred_check
            _
          $region168: #{tpu_custom_call.1} parent=71 // pred_check_branch
            %724 = sbr.rel (0) target = $region170
          $region169: #{tpu_custom_call.1} parent=71 // pred_region
            %s726 = ssub.s32 2, 1
            loop: start=0, step=1, limit=1
            $region171: #{tpu_custom_call.1} parent=169 // loop_pre_header
              _
            $region172: #{tpu_custom_call.1} parent=169 // loop_header
              %s728 = sphi 0, %s732
              %p729 = scmp.ge.s32.totalorder %s728, 1
              %s733 = sphi %s719, %s719
              %s734 = sphi %s720, %s720
            $region173: #{tpu_custom_call.1} parent=169 // loop_header_branch
              %731 = sbr.rel (%p729) target = $region177
            $region174: #{tpu_custom_call.1} parent=169 // loop_body
              %v735 = vld [vmem:[%s733] sm:%s726]
              %736 = vst [vmem:[%s734] sm:%s726] %v735
            $region175: #{tpu_custom_call.1} parent=169 // loop_footer
              %s732 = sadd.s32 1, %s728
            $region176: #{tpu_custom_call.1} parent=169 // loop_footer_branch
              %727 = sbr.rel target = $region172
            $region177: #{tpu_custom_call.1} parent=169 // loop_exit
              _
          $region170: #{tpu_custom_call.1} parent=71 // pred_fallthru
            _
          // Predicated region
          $region189: #{tpu_custom_call.1} parent=71 // pred_check
            _
          $region190: #{tpu_custom_call.1} parent=71 // pred_check_branch
            %753 = sbr.rel (0) target = $region192
          $region191: #{tpu_custom_call.1} parent=71 // pred_region
            %754 = vsyncadd [#allocation3], 16
          $region192: #{tpu_custom_call.1} parent=71 // pred_fallthru
            _
          %s755 = sadd.s32 %s604, 4
          %s756 = sld [smem:[#allocation5 + %s755]]
          %s757 = scalar_lea.vmem %s1, %s756
          %s758 = scalar_lea.vmem [#allocation2], 4
          // Predicated region
          $region193: #{tpu_custom_call.1} parent=71 // pred_check
            _
          $region194: #{tpu_custom_call.1} parent=71 // pred_check_branch
            %760 = sbr.rel target = $region196
          $region195: #{tpu_custom_call.1} parent=71 // pred_region
            // Predicated region
            $region208: #{tpu_custom_call.1} parent=195 // pred_check
              _
            $region209: #{tpu_custom_call.1} parent=195 // pred_check_branch
              %776 = sbr.rel (0) target = $region211
            $region210: #{tpu_custom_call.1} parent=195 // pred_region
              %s778 = ssub.s32 2, 1
              loop: start=0, step=1, limit=1
              $region212: #{tpu_custom_call.1} parent=210 // loop_pre_header
                _
              $region213: #{tpu_custom_call.1} parent=210 // loop_header
                %s780 = sphi 0, %s784
                %p781 = scmp.ge.s32.totalorder %s780, 1
                %s785 = sphi %s757, %s757
                %s786 = sphi %s758, %s758
              $region214: #{tpu_custom_call.1} parent=210 // loop_header_branch
                %783 = sbr.rel (%p781) target = $region218
              $region215: #{tpu_custom_call.1} parent=210 // loop_body
                %v787 = vld [vmem:[%s785] sm:%s778]
                %788 = vst [vmem:[%s786] sm:%s778] %v787
              $region216: #{tpu_custom_call.1} parent=210 // loop_footer
                %s784 = sadd.s32 1, %s780
              $region217: #{tpu_custom_call.1} parent=210 // loop_footer_branch
                %779 = sbr.rel target = $region213
              $region218: #{tpu_custom_call.1} parent=210 // loop_exit
                _
            $region211: #{tpu_custom_call.1} parent=195 // pred_fallthru
              _
          $region196: #{tpu_custom_call.1} parent=71 // pred_fallthru
            _
          // Predicated region
          $region197: #{tpu_custom_call.1} parent=71 // pred_check
            _
          $region198: #{tpu_custom_call.1} parent=71 // pred_check_branch
            %762 = sbr.rel (0) target = $region200
          $region199: #{tpu_custom_call.1} parent=71 // pred_region
            %s764 = ssub.s32 2, 1
            loop: start=0, step=1, limit=1
            $region201: #{tpu_custom_call.1} parent=199 // loop_pre_header
              _
            $region202: #{tpu_custom_call.1} parent=199 // loop_header
              %s766 = sphi 0, %s770
              %p767 = scmp.ge.s32.totalorder %s766, 1
              %s771 = sphi %s757, %s757
              %s772 = sphi %s758, %s758
            $region203: #{tpu_custom_call.1} parent=199 // loop_header_branch
              %769 = sbr.rel (%p767) target = $region207
            $region204: #{tpu_custom_call.1} parent=199 // loop_body
              %v773 = vld [vmem:[%s771] sm:%s764]
              %774 = vst [vmem:[%s772] sm:%s764] %v773
            $region205: #{tpu_custom_call.1} parent=199 // loop_footer
              %s770 = sadd.s32 1, %s766
            $region206: #{tpu_custom_call.1} parent=199 // loop_footer_branch
              %765 = sbr.rel target = $region202
            $region207: #{tpu_custom_call.1} parent=199 // loop_exit
              _
          $region200: #{tpu_custom_call.1} parent=71 // pred_fallthru
            _
          // Predicated region
          $region219: #{tpu_custom_call.1} parent=71 // pred_check
            _
          $region220: #{tpu_custom_call.1} parent=71 // pred_check_branch
            %791 = sbr.rel (0) target = $region222
          $region221: #{tpu_custom_call.1} parent=71 // pred_region
            %792 = vsyncadd [#allocation3], 16
          $region222: #{tpu_custom_call.1} parent=71 // pred_fallthru
            _
          %s793 = sadd.s32 %s604, 5
          %s794 = sld [smem:[#allocation5 + %s793]]
          %s795 = scalar_lea.vmem %s1, %s794
          %s796 = scalar_lea.vmem [#allocation2], 5
          // Predicated region
          $region223: #{tpu_custom_call.1} parent=71 // pred_check
            _
          $region224: #{tpu_custom_call.1} parent=71 // pred_check_branch
            %798 = sbr.rel target = $region226
          $region225: #{tpu_custom_call.1} parent=71 // pred_region
            // Predicated region
            $region238: #{tpu_custom_call.1} parent=225 // pred_check
              _
            $region239: #{tpu_custom_call.1} parent=225 // pred_check_branch
              %814 = sbr.rel (0) target = $region241
            $region240: #{tpu_custom_call.1} parent=225 // pred_region
              %s816 = ssub.s32 2, 1
              loop: start=0, step=1, limit=1
              $region242: #{tpu_custom_call.1} parent=240 // loop_pre_header
                _
              $region243: #{tpu_custom_call.1} parent=240 // loop_header
                %s818 = sphi 0, %s822
                %p819 = scmp.ge.s32.totalorder %s818, 1
                %s823 = sphi %s795, %s795
                %s824 = sphi %s796, %s796
              $region244: #{tpu_custom_call.1} parent=240 // loop_header_branch
                %821 = sbr.rel (%p819) target = $region248
              $region245: #{tpu_custom_call.1} parent=240 // loop_body
                %v825 = vld [vmem:[%s823] sm:%s816]
                %826 = vst [vmem:[%s824] sm:%s816] %v825
              $region246: #{tpu_custom_call.1} parent=240 // loop_footer
                %s822 = sadd.s32 1, %s818
              $region247: #{tpu_custom_call.1} parent=240 // loop_footer_branch
                %817 = sbr.rel target = $region243
              $region248: #{tpu_custom_call.1} parent=240 // loop_exit
                _
            $region241: #{tpu_custom_call.1} parent=225 // pred_fallthru
              _
          $region226: #{tpu_custom_call.1} parent=71 // pred_fallthru
            _
          // Predicated region
          $region227: #{tpu_custom_call.1} parent=71 // pred_check
            _
          $region228: #{tpu_custom_call.1} parent=71 // pred_check_branch
            %800 = sbr.rel (0) target = $region230
          $region229: #{tpu_custom_call.1} parent=71 // pred_region
            %s802 = ssub.s32 2, 1
            loop: start=0, step=1, limit=1
            $region231: #{tpu_custom_call.1} parent=229 // loop_pre_header
              _
            $region232: #{tpu_custom_call.1} parent=229 // loop_header
              %s804 = sphi 0, %s808
              %p805 = scmp.ge.s32.totalorder %s804, 1
              %s809 = sphi %s795, %s795
              %s810 = sphi %s796, %s796
            $region233: #{tpu_custom_call.1} parent=229 // loop_header_branch
              %807 = sbr.rel (%p805) target = $region237
            $region234: #{tpu_custom_call.1} parent=229 // loop_body
              %v811 = vld [vmem:[%s809] sm:%s802]
              %812 = vst [vmem:[%s810] sm:%s802] %v811
            $region235: #{tpu_custom_call.1} parent=229 // loop_footer
              %s808 = sadd.s32 1, %s804
            $region236: #{tpu_custom_call.1} parent=229 // loop_footer_branch
              %803 = sbr.rel target = $region232
            $region237: #{tpu_custom_call.1} parent=229 // loop_exit
              _
          $region230: #{tpu_custom_call.1} parent=71 // pred_fallthru
            _
          // Predicated region
          $region249: #{tpu_custom_call.1} parent=71 // pred_check
            _
          $region250: #{tpu_custom_call.1} parent=71 // pred_check_branch
            %829 = sbr.rel (0) target = $region252
          $region251: #{tpu_custom_call.1} parent=71 // pred_region
            %830 = vsyncadd [#allocation3], 16
          $region252: #{tpu_custom_call.1} parent=71 // pred_fallthru
            _
          %s831 = sadd.s32 %s604, 6
          %s832 = sld [smem:[#allocation5 + %s831]]
          %s833 = scalar_lea.vmem %s1, %s832
          %s834 = scalar_lea.vmem [#allocation2], 6
          // Predicated region
          $region253: #{tpu_custom_call.1} parent=71 // pred_check
            _
          $region254: #{tpu_custom_call.1} parent=71 // pred_check_branch
            %836 = sbr.rel target = $region256
          $region255: #{tpu_custom_call.1} parent=71 // pred_region
            // Predicated region
            $region268: #{tpu_custom_call.1} parent=255 // pred_check
              _
            $region269: #{tpu_custom_call.1} parent=255 // pred_check_branch
              %852 = sbr.rel (0) target = $region271
            $region270: #{tpu_custom_call.1} parent=255 // pred_region
              %s854 = ssub.s32 2, 1
              loop: start=0, step=1, limit=1
              $region272: #{tpu_custom_call.1} parent=270 // loop_pre_header
                _
              $region273: #{tpu_custom_call.1} parent=270 // loop_header
                %s856 = sphi 0, %s860
                %p857 = scmp.ge.s32.totalorder %s856, 1
                %s861 = sphi %s833, %s833
                %s862 = sphi %s834, %s834
              $region274: #{tpu_custom_call.1} parent=270 // loop_header_branch
                %859 = sbr.rel (%p857) target = $region278
              $region275: #{tpu_custom_call.1} parent=270 // loop_body
                %v863 = vld [vmem:[%s861] sm:%s854]
                %864 = vst [vmem:[%s862] sm:%s854] %v863
              $region276: #{tpu_custom_call.1} parent=270 // loop_footer
                %s860 = sadd.s32 1, %s856
              $region277: #{tpu_custom_call.1} parent=270 // loop_footer_branch
                %855 = sbr.rel target = $region273
              $region278: #{tpu_custom_call.1} parent=270 // loop_exit
                _
            $region271: #{tpu_custom_call.1} parent=255 // pred_fallthru
              _
          $region256: #{tpu_custom_call.1} parent=71 // pred_fallthru
            _
          // Predicated region
          $region257: #{tpu_custom_call.1} parent=71 // pred_check
            _
          $region258: #{tpu_custom_call.1} parent=71 // pred_check_branch
            %838 = sbr.rel (0) target = $region260
          $region259: #{tpu_custom_call.1} parent=71 // pred_region
            %s840 = ssub.s32 2, 1
            loop: start=0, step=1, limit=1
            $region261: #{tpu_custom_call.1} parent=259 // loop_pre_header
              _
            $region262: #{tpu_custom_call.1} parent=259 // loop_header
              %s842 = sphi 0, %s846
              %p843 = scmp.ge.s32.totalorder %s842, 1
              %s847 = sphi %s833, %s833
              %s848 = sphi %s834, %s834
            $region263: #{tpu_custom_call.1} parent=259 // loop_header_branch
              %845 = sbr.rel (%p843) target = $region267
            $region264: #{tpu_custom_call.1} parent=259 // loop_body
              %v849 = vld [vmem:[%s847] sm:%s840]
              %850 = vst [vmem:[%s848] sm:%s840] %v849
            $region265: #{tpu_custom_call.1} parent=259 // loop_footer
              %s846 = sadd.s32 1, %s842
            $region266: #{tpu_custom_call.1} parent=259 // loop_footer_branch
              %841 = sbr.rel target = $region262
            $region267: #{tpu_custom_call.1} parent=259 // loop_exit
              _
          $region260: #{tpu_custom_call.1} parent=71 // pred_fallthru
            _
          // Predicated region
          $region279: #{tpu_custom_call.1} parent=71 // pred_check
            _
          $region280: #{tpu_custom_call.1} parent=71 // pred_check_branch
            %867 = sbr.rel (0) target = $region282
          $region281: #{tpu_custom_call.1} parent=71 // pred_region
            %868 = vsyncadd [#allocation3], 16
          $region282: #{tpu_custom_call.1} parent=71 // pred_fallthru
            _
          %s869 = sadd.s32 %s604, 7
          %s870 = sld [smem:[#allocation5 + %s869]]
          %s871 = scalar_lea.vmem %s1, %s870
          %s872 = scalar_lea.vmem [#allocation2], 7
          // Predicated region
          $region283: #{tpu_custom_call.1} parent=71 // pred_check
            _
          $region284: #{tpu_custom_call.1} parent=71 // pred_check_branch
            %874 = sbr.rel target = $region286
          $region285: #{tpu_custom_call.1} parent=71 // pred_region
            // Predicated region
            $region298: #{tpu_custom_call.1} parent=285 // pred_check
              _
            $region299: #{tpu_custom_call.1} parent=285 // pred_check_branch
              %890 = sbr.rel (0) target = $region301
            $region300: #{tpu_custom_call.1} parent=285 // pred_region
              %s892 = ssub.s32 2, 1
              loop: start=0, step=1, limit=1
              $region302: #{tpu_custom_call.1} parent=300 // loop_pre_header
                _
              $region303: #{tpu_custom_call.1} parent=300 // loop_header
                %s894 = sphi 0, %s898
                %p895 = scmp.ge.s32.totalorder %s894, 1
                %s899 = sphi %s871, %s871
                %s900 = sphi %s872, %s872
              $region304: #{tpu_custom_call.1} parent=300 // loop_header_branch
                %897 = sbr.rel (%p895) target = $region308
              $region305: #{tpu_custom_call.1} parent=300 // loop_body
                %v901 = vld [vmem:[%s899] sm:%s892]
                %902 = vst [vmem:[%s900] sm:%s892] %v901
              $region306: #{tpu_custom_call.1} parent=300 // loop_footer
                %s898 = sadd.s32 1, %s894
              $region307: #{tpu_custom_call.1} parent=300 // loop_footer_branch
                %893 = sbr.rel target = $region303
              $region308: #{tpu_custom_call.1} parent=300 // loop_exit
                _
            $region301: #{tpu_custom_call.1} parent=285 // pred_fallthru
              _
          $region286: #{tpu_custom_call.1} parent=71 // pred_fallthru
            _
          // Predicated region
          $region287: #{tpu_custom_call.1} parent=71 // pred_check
            _
          $region288: #{tpu_custom_call.1} parent=71 // pred_check_branch
            %876 = sbr.rel (0) target = $region290
          $region289: #{tpu_custom_call.1} parent=71 // pred_region
            %s878 = ssub.s32 2, 1
            loop: start=0, step=1, limit=1
            $region291: #{tpu_custom_call.1} parent=289 // loop_pre_header
              _
            $region292: #{tpu_custom_call.1} parent=289 // loop_header
              %s880 = sphi 0, %s884
              %p881 = scmp.ge.s32.totalorder %s880, 1
              %s885 = sphi %s871, %s871
              %s886 = sphi %s872, %s872
            $region293: #{tpu_custom_call.1} parent=289 // loop_header_branch
              %883 = sbr.rel (%p881) target = $region297
            $region294: #{tpu_custom_call.1} parent=289 // loop_body
              %v887 = vld [vmem:[%s885] sm:%s878]
              %888 = vst [vmem:[%s886] sm:%s878] %v887
            $region295: #{tpu_custom_call.1} parent=289 // loop_footer
              %s884 = sadd.s32 1, %s880
            $region296: #{tpu_custom_call.1} parent=289 // loop_footer_branch
              %879 = sbr.rel target = $region292
            $region297: #{tpu_custom_call.1} parent=289 // loop_exit
              _
          $region290: #{tpu_custom_call.1} parent=71 // pred_fallthru
            _
          // Predicated region
          $region309: #{tpu_custom_call.1} parent=71 // pred_check
            _
          $region310: #{tpu_custom_call.1} parent=71 // pred_check_branch
            %905 = sbr.rel (0) target = $region312
          $region311: #{tpu_custom_call.1} parent=71 // pred_region
            %906 = vsyncadd [#allocation3], 16
          $region312: #{tpu_custom_call.1} parent=71 // pred_fallthru
            _
          %s907 = sadd.s32 %s604, 8
          %s908 = sld [smem:[#allocation5 + %s907]]
          %s909 = scalar_lea.vmem %s1, %s908
          %s910 = scalar_lea.vmem [#allocation2], 8
          // Predicated region
          $region313: #{tpu_custom_call.1} parent=71 // pred_check
            _
          $region314: #{tpu_custom_call.1} parent=71 // pred_check_branch
            %912 = sbr.rel target = $region316
          $region315: #{tpu_custom_call.1} parent=71 // pred_region
            // Predicated region
            $region328: #{tpu_custom_call.1} parent=315 // pred_check
              _
            $region329: #{tpu_custom_call.1} parent=315 // pred_check_branch
              %928 = sbr.rel (0) target = $region331
            $region330: #{tpu_custom_call.1} parent=315 // pred_region
              %s930 = ssub.s32 2, 1
              loop: start=0, step=1, limit=1
              $region332: #{tpu_custom_call.1} parent=330 // loop_pre_header
                _
              $region333: #{tpu_custom_call.1} parent=330 // loop_header
                %s932 = sphi 0, %s936
                %p933 = scmp.ge.s32.totalorder %s932, 1
                %s937 = sphi %s909, %s909
                %s938 = sphi %s910, %s910
              $region334: #{tpu_custom_call.1} parent=330 // loop_header_branch
                %935 = sbr.rel (%p933) target = $region338
              $region335: #{tpu_custom_call.1} parent=330 // loop_body
                %v939 = vld [vmem:[%s937] sm:%s930]
                %940 = vst [vmem:[%s938] sm:%s930] %v939
              $region336: #{tpu_custom_call.1} parent=330 // loop_footer
                %s936 = sadd.s32 1, %s932
              $region337: #{tpu_custom_call.1} parent=330 // loop_footer_branch
                %931 = sbr.rel target = $region333
              $region338: #{tpu_custom_call.1} parent=330 // loop_exit
                _
            $region331: #{tpu_custom_call.1} parent=315 // pred_fallthru
              _
          $region316: #{tpu_custom_call.1} parent=71 // pred_fallthru
            _
          // Predicated region
          $region317: #{tpu_custom_call.1} parent=71 // pred_check
            _
          $region318: #{tpu_custom_call.1} parent=71 // pred_check_branch
            %914 = sbr.rel (0) target = $region320
          $region319: #{tpu_custom_call.1} parent=71 // pred_region
            %s916 = ssub.s32 2, 1
            loop: start=0, step=1, limit=1
            $region321: #{tpu_custom_call.1} parent=319 // loop_pre_header
              _
            $region322: #{tpu_custom_call.1} parent=319 // loop_header
              %s918 = sphi 0, %s922
              %p919 = scmp.ge.s32.totalorder %s918, 1
              %s923 = sphi %s909, %s909
              %s924 = sphi %s910, %s910
            $region323: #{tpu_custom_call.1} parent=319 // loop_header_branch
              %921 = sbr.rel (%p919) target = $region327
            $region324: #{tpu_custom_call.1} parent=319 // loop_body
              %v925 = vld [vmem:[%s923] sm:%s916]
              %926 = vst [vmem:[%s924] sm:%s916] %v925
            $region325: #{tpu_custom_call.1} parent=319 // loop_footer
              %s922 = sadd.s32 1, %s918
            $region326: #{tpu_custom_call.1} parent=319 // loop_footer_branch
              %917 = sbr.rel target = $region322
            $region327: #{tpu_custom_call.1} parent=319 // loop_exit
              _
          $region320: #{tpu_custom_call.1} parent=71 // pred_fallthru
            _
          // Predicated region
          $region339: #{tpu_custom_call.1} parent=71 // pred_check
            _
          $region340: #{tpu_custom_call.1} parent=71 // pred_check_branch
            %943 = sbr.rel (0) target = $region342
          $region341: #{tpu_custom_call.1} parent=71 // pred_region
            %944 = vsyncadd [#allocation3], 16
          $region342: #{tpu_custom_call.1} parent=71 // pred_fallthru
            _
          %s945 = sadd.s32 %s604, 9
          %s946 = sld [smem:[#allocation5 + %s945]]
          %s947 = scalar_lea.vmem %s1, %s946
          %s948 = scalar_lea.vmem [#allocation2], 9
          // Predicated region
          $region343: #{tpu_custom_call.1} parent=71 // pred_check
            _
          $region344: #{tpu_custom_call.1} parent=71 // pred_check_branch
            %950 = sbr.rel target = $region346
          $region345: #{tpu_custom_call.1} parent=71 // pred_region
            // Predicated region
            $region358: #{tpu_custom_call.1} parent=345 // pred_check
              _
            $region359: #{tpu_custom_call.1} parent=345 // pred_check_branch
              %966 = sbr.rel (0) target = $region361
            $region360: #{tpu_custom_call.1} parent=345 // pred_region
              %s968 = ssub.s32 2, 1
              loop: start=0, step=1, limit=1
              $region362: #{tpu_custom_call.1} parent=360 // loop_pre_header
                _
              $region363: #{tpu_custom_call.1} parent=360 // loop_header
                %s970 = sphi 0, %s974
                %p971 = scmp.ge.s32.totalorder %s970, 1
                %s975 = sphi %s947, %s947
                %s976 = sphi %s948, %s948
              $region364: #{tpu_custom_call.1} parent=360 // loop_header_branch
                %973 = sbr.rel (%p971) target = $region368
              $region365: #{tpu_custom_call.1} parent=360 // loop_body
                %v977 = vld [vmem:[%s975] sm:%s968]
                %978 = vst [vmem:[%s976] sm:%s968] %v977
              $region366: #{tpu_custom_call.1} parent=360 // loop_footer
                %s974 = sadd.s32 1, %s970
              $region367: #{tpu_custom_call.1} parent=360 // loop_footer_branch
                %969 = sbr.rel target = $region363
              $region368: #{tpu_custom_call.1} parent=360 // loop_exit
                _
            $region361: #{tpu_custom_call.1} parent=345 // pred_fallthru
              _
          $region346: #{tpu_custom_call.1} parent=71 // pred_fallthru
            _
          // Predicated region
          $region347: #{tpu_custom_call.1} parent=71 // pred_check
            _
          $region348: #{tpu_custom_call.1} parent=71 // pred_check_branch
            %952 = sbr.rel (0) target = $region350
          $region349: #{tpu_custom_call.1} parent=71 // pred_region
            %s954 = ssub.s32 2, 1
            loop: start=0, step=1, limit=1
            $region351: #{tpu_custom_call.1} parent=349 // loop_pre_header
              _
            $region352: #{tpu_custom_call.1} parent=349 // loop_header
              %s956 = sphi 0, %s960
              %p957 = scmp.ge.s32.totalorder %s956, 1
              %s961 = sphi %s947, %s947
              %s962 = sphi %s948, %s948
            $region353: #{tpu_custom_call.1} parent=349 // loop_header_branch
              %959 = sbr.rel (%p957) target = $region357
            $region354: #{tpu_custom_call.1} parent=349 // loop_body
              %v963 = vld [vmem:[%s961] sm:%s954]
              %964 = vst [vmem:[%s962] sm:%s954] %v963
            $region355: #{tpu_custom_call.1} parent=349 // loop_footer
              %s960 = sadd.s32 1, %s956
            $region356: #{tpu_custom_call.1} parent=349 // loop_footer_branch
              %955 = sbr.rel target = $region352
            $region357: #{tpu_custom_call.1} parent=349 // loop_exit
              _
          $region350: #{tpu_custom_call.1} parent=71 // pred_fallthru
            _
          // Predicated region
          $region369: #{tpu_custom_call.1} parent=71 // pred_check
            _
          $region370: #{tpu_custom_call.1} parent=71 // pred_check_branch
            %981 = sbr.rel (0) target = $region372
          $region371: #{tpu_custom_call.1} parent=71 // pred_region
            %982 = vsyncadd [#allocation3], 16
          $region372: #{tpu_custom_call.1} parent=71 // pred_fallthru
            _
          %s983 = sadd.s32 %s604, 10
          %s984 = sld [smem:[#allocation5 + %s983]]
          %s985 = scalar_lea.vmem %s1, %s984
          %s986 = scalar_lea.vmem [#allocation2], 10
          // Predicated region
          $region373: #{tpu_custom_call.1} parent=71 // pred_check
            _
          $region374: #{tpu_custom_call.1} parent=71 // pred_check_branch
            %988 = sbr.rel target = $region376
          $region375: #{tpu_custom_call.1} parent=71 // pred_region
            // Predicated region
            $region388: #{tpu_custom_call.1} parent=375 // pred_check
              _
            $region389: #{tpu_custom_call.1} parent=375 // pred_check_branch
              %1004 = sbr.rel (0) target = $region391
            $region390: #{tpu_custom_call.1} parent=375 // pred_region
              %s1006 = ssub.s32 2, 1
              loop: start=0, step=1, limit=1
              $region392: #{tpu_custom_call.1} parent=390 // loop_pre_header
                _
              $region393: #{tpu_custom_call.1} parent=390 // loop_header
                %s1008 = sphi 0, %s1012
                %p1009 = scmp.ge.s32.totalorder %s1008, 1
                %s1013 = sphi %s985, %s985
                %s1014 = sphi %s986, %s986
              $region394: #{tpu_custom_call.1} parent=390 // loop_header_branch
                %1011 = sbr.rel (%p1009) target = $region398
              $region395: #{tpu_custom_call.1} parent=390 // loop_body
                %v1015 = vld [vmem:[%s1013] sm:%s1006]
                %1016 = vst [vmem:[%s1014] sm:%s1006] %v1015
              $region396: #{tpu_custom_call.1} parent=390 // loop_footer
                %s1012 = sadd.s32 1, %s1008
              $region397: #{tpu_custom_call.1} parent=390 // loop_footer_branch
                %1007 = sbr.rel target = $region393
              $region398: #{tpu_custom_call.1} parent=390 // loop_exit
                _
            $region391: #{tpu_custom_call.1} parent=375 // pred_fallthru
              _
          $region376: #{tpu_custom_call.1} parent=71 // pred_fallthru
            _
          // Predicated region
          $region377: #{tpu_custom_call.1} parent=71 // pred_check
            _
          $region378: #{tpu_custom_call.1} parent=71 // pred_check_branch
            %990 = sbr.rel (0) target = $region380
          $region379: #{tpu_custom_call.1} parent=71 // pred_region
            %s992 = ssub.s32 2, 1
            loop: start=0, step=1, limit=1
            $region381: #{tpu_custom_call.1} parent=379 // loop_pre_header
              _
            $region382: #{tpu_custom_call.1} parent=379 // loop_header
              %s994 = sphi 0, %s998
              %p995 = scmp.ge.s32.totalorder %s994, 1
              %s999 = sphi %s985, %s985
              %s1000 = sphi %s986, %s986
            $region383: #{tpu_custom_call.1} parent=379 // loop_header_branch
              %997 = sbr.rel (%p995) target = $region387
            $region384: #{tpu_custom_call.1} parent=379 // loop_body
              %v1001 = vld [vmem:[%s999] sm:%s992]
              %1002 = vst [vmem:[%s1000] sm:%s992] %v1001
            $region385: #{tpu_custom_call.1} parent=379 // loop_footer
              %s998 = sadd.s32 1, %s994
            $region386: #{tpu_custom_call.1} parent=379 // loop_footer_branch
              %993 = sbr.rel target = $region382
            $region387: #{tpu_custom_call.1} parent=379 // loop_exit
              _
          $region380: #{tpu_custom_call.1} parent=71 // pred_fallthru
            _
          // Predicated region
          $region399: #{tpu_custom_call.1} parent=71 // pred_check
            _
          $region400: #{tpu_custom_call.1} parent=71 // pred_check_branch
            %1019 = sbr.rel (0) target = $region402
          $region401: #{tpu_custom_call.1} parent=71 // pred_region
            %1020 = vsyncadd [#allocation3], 16
          $region402: #{tpu_custom_call.1} parent=71 // pred_fallthru
            _
          %s1021 = sadd.s32 %s604, 11
          %s1022 = sld [smem:[#allocation5 + %s1021]]
          %s1023 = scalar_lea.vmem %s1, %s1022
          %s1024 = scalar_lea.vmem [#allocation2], 11
          // Predicated region
          $region403: #{tpu_custom_call.1} parent=71 // pred_check
            _
          $region404: #{tpu_custom_call.1} parent=71 // pred_check_branch
            %1026 = sbr.rel target = $region406
          $region405: #{tpu_custom_call.1} parent=71 // pred_region
            // Predicated region
            $region418: #{tpu_custom_call.1} parent=405 // pred_check
              _
            $region419: #{tpu_custom_call.1} parent=405 // pred_check_branch
              %1042 = sbr.rel (0) target = $region421
            $region420: #{tpu_custom_call.1} parent=405 // pred_region
              %s1044 = ssub.s32 2, 1
              loop: start=0, step=1, limit=1
              $region422: #{tpu_custom_call.1} parent=420 // loop_pre_header
                _
              $region423: #{tpu_custom_call.1} parent=420 // loop_header
                %s1046 = sphi 0, %s1050
                %p1047 = scmp.ge.s32.totalorder %s1046, 1
                %s1051 = sphi %s1023, %s1023
                %s1052 = sphi %s1024, %s1024
              $region424: #{tpu_custom_call.1} parent=420 // loop_header_branch
                %1049 = sbr.rel (%p1047) target = $region428
              $region425: #{tpu_custom_call.1} parent=420 // loop_body
                %v1053 = vld [vmem:[%s1051] sm:%s1044]
                %1054 = vst [vmem:[%s1052] sm:%s1044] %v1053
              $region426: #{tpu_custom_call.1} parent=420 // loop_footer
                %s1050 = sadd.s32 1, %s1046
              $region427: #{tpu_custom_call.1} parent=420 // loop_footer_branch
                %1045 = sbr.rel target = $region423
              $region428: #{tpu_custom_call.1} parent=420 // loop_exit
                _
            $region421: #{tpu_custom_call.1} parent=405 // pred_fallthru
              _
          $region406: #{tpu_custom_call.1} parent=71 // pred_fallthru
            _
          // Predicated region
          $region407: #{tpu_custom_call.1} parent=71 // pred_check
            _
          $region408: #{tpu_custom_call.1} parent=71 // pred_check_branch
            %1028 = sbr.rel (0) target = $region410
          $region409: #{tpu_custom_call.1} parent=71 // pred_region
            %s1030 = ssub.s32 2, 1
            loop: start=0, step=1, limit=1
            $region411: #{tpu_custom_call.1} parent=409 // loop_pre_header
              _
            $region412: #{tpu_custom_call.1} parent=409 // loop_header
              %s1032 = sphi 0, %s1036
              %p1033 = scmp.ge.s32.totalorder %s1032, 1
              %s1037 = sphi %s1023, %s1023
              %s1038 = sphi %s1024, %s1024
            $region413: #{tpu_custom_call.1} parent=409 // loop_header_branch
              %1035 = sbr.rel (%p1033) target = $region417
            $region414: #{tpu_custom_call.1} parent=409 // loop_body
              %v1039 = vld [vmem:[%s1037] sm:%s1030]
              %1040 = vst [vmem:[%s1038] sm:%s1030] %v1039
            $region415: #{tpu_custom_call.1} parent=409 // loop_footer
              %s1036 = sadd.s32 1, %s1032
            $region416: #{tpu_custom_call.1} parent=409 // loop_footer_branch
              %1031 = sbr.rel target = $region412
            $region417: #{tpu_custom_call.1} parent=409 // loop_exit
              _
          $region410: #{tpu_custom_call.1} parent=71 // pred_fallthru
            _
          // Predicated region
          $region429: #{tpu_custom_call.1} parent=71 // pred_check
            _
          $region430: #{tpu_custom_call.1} parent=71 // pred_check_branch
            %1057 = sbr.rel (0) target = $region432
          $region431: #{tpu_custom_call.1} parent=71 // pred_region
            %1058 = vsyncadd [#allocation3], 16
          $region432: #{tpu_custom_call.1} parent=71 // pred_fallthru
            _
          %s1059 = sadd.s32 %s604, 12
          %s1060 = sld [smem:[#allocation5 + %s1059]]
          %s1061 = scalar_lea.vmem %s1, %s1060
          %s1062 = scalar_lea.vmem [#allocation2], 12
          // Predicated region
          $region433: #{tpu_custom_call.1} parent=71 // pred_check
            _
          $region434: #{tpu_custom_call.1} parent=71 // pred_check_branch
            %1064 = sbr.rel target = $region436
          $region435: #{tpu_custom_call.1} parent=71 // pred_region
            // Predicated region
            $region448: #{tpu_custom_call.1} parent=435 // pred_check
              _
            $region449: #{tpu_custom_call.1} parent=435 // pred_check_branch
              %1080 = sbr.rel (0) target = $region451
            $region450: #{tpu_custom_call.1} parent=435 // pred_region
              %s1082 = ssub.s32 2, 1
              loop: start=0, step=1, limit=1
              $region452: #{tpu_custom_call.1} parent=450 // loop_pre_header
                _
              $region453: #{tpu_custom_call.1} parent=450 // loop_header
                %s1084 = sphi 0, %s1088
                %p1085 = scmp.ge.s32.totalorder %s1084, 1
                %s1089 = sphi %s1061, %s1061
                %s1090 = sphi %s1062, %s1062
              $region454: #{tpu_custom_call.1} parent=450 // loop_header_branch
                %1087 = sbr.rel (%p1085) target = $region458
              $region455: #{tpu_custom_call.1} parent=450 // loop_body
                %v1091 = vld [vmem:[%s1089] sm:%s1082]
                %1092 = vst [vmem:[%s1090] sm:%s1082] %v1091
              $region456: #{tpu_custom_call.1} parent=450 // loop_footer
                %s1088 = sadd.s32 1, %s1084
              $region457: #{tpu_custom_call.1} parent=450 // loop_footer_branch
                %1083 = sbr.rel target = $region453
              $region458: #{tpu_custom_call.1} parent=450 // loop_exit
                _
            $region451: #{tpu_custom_call.1} parent=435 // pred_fallthru
              _
          $region436: #{tpu_custom_call.1} parent=71 // pred_fallthru
            _
          // Predicated region
          $region437: #{tpu_custom_call.1} parent=71 // pred_check
            _
          $region438: #{tpu_custom_call.1} parent=71 // pred_check_branch
            %1066 = sbr.rel (0) target = $region440
          $region439: #{tpu_custom_call.1} parent=71 // pred_region
            %s1068 = ssub.s32 2, 1
            loop: start=0, step=1, limit=1
            $region441: #{tpu_custom_call.1} parent=439 // loop_pre_header
              _
            $region442: #{tpu_custom_call.1} parent=439 // loop_header
              %s1070 = sphi 0, %s1074
              %p1071 = scmp.ge.s32.totalorder %s1070, 1
              %s1075 = sphi %s1061, %s1061
              %s1076 = sphi %s1062, %s1062
            $region443: #{tpu_custom_call.1} parent=439 // loop_header_branch
              %1073 = sbr.rel (%p1071) target = $region447
            $region444: #{tpu_custom_call.1} parent=439 // loop_body
              %v1077 = vld [vmem:[%s1075] sm:%s1068]
              %1078 = vst [vmem:[%s1076] sm:%s1068] %v1077
            $region445: #{tpu_custom_call.1} parent=439 // loop_footer
              %s1074 = sadd.s32 1, %s1070
            $region446: #{tpu_custom_call.1} parent=439 // loop_footer_branch
              %1069 = sbr.rel target = $region442
            $region447: #{tpu_custom_call.1} parent=439 // loop_exit
              _
          $region440: #{tpu_custom_call.1} parent=71 // pred_fallthru
            _
          // Predicated region
          $region459: #{tpu_custom_call.1} parent=71 // pred_check
            _
          $region460: #{tpu_custom_call.1} parent=71 // pred_check_branch
            %1095 = sbr.rel (0) target = $region462
          $region461: #{tpu_custom_call.1} parent=71 // pred_region
            %1096 = vsyncadd [#allocation3], 16
          $region462: #{tpu_custom_call.1} parent=71 // pred_fallthru
            _
          %s1097 = sadd.s32 %s604, 13
          %s1098 = sld [smem:[#allocation5 + %s1097]]
          %s1099 = scalar_lea.vmem %s1, %s1098
          %s1100 = scalar_lea.vmem [#allocation2], 13
          // Predicated region
          $region463: #{tpu_custom_call.1} parent=71 // pred_check
            _
          $region464: #{tpu_custom_call.1} parent=71 // pred_check_branch
            %1102 = sbr.rel target = $region466
          $region465: #{tpu_custom_call.1} parent=71 // pred_region
            // Predicated region
            $region478: #{tpu_custom_call.1} parent=465 // pred_check
              _
            $region479: #{tpu_custom_call.1} parent=465 // pred_check_branch
              %1118 = sbr.rel (0) target = $region481
            $region480: #{tpu_custom_call.1} parent=465 // pred_region
              %s1120 = ssub.s32 2, 1
              loop: start=0, step=1, limit=1
              $region482: #{tpu_custom_call.1} parent=480 // loop_pre_header
                _
              $region483: #{tpu_custom_call.1} parent=480 // loop_header
                %s1122 = sphi 0, %s1126
                %p1123 = scmp.ge.s32.totalorder %s1122, 1
                %s1127 = sphi %s1099, %s1099
                %s1128 = sphi %s1100, %s1100
              $region484: #{tpu_custom_call.1} parent=480 // loop_header_branch
                %1125 = sbr.rel (%p1123) target = $region488
              $region485: #{tpu_custom_call.1} parent=480 // loop_body
                %v1129 = vld [vmem:[%s1127] sm:%s1120]
                %1130 = vst [vmem:[%s1128] sm:%s1120] %v1129
              $region486: #{tpu_custom_call.1} parent=480 // loop_footer
                %s1126 = sadd.s32 1, %s1122
              $region487: #{tpu_custom_call.1} parent=480 // loop_footer_branch
                %1121 = sbr.rel target = $region483
              $region488: #{tpu_custom_call.1} parent=480 // loop_exit
                _
            $region481: #{tpu_custom_call.1} parent=465 // pred_fallthru
              _
          $region466: #{tpu_custom_call.1} parent=71 // pred_fallthru
            _
          // Predicated region
          $region467: #{tpu_custom_call.1} parent=71 // pred_check
            _
          $region468: #{tpu_custom_call.1} parent=71 // pred_check_branch
            %1104 = sbr.rel (0) target = $region470
          $region469: #{tpu_custom_call.1} parent=71 // pred_region
            %s1106 = ssub.s32 2, 1
            loop: start=0, step=1, limit=1
            $region471: #{tpu_custom_call.1} parent=469 // loop_pre_header
              _
            $region472: #{tpu_custom_call.1} parent=469 // loop_header
              %s1108 = sphi 0, %s1112
              %p1109 = scmp.ge.s32.totalorder %s1108, 1
              %s1113 = sphi %s1099, %s1099
              %s1114 = sphi %s1100, %s1100
            $region473: #{tpu_custom_call.1} parent=469 // loop_header_branch
              %1111 = sbr.rel (%p1109) target = $region477
            $region474: #{tpu_custom_call.1} parent=469 // loop_body
              %v1115 = vld [vmem:[%s1113] sm:%s1106]
              %1116 = vst [vmem:[%s1114] sm:%s1106] %v1115
            $region475: #{tpu_custom_call.1} parent=469 // loop_footer
              %s1112 = sadd.s32 1, %s1108
            $region476: #{tpu_custom_call.1} parent=469 // loop_footer_branch
              %1107 = sbr.rel target = $region472
            $region477: #{tpu_custom_call.1} parent=469 // loop_exit
              _
          $region470: #{tpu_custom_call.1} parent=71 // pred_fallthru
            _
          // Predicated region
          $region489: #{tpu_custom_call.1} parent=71 // pred_check
            _
          $region490: #{tpu_custom_call.1} parent=71 // pred_check_branch
            %1133 = sbr.rel (0) target = $region492
          $region491: #{tpu_custom_call.1} parent=71 // pred_region
            %1134 = vsyncadd [#allocation3], 16
          $region492: #{tpu_custom_call.1} parent=71 // pred_fallthru
            _
          %s1135 = sadd.s32 %s604, 14
          %s1136 = sld [smem:[#allocation5 + %s1135]]
          %s1137 = scalar_lea.vmem %s1, %s1136
          %s1138 = scalar_lea.vmem [#allocation2], 14
          // Predicated region
          $region493: #{tpu_custom_call.1} parent=71 // pred_check
            _
          $region494: #{tpu_custom_call.1} parent=71 // pred_check_branch
            %1140 = sbr.rel target = $region496
          $region495: #{tpu_custom_call.1} parent=71 // pred_region
            // Predicated region
            $region508: #{tpu_custom_call.1} parent=495 // pred_check
              _
            $region509: #{tpu_custom_call.1} parent=495 // pred_check_branch
              %1156 = sbr.rel (0) target = $region511
            $region510: #{tpu_custom_call.1} parent=495 // pred_region
              %s1158 = ssub.s32 2, 1
              loop: start=0, step=1, limit=1
              $region512: #{tpu_custom_call.1} parent=510 // loop_pre_header
                _
              $region513: #{tpu_custom_call.1} parent=510 // loop_header
                %s1160 = sphi 0, %s1164
                %p1161 = scmp.ge.s32.totalorder %s1160, 1
                %s1165 = sphi %s1137, %s1137
                %s1166 = sphi %s1138, %s1138
              $region514: #{tpu_custom_call.1} parent=510 // loop_header_branch
                %1163 = sbr.rel (%p1161) target = $region518
              $region515: #{tpu_custom_call.1} parent=510 // loop_body
                %v1167 = vld [vmem:[%s1165] sm:%s1158]
                %1168 = vst [vmem:[%s1166] sm:%s1158] %v1167
              $region516: #{tpu_custom_call.1} parent=510 // loop_footer
                %s1164 = sadd.s32 1, %s1160
              $region517: #{tpu_custom_call.1} parent=510 // loop_footer_branch
                %1159 = sbr.rel target = $region513
              $region518: #{tpu_custom_call.1} parent=510 // loop_exit
                _
            $region511: #{tpu_custom_call.1} parent=495 // pred_fallthru
              _
          $region496: #{tpu_custom_call.1} parent=71 // pred_fallthru
            _
          // Predicated region
          $region497: #{tpu_custom_call.1} parent=71 // pred_check
            _
          $region498: #{tpu_custom_call.1} parent=71 // pred_check_branch
            %1142 = sbr.rel (0) target = $region500
          $region499: #{tpu_custom_call.1} parent=71 // pred_region
            %s1144 = ssub.s32 2, 1
            loop: start=0, step=1, limit=1
            $region501: #{tpu_custom_call.1} parent=499 // loop_pre_header
              _
            $region502: #{tpu_custom_call.1} parent=499 // loop_header
              %s1146 = sphi 0, %s1150
              %p1147 = scmp.ge.s32.totalorder %s1146, 1
              %s1151 = sphi %s1137, %s1137
              %s1152 = sphi %s1138, %s1138
            $region503: #{tpu_custom_call.1} parent=499 // loop_header_branch
              %1149 = sbr.rel (%p1147) target = $region507
            $region504: #{tpu_custom_call.1} parent=499 // loop_body
              %v1153 = vld [vmem:[%s1151] sm:%s1144]
              %1154 = vst [vmem:[%s1152] sm:%s1144] %v1153
            $region505: #{tpu_custom_call.1} parent=499 // loop_footer
              %s1150 = sadd.s32 1, %s1146
            $region506: #{tpu_custom_call.1} parent=499 // loop_footer_branch
              %1145 = sbr.rel target = $region502
            $region507: #{tpu_custom_call.1} parent=499 // loop_exit
              _
          $region500: #{tpu_custom_call.1} parent=71 // pred_fallthru
            _
          // Predicated region
          $region519: #{tpu_custom_call.1} parent=71 // pred_check
            _
          $region520: #{tpu_custom_call.1} parent=71 // pred_check_branch
            %1171 = sbr.rel (0) target = $region522
          $region521: #{tpu_custom_call.1} parent=71 // pred_region
            %1172 = vsyncadd [#allocation3], 16
          $region522: #{tpu_custom_call.1} parent=71 // pred_fallthru
            _
          %s1173 = sadd.s32 %s604, 15
          %s1174 = sld [smem:[#allocation5 + %s1173]]
          %s1175 = scalar_lea.vmem %s1, %s1174
          %s1176 = scalar_lea.vmem [#allocation2], 15
          // Predicated region
          $region523: #{tpu_custom_call.1} parent=71 // pred_check
            _
          $region524: #{tpu_custom_call.1} parent=71 // pred_check_branch
            %1178 = sbr.rel target = $region526
          $region525: #{tpu_custom_call.1} parent=71 // pred_region
            // Predicated region
            $region538: #{tpu_custom_call.1} parent=525 // pred_check
              _
            $region539: #{tpu_custom_call.1} parent=525 // pred_check_branch
              %1194 = sbr.rel (0) target = $region541
            $region540: #{tpu_custom_call.1} parent=525 // pred_region
              %s1196 = ssub.s32 2, 1
              loop: start=0, step=1, limit=1
              $region542: #{tpu_custom_call.1} parent=540 // loop_pre_header
                _
              $region543: #{tpu_custom_call.1} parent=540 // loop_header
                %s1198 = sphi 0, %s1202
                %p1199 = scmp.ge.s32.totalorder %s1198, 1
                %s1203 = sphi %s1175, %s1175
                %s1204 = sphi %s1176, %s1176
              $region544: #{tpu_custom_call.1} parent=540 // loop_header_branch
                %1201 = sbr.rel (%p1199) target = $region548
              $region545: #{tpu_custom_call.1} parent=540 // loop_body
                %v1205 = vld [vmem:[%s1203] sm:%s1196]
                %1206 = vst [vmem:[%s1204] sm:%s1196] %v1205
              $region546: #{tpu_custom_call.1} parent=540 // loop_footer
                %s1202 = sadd.s32 1, %s1198
              $region547: #{tpu_custom_call.1} parent=540 // loop_footer_branch
                %1197 = sbr.rel target = $region543
              $region548: #{tpu_custom_call.1} parent=540 // loop_exit
                _
            $region541: #{tpu_custom_call.1} parent=525 // pred_fallthru
              _
          $region526: #{tpu_custom_call.1} parent=71 // pred_fallthru
            _
          // Predicated region
          $region527: #{tpu_custom_call.1} parent=71 // pred_check
            _
          $region528: #{tpu_custom_call.1} parent=71 // pred_check_branch
            %1180 = sbr.rel (0) target = $region530
          $region529: #{tpu_custom_call.1} parent=71 // pred_region
            %s1182 = ssub.s32 2, 1
            loop: start=0, step=1, limit=1
            $region531: #{tpu_custom_call.1} parent=529 // loop_pre_header
              _
            $region532: #{tpu_custom_call.1} parent=529 // loop_header
              %s1184 = sphi 0, %s1188
              %p1185 = scmp.ge.s32.totalorder %s1184, 1
              %s1189 = sphi %s1175, %s1175
              %s1190 = sphi %s1176, %s1176
            $region533: #{tpu_custom_call.1} parent=529 // loop_header_branch
              %1187 = sbr.rel (%p1185) target = $region537
            $region534: #{tpu_custom_call.1} parent=529 // loop_body
              %v1191 = vld [vmem:[%s1189] sm:%s1182]
              %1192 = vst [vmem:[%s1190] sm:%s1182] %v1191
            $region535: #{tpu_custom_call.1} parent=529 // loop_footer
              %s1188 = sadd.s32 1, %s1184
            $region536: #{tpu_custom_call.1} parent=529 // loop_footer_branch
              %1183 = sbr.rel target = $region532
            $region537: #{tpu_custom_call.1} parent=529 // loop_exit
              _
          $region530: #{tpu_custom_call.1} parent=71 // pred_fallthru
            _
          // Predicated region
          $region549: #{tpu_custom_call.1} parent=71 // pred_check
            _
          $region550: #{tpu_custom_call.1} parent=71 // pred_check_branch
            %1209 = sbr.rel (0) target = $region552
          $region551: #{tpu_custom_call.1} parent=71 // pred_region
            %1210 = vsyncadd [#allocation3], 16
          $region552: #{tpu_custom_call.1} parent=71 // pred_fallthru
            _
          %s1211 = smul.u32 1, 1
          %s1212 = sshll.u32 %s1211, 4
          %1213 = dma.done [#allocation3], %s1212
          %s1214 = sshll.u32 %s1211, 4
          %1215 = dma.done [#allocation3], %s1214
          %s1216 = sshll.u32 %s1211, 4
          %1217 = dma.done [#allocation3], %s1216
          %s1218 = sshll.u32 %s1211, 4
          %1219 = dma.done [#allocation3], %s1218
          %s1220 = sshll.u32 %s1211, 4
          %1221 = dma.done [#allocation3], %s1220
          %s1222 = sshll.u32 %s1211, 4
          %1223 = dma.done [#allocation3], %s1222
          %s1224 = sshll.u32 %s1211, 4
          %1225 = dma.done [#allocation3], %s1224
          %s1226 = sshll.u32 %s1211, 4
          %1227 = dma.done [#allocation3], %s1226
          %s1228 = sshll.u32 %s1211, 4
          %1229 = dma.done [#allocation3], %s1228
          %s1230 = sshll.u32 %s1211, 4
          %1231 = dma.done [#allocation3], %s1230
          %s1232 = sshll.u32 %s1211, 4
          %1233 = dma.done [#allocation3], %s1232
          %s1234 = sshll.u32 %s1211, 4
          %1235 = dma.done [#allocation3], %s1234
          %s1236 = sshll.u32 %s1211, 4
          %1237 = dma.done [#allocation3], %s1236
          %s1238 = sshll.u32 %s1211, 4
          %1239 = dma.done [#allocation3], %s1238
          %s1240 = sshll.u32 %s1211, 4
          %1241 = dma.done [#allocation3], %s1240
          %s1242 = sshll.u32 %s1211, 4
          %1243 = dma.done [#allocation3], %s1242
        $region72: #{tpu_custom_call.1} parent=67 // pred_fallthru
          _
        %v1244 = vld [vmem:[#allocation2] sm:$0xff]
        %v1245 = vld [vmem:[#allocation2 + $0x8] sm:$0xff]
        %v1246 = vld [vmem:[%s559] sm:$0xff]
        %v1247 = vld [vmem:[%s559 + $0x8] sm:$0xff]
        %v1248 = vld [vmem:[%s559 + $0x10] sm:$0xff]
        %v1249 = vld [vmem:[%s559 + $0x18] sm:$0xff]
        %v1250 = vld [vmem:[%s562] sm:$0x1]
        %v1252 = vperm.slane %v1250, 0
        %vm1254 = vcmask 261120
        %v1256 = vsel %vm1254, %v1244, 0
        %v1259 = vsel %vm1254, %v1245, 0
        %1261 = vmatpush.msra.mxu0 0.0
        %1262 = vmatpush.msra.mxu0 0.0
        %1263 = vmatpush.msra.mxu0 0.0
        %1264 = vmatpush.msra.mxu0 0.0
        %1265 = vmatpush.msra.mxu0 0.0
        %1266 = vmatpush.msra.mxu0 0.0
        %1267 = vmatpush.msra.mxu0 0.0
        %1268 = vmatpush.msra.mxu0 0.0
        %1269 = vmatpush.msra.mxu0 0.0
        %1270 = vmatpush.msra.mxu0 0.0
        %1271 = vmatpush.msra.mxu0 0.0
        %1272 = vmatpush.msra.mxu0 0.0
        %1273 = vmatpush.msra.mxu0 %v1249
        %1274 = vmatpush.msra.mxu0 %v1248
        %1275 = vmatpush.msra.mxu0 %v1247
        %1276 = vmatpush.msra.mxu0 %v1246
        %1277 = vmatmul.f32.gmra.mxu0 %v1256
        %v1278 = vpop.f32.mrf.mxu0
        %v1279 = vadd.f32 %v1252, %v1278
        %1280 = vmatmul.f32.gmra.mxu0 %v1259
        %v1281 = vpop.f32.mrf.mxu0
        %v1282 = vadd.f32 %v1252, %v1281
        %1283 = vdwg.mxu0
        %1285 = vrot.lane.b32.xlu0 %v1279, 96
        %v1286 = vpop.permute.xlu0 %1285
        %vm1287 = vcmask 64512
        %v1288 = vsel %vm1287, %v1279, 0
        %v1290 = vsel %vm1287, %v1286, 0
        %1292 = vmatpush.xpose.msra.mxu0 0.0
        %1293 = vmatpush.xpose.msra.mxu0 0.0
        %1294 = vmatpush.xpose.msra.mxu0 0.0
        %1295 = vmatpush.xpose.msra.mxu0 0.0
        %1296 = vmatpush.xpose.msra.mxu0 0.0
        %1297 = vmatpush.xpose.msra.mxu0 0.0
        %1298 = vmatpush.xpose.msra.mxu0 0.0
        %1299 = vmatpush.xpose.msra.mxu0 0.0
        %1300 = vmatpush.xpose.msra.mxu0 0.0
        %1301 = vmatpush.xpose.msra.mxu0 0.0
        %1302 = vmatpush.xpose.msra.mxu0 0.0
        %1303 = vmatpush.xpose.msra.mxu0 0.0
        %1304 = vmatpush.xpose.msra.mxu0 0.0
        %1305 = vmatpush.xpose.msra.mxu0 0.0
        %1306 = vmatpush.xpose.msra.mxu0 0.0
        %1307 = vmatpush.xpose.msra.mxu0 %v1290
        %1308 = vmatmul.f32.gmra.mxu0 %v1288
        %v1309 = vpop.f32.mrf.mxu0
        %v1310 = vadd.f32 0.0, %v1309
        %1311 = vdwg.mxu0
        %1313 = vrot.lane.b32.xlu0 %v1282, 96
        %v1314 = vpop.permute.xlu0 %1313
        %v1315 = vsel %vm1287, %v1282, 0
        %v1317 = vsel %vm1287, %v1314, 0
        %1319 = vmatpush.xpose.msra.mxu0 0.0
        %1320 = vmatpush.xpose.msra.mxu0 0.0
        %1321 = vmatpush.xpose.msra.mxu0 0.0
        %1322 = vmatpush.xpose.msra.mxu0 0.0
        %1323 = vmatpush.xpose.msra.mxu0 0.0
        %1324 = vmatpush.xpose.msra.mxu0 0.0
        %1325 = vmatpush.xpose.msra.mxu0 0.0
        %1326 = vmatpush.xpose.msra.mxu0 0.0
        %1327 = vmatpush.xpose.msra.mxu0 0.0
        %1328 = vmatpush.xpose.msra.mxu0 0.0
        %1329 = vmatpush.xpose.msra.mxu0 0.0
        %1330 = vmatpush.xpose.msra.mxu0 0.0
        %1331 = vmatpush.xpose.msra.mxu0 0.0
        %1332 = vmatpush.xpose.msra.mxu0 0.0
        %1333 = vmatpush.xpose.msra.mxu0 0.0
        %1334 = vmatpush.xpose.msra.mxu0 %v1317
        %1335 = vmatmul.f32.gmra.mxu0 %v1315
        %v1336 = vpop.f32.mrf.mxu0
        %v1337 = vadd.f32 0.0, %v1336
        %1338 = vdwg.mxu0
        %v1339 = vsel %vm1287, %v1310, -inf
        %1340 = vmax.xlane.f32.xlu0 %v1339
        %v1341 = vpop.xlane.xlu0 %1340
        %v1342 = vsel %vm1287, %v1337, -inf
        %1343 = vmax.xlane.f32.xlu0 %v1342
        %v1344 = vpop.xlane.xlu0 %1343
        %v1345 = vsub.f32 %v1310, %v1341
        %v1346 = vsub.f32 %v1337, %v1344
        %v1347 = vmul.f32 %v1345, 1.442695
        %v1348 = vpow.pop %v1347
        %v1349 = vmul.f32 %v1346, 1.442695
        %v1350 = vpow.pop %v1349
        %v1351 = vsel %vm1287, %v1348, 0.0
        %1352 = vadd.xlane.f32.xlu0 %v1351
        %v1353 = vpop.xlane.xlu0 %1352
        %v1354 = vsel %vm1287, %v1350, 0.0
        %1355 = vadd.xlane.f32.xlu0 %v1354
        %v1356 = vpop.xlane.xlu0 %1355
        %1357 = vrot.lane.b32.xlu0 %v1279, 64
        %v1358 = vpop.permute.xlu0 %1357
        %v1361 = vsel %vm1287, %v1348, 0
        %1363 = vmatpush.msra.mxu0 0.0
        %1364 = vmatpush.msra.mxu0 0.0
        %1365 = vmatpush.msra.mxu0 0.0
        %1366 = vmatpush.msra.mxu0 0.0
        %1367 = vmatpush.msra.mxu0 0.0
        %1368 = vmatpush.msra.mxu0 0.0
        %1369 = vmatpush.msra.mxu0 0.0
        %1370 = vmatpush.msra.mxu0 0.0
        %1371 = vmatpush.msra.mxu0 0.0
        %1372 = vmatpush.msra.mxu0 0.0
        %1373 = vmatpush.msra.mxu0 0.0
        %1374 = vmatpush.msra.mxu0 0.0
        %1375 = vmatpush.msra.mxu0 0.0
        %1376 = vmatpush.msra.mxu0 0.0
        %1377 = vmatpush.msra.mxu0 0.0
        %1378 = vmatpush.msra.mxu0 %v1358
        %1379 = vmatmul.f32.gmra.mxu0 %v1361
        %v1380 = vpop.f32.mrf.mxu0
        %v1381 = vadd.f32 0.0, %v1380
        %1382 = vdwg.mxu0
        %1383 = vrot.lane.b32.xlu0 %v1282, 64
        %v1384 = vpop.permute.xlu0 %1383
        %v1387 = vsel %vm1287, %v1350, 0
        %1389 = vmatpush.msra.mxu0 0.0
        %1390 = vmatpush.msra.mxu0 0.0
        %1391 = vmatpush.msra.mxu0 0.0
        %1392 = vmatpush.msra.mxu0 0.0
        %1393 = vmatpush.msra.mxu0 0.0
        %1394 = vmatpush.msra.mxu0 0.0
        %1395 = vmatpush.msra.mxu0 0.0
        %1396 = vmatpush.msra.mxu0 0.0
        %1397 = vmatpush.msra.mxu0 0.0
        %1398 = vmatpush.msra.mxu0 0.0
        %1399 = vmatpush.msra.mxu0 0.0
        %1400 = vmatpush.msra.mxu0 0.0
        %1401 = vmatpush.msra.mxu0 0.0
        %1402 = vmatpush.msra.mxu0 0.0
        %1403 = vmatpush.msra.mxu0 0.0
        %1404 = vmatpush.msra.mxu0 %v1384
        %1405 = vmatmul.f32.gmra.mxu0 %v1387
        %v1406 = vpop.f32.mrf.mxu0
        %v1407 = vadd.f32 0.0, %v1406
        %1408 = vdwg.mxu0
        %v1409 = vrcp.pop %v1353
        %v1410 = vmul.f32 %v1353, %v1409
        %v1411 = vsub.f32 1.0, %v1410
        %v1412 = vmul.f32 %v1409, %v1411
        %v1413 = vadd.f32 %v1409, %v1412
        %vm1414 = vweird.f32 %v1353
        %vm1415 = vweird.f32 %v1409
        %vm1416 = vmor %vm1414, %vm1415
        %v1417 = vsel %vm1416, %v1409, %v1413
        %v1418 = vand.u32 2147483647, %v1353
        %vm1419 = vcmp.eq.f32.partialorder %v1418, 8.507059e+37
        %v1420 = vand.u32 %v1353, 2147483648
        %v1421 = vor.u32 1.1754944e-38, %v1420
        %v1422 = vsel %vm1419, %v1421, %v1417
        %v1423 = vmul.f32 %v1381, %v1422
        %v1424 = vrcp.pop %v1356
        %v1425 = vmul.f32 %v1356, %v1424
        %v1426 = vsub.f32 1.0, %v1425
        %v1427 = vmul.f32 %v1424, %v1426
        %v1428 = vadd.f32 %v1424, %v1427
        %vm1429 = vweird.f32 %v1356
        %vm1430 = vweird.f32 %v1424
        %vm1431 = vmor %vm1429, %vm1430
        %v1432 = vsel %vm1431, %v1424, %v1428
        %v1433 = vand.u32 2147483647, %v1356
        %vm1434 = vcmp.eq.f32.partialorder %v1433, 8.507059e+37
        %v1435 = vand.u32 %v1356, 2147483648
        %v1436 = vor.u32 1.1754944e-38, %v1435
        %v1437 = vsel %vm1434, %v1436, %v1432
        %v1438 = vmul.f32 %v1407, %v1437
        %1439 = vrot.lane.b32.xlu0 %v1279, 120
        %v1440 = vpop.permute.xlu0 %1439
        %1441 = vrot.lane.b32.xlu0 %v1279, 88
        %v1442 = vpop.permute.xlu0 %1441
        %v1443 = vsel %vm1287, %v1440, 0
        %v1445 = vsel %vm1287, %v1442, 0
        %1447 = vmatpush.xpose.msra.mxu0 0.0
        %1448 = vmatpush.xpose.msra.mxu0 0.0
        %1449 = vmatpush.xpose.msra.mxu0 0.0
        %1450 = vmatpush.xpose.msra.mxu0 0.0
        %1451 = vmatpush.xpose.msra.mxu0 0.0
        %1452 = vmatpush.xpose.msra.mxu0 0.0
        %1453 = vmatpush.xpose.msra.mxu0 0.0
        %1454 = vmatpush.xpose.msra.mxu0 0.0
        %1455 = vmatpush.xpose.msra.mxu0 0.0
        %1456 = vmatpush.xpose.msra.mxu0 0.0
        %1457 = vmatpush.xpose.msra.mxu0 0.0
        %1458 = vmatpush.xpose.msra.mxu0 0.0
        %1459 = vmatpush.xpose.msra.mxu0 0.0
        %1460 = vmatpush.xpose.msra.mxu0 0.0
        %1461 = vmatpush.xpose.msra.mxu0 0.0
        %1462 = vmatpush.xpose.msra.mxu0 %v1445
        %1463 = vmatmul.f32.gmra.mxu0 %v1443
        %v1464 = vpop.f32.mrf.mxu0
        %v1465 = vadd.f32 0.0, %v1464
        %1466 = vdwg.mxu0
        %1467 = vrot.lane.b32.xlu0 %v1282, 120
        %v1468 = vpop.permute.xlu0 %1467
        %1469 = vrot.lane.b32.xlu0 %v1282, 88
        %v1470 = vpop.permute.xlu0 %1469
        %v1471 = vsel %vm1287, %v1468, 0
        %v1473 = vsel %vm1287, %v1470, 0
        %1475 = vmatpush.xpose.msra.mxu0 0.0
        %1476 = vmatpush.xpose.msra.mxu0 0.0
        %1477 = vmatpush.xpose.msra.mxu0 0.0
        %1478 = vmatpush.xpose.msra.mxu0 0.0
        %1479 = vmatpush.xpose.msra.mxu0 0.0
        %1480 = vmatpush.xpose.msra.mxu0 0.0
        %1481 = vmatpush.xpose.msra.mxu0 0.0
        %1482 = vmatpush.xpose.msra.mxu0 0.0
        %1483 = vmatpush.xpose.msra.mxu0 0.0
        %1484 = vmatpush.xpose.msra.mxu0 0.0
        %1485 = vmatpush.xpose.msra.mxu0 0.0
        %1486 = vmatpush.xpose.msra.mxu0 0.0
        %1487 = vmatpush.xpose.msra.mxu0 0.0
        %1488 = vmatpush.xpose.msra.mxu0 0.0
        %1489 = vmatpush.xpose.msra.mxu0 0.0
        %1490 = vmatpush.xpose.msra.mxu0 %v1473
        %1491 = vmatmul.f32.gmra.mxu0 %v1471
        %v1492 = vpop.f32.mrf.mxu0
        %v1493 = vadd.f32 0.0, %v1492
        %1494 = vdwg.mxu0
        %v1495 = vsel %vm1287, %v1465, -inf
        %1496 = vmax.xlane.f32.xlu0 %v1495
        %v1497 = vpop.xlane.xlu0 %1496
        %v1498 = vsel %vm1287, %v1493, -inf
        %1499 = vmax.xlane.f32.xlu0 %v1498
        %v1500 = vpop.xlane.xlu0 %1499
        %v1501 = vsub.f32 %v1465, %v1497
        %v1502 = vsub.f32 %v1493, %v1500
        %v1503 = vmul.f32 %v1501, 1.442695
        %v1504 = vpow.pop %v1503
        %v1505 = vmul.f32 %v1502, 1.442695
        %v1506 = vpow.pop %v1505
        %v1507 = vsel %vm1287, %v1504, 0.0
        %1508 = vadd.xlane.f32.xlu0 %v1507
        %v1509 = vpop.xlane.xlu0 %1508
        %v1510 = vsel %vm1287, %v1506, 0.0
        %1511 = vadd.xlane.f32.xlu0 %v1510
        %v1512 = vpop.xlane.xlu0 %1511
        %1513 = vrot.lane.b32.xlu0 %v1279, 56
        %v1514 = vpop.permute.xlu0 %1513
        %v1517 = vsel %vm1287, %v1504, 0
        %1519 = vmatpush.msra.mxu0 0.0
        %1520 = vmatpush.msra.mxu0 0.0
        %1521 = vmatpush.msra.mxu0 0.0
        %1522 = vmatpush.msra.mxu0 0.0
        %1523 = vmatpush.msra.mxu0 0.0
        %1524 = vmatpush.msra.mxu0 0.0
        %1525 = vmatpush.msra.mxu0 0.0
        %1526 = vmatpush.msra.mxu0 0.0
        %1527 = vmatpush.msra.mxu0 0.0
        %1528 = vmatpush.msra.mxu0 0.0
        %1529 = vmatpush.msra.mxu0 0.0
        %1530 = vmatpush.msra.mxu0 0.0
        %1531 = vmatpush.msra.mxu0 0.0
        %1532 = vmatpush.msra.mxu0 0.0
        %1533 = vmatpush.msra.mxu0 0.0
        %1534 = vmatpush.msra.mxu0 %v1514
        %1535 = vmatmul.f32.gmra.mxu0 %v1517
        %v1536 = vpop.f32.mrf.mxu0
        %v1537 = vadd.f32 0.0, %v1536
        %1538 = vdwg.mxu0
        %1539 = vrot.lane.b32.xlu0 %v1282, 56
        %v1540 = vpop.permute.xlu0 %1539
        %v1543 = vsel %vm1287, %v1506, 0
        %1545 = vmatpush.msra.mxu0 0.0
        %1546 = vmatpush.msra.mxu0 0.0
        %1547 = vmatpush.msra.mxu0 0.0
        %1548 = vmatpush.msra.mxu0 0.0
        %1549 = vmatpush.msra.mxu0 0.0
        %1550 = vmatpush.msra.mxu0 0.0
        %1551 = vmatpush.msra.mxu0 0.0
        %1552 = vmatpush.msra.mxu0 0.0
        %1553 = vmatpush.msra.mxu0 0.0
        %1554 = vmatpush.msra.mxu0 0.0
        %1555 = vmatpush.msra.mxu0 0.0
        %1556 = vmatpush.msra.mxu0 0.0
        %1557 = vmatpush.msra.mxu0 0.0
        %1558 = vmatpush.msra.mxu0 0.0
        %1559 = vmatpush.msra.mxu0 0.0
        %1560 = vmatpush.msra.mxu0 %v1540
        %1561 = vmatmul.f32.gmra.mxu0 %v1543
        %v1562 = vpop.f32.mrf.mxu0
        %v1563 = vadd.f32 0.0, %v1562
        %1564 = vdwg.mxu0
        %v1565 = vrcp.pop %v1509
        %v1566 = vmul.f32 %v1509, %v1565
        %v1567 = vsub.f32 1.0, %v1566
        %v1568 = vmul.f32 %v1565, %v1567
        %v1569 = vadd.f32 %v1565, %v1568
        %vm1570 = vweird.f32 %v1509
        %vm1571 = vweird.f32 %v1565
        %vm1572 = vmor %vm1570, %vm1571
        %v1573 = vsel %vm1572, %v1565, %v1569
        %v1574 = vand.u32 2147483647, %v1509
        %vm1575 = vcmp.eq.f32.partialorder %v1574, 8.507059e+37
        %v1576 = vand.u32 %v1509, 2147483648
        %v1577 = vor.u32 1.1754944e-38, %v1576
        %v1578 = vsel %vm1575, %v1577, %v1573
        %v1579 = vmul.f32 %v1537, %v1578
        %v1580 = vrcp.pop %v1512
        %v1581 = vmul.f32 %v1512, %v1580
        %v1582 = vsub.f32 1.0, %v1581
        %v1583 = vmul.f32 %v1580, %v1582
        %v1584 = vadd.f32 %v1580, %v1583
        %vm1585 = vweird.f32 %v1512
        %vm1586 = vweird.f32 %v1580
        %vm1587 = vmor %vm1585, %vm1586
        %v1588 = vsel %vm1587, %v1580, %v1584
        %v1589 = vand.u32 2147483647, %v1512
        %vm1590 = vcmp.eq.f32.partialorder %v1589, 8.507059e+37
        %v1591 = vand.u32 %v1512, 2147483648
        %v1592 = vor.u32 1.1754944e-38, %v1591
        %v1593 = vsel %vm1590, %v1592, %v1588
        %v1594 = vmul.f32 %v1563, %v1593
        %1595 = vrot.lane.b32.xlu0 %v1279, 112
        %v1596 = vpop.permute.xlu0 %1595
        %1597 = vrot.lane.b32.xlu0 %v1279, 80
        %v1598 = vpop.permute.xlu0 %1597
        %v1599 = vsel %vm1287, %v1596, 0
        %v1601 = vsel %vm1287, %v1598, 0
        %1603 = vmatpush.xpose.msra.mxu0 0.0
        %1604 = vmatpush.xpose.msra.mxu0 0.0
        %1605 = vmatpush.xpose.msra.mxu0 0.0
        %1606 = vmatpush.xpose.msra.mxu0 0.0
        %1607 = vmatpush.xpose.msra.mxu0 0.0
        %1608 = vmatpush.xpose.msra.mxu0 0.0
        %1609 = vmatpush.xpose.msra.mxu0 0.0
        %1610 = vmatpush.xpose.msra.mxu0 0.0
        %1611 = vmatpush.xpose.msra.mxu0 0.0
        %1612 = vmatpush.xpose.msra.mxu0 0.0
        %1613 = vmatpush.xpose.msra.mxu0 0.0
        %1614 = vmatpush.xpose.msra.mxu0 0.0
        %1615 = vmatpush.xpose.msra.mxu0 0.0
        %1616 = vmatpush.xpose.msra.mxu0 0.0
        %1617 = vmatpush.xpose.msra.mxu0 0.0
        %1618 = vmatpush.xpose.msra.mxu0 %v1601
        %1619 = vmatmul.f32.gmra.mxu0 %v1599
        %v1620 = vpop.f32.mrf.mxu0
        %v1621 = vadd.f32 0.0, %v1620
        %1622 = vdwg.mxu0
        %1623 = vrot.lane.b32.xlu0 %v1282, 112
        %v1624 = vpop.permute.xlu0 %1623
        %1625 = vrot.lane.b32.xlu0 %v1282, 80
        %v1626 = vpop.permute.xlu0 %1625
        %v1627 = vsel %vm1287, %v1624, 0
        %v1629 = vsel %vm1287, %v1626, 0
        %1631 = vmatpush.xpose.msra.mxu0 0.0
        %1632 = vmatpush.xpose.msra.mxu0 0.0
        %1633 = vmatpush.xpose.msra.mxu0 0.0
        %1634 = vmatpush.xpose.msra.mxu0 0.0
        %1635 = vmatpush.xpose.msra.mxu0 0.0
        %1636 = vmatpush.xpose.msra.mxu0 0.0
        %1637 = vmatpush.xpose.msra.mxu0 0.0
        %1638 = vmatpush.xpose.msra.mxu0 0.0
        %1639 = vmatpush.xpose.msra.mxu0 0.0
        %1640 = vmatpush.xpose.msra.mxu0 0.0
        %1641 = vmatpush.xpose.msra.mxu0 0.0
        %1642 = vmatpush.xpose.msra.mxu0 0.0
        %1643 = vmatpush.xpose.msra.mxu0 0.0
        %1644 = vmatpush.xpose.msra.mxu0 0.0
        %1645 = vmatpush.xpose.msra.mxu0 0.0
        %1646 = vmatpush.xpose.msra.mxu0 %v1629
        %1647 = vmatmul.f32.gmra.mxu0 %v1627
        %v1648 = vpop.f32.mrf.mxu0
        %v1649 = vadd.f32 0.0, %v1648
        %1650 = vdwg.mxu0
        %v1651 = vsel %vm1287, %v1621, -inf
        %1652 = vmax.xlane.f32.xlu0 %v1651
        %v1653 = vpop.xlane.xlu0 %1652
        %v1654 = vsel %vm1287, %v1649, -inf
        %1655 = vmax.xlane.f32.xlu0 %v1654
        %v1656 = vpop.xlane.xlu0 %1655
        %v1657 = vsub.f32 %v1621, %v1653
        %v1658 = vsub.f32 %v1649, %v1656
        %v1659 = vmul.f32 %v1657, 1.442695
        %v1660 = vpow.pop %v1659
        %v1661 = vmul.f32 %v1658, 1.442695
        %v1662 = vpow.pop %v1661
        %v1663 = vsel %vm1287, %v1660, 0.0
        %1664 = vadd.xlane.f32.xlu0 %v1663
        %v1665 = vpop.xlane.xlu0 %1664
        %v1666 = vsel %vm1287, %v1662, 0.0
        %1667 = vadd.xlane.f32.xlu0 %v1666
        %v1668 = vpop.xlane.xlu0 %1667
        %1669 = vrot.lane.b32.xlu0 %v1279, 48
        %v1670 = vpop.permute.xlu0 %1669
        %v1673 = vsel %vm1287, %v1660, 0
        %1675 = vmatpush.msra.mxu0 0.0
        %1676 = vmatpush.msra.mxu0 0.0
        %1677 = vmatpush.msra.mxu0 0.0
        %1678 = vmatpush.msra.mxu0 0.0
        %1679 = vmatpush.msra.mxu0 0.0
        %1680 = vmatpush.msra.mxu0 0.0
        %1681 = vmatpush.msra.mxu0 0.0
        %1682 = vmatpush.msra.mxu0 0.0
        %1683 = vmatpush.msra.mxu0 0.0
        %1684 = vmatpush.msra.mxu0 0.0
        %1685 = vmatpush.msra.mxu0 0.0
        %1686 = vmatpush.msra.mxu0 0.0
        %1687 = vmatpush.msra.mxu0 0.0
        %1688 = vmatpush.msra.mxu0 0.0
        %1689 = vmatpush.msra.mxu0 0.0
        %1690 = vmatpush.msra.mxu0 %v1670
        %1691 = vmatmul.f32.gmra.mxu0 %v1673
        %v1692 = vpop.f32.mrf.mxu0
        %v1693 = vadd.f32 0.0, %v1692
        %1694 = vdwg.mxu0
        %1695 = vrot.lane.b32.xlu0 %v1282, 48
        %v1696 = vpop.permute.xlu0 %1695
        %v1699 = vsel %vm1287, %v1662, 0
        %1701 = vmatpush.msra.mxu0 0.0
        %1702 = vmatpush.msra.mxu0 0.0
        %1703 = vmatpush.msra.mxu0 0.0
        %1704 = vmatpush.msra.mxu0 0.0
        %1705 = vmatpush.msra.mxu0 0.0
        %1706 = vmatpush.msra.mxu0 0.0
        %1707 = vmatpush.msra.mxu0 0.0
        %1708 = vmatpush.msra.mxu0 0.0
        %1709 = vmatpush.msra.mxu0 0.0
        %1710 = vmatpush.msra.mxu0 0.0
        %1711 = vmatpush.msra.mxu0 0.0
        %1712 = vmatpush.msra.mxu0 0.0
        %1713 = vmatpush.msra.mxu0 0.0
        %1714 = vmatpush.msra.mxu0 0.0
        %1715 = vmatpush.msra.mxu0 0.0
        %1716 = vmatpush.msra.mxu0 %v1696
        %1717 = vmatmul.f32.gmra.mxu0 %v1699
        %v1718 = vpop.f32.mrf.mxu0
        %v1719 = vadd.f32 0.0, %v1718
        %1720 = vdwg.mxu0
        %v1721 = vrcp.pop %v1665
        %v1722 = vmul.f32 %v1665, %v1721
        %v1723 = vsub.f32 1.0, %v1722
        %v1724 = vmul.f32 %v1721, %v1723
        %v1725 = vadd.f32 %v1721, %v1724
        %vm1726 = vweird.f32 %v1665
        %vm1727 = vweird.f32 %v1721
        %vm1728 = vmor %vm1726, %vm1727
        %v1729 = vsel %vm1728, %v1721, %v1725
        %v1730 = vand.u32 2147483647, %v1665
        %vm1731 = vcmp.eq.f32.partialorder %v1730, 8.507059e+37
        %v1732 = vand.u32 %v1665, 2147483648
        %v1733 = vor.u32 1.1754944e-38, %v1732
        %v1734 = vsel %vm1731, %v1733, %v1729
        %v1735 = vmul.f32 %v1693, %v1734
        %v1736 = vrcp.pop %v1668
        %v1737 = vmul.f32 %v1668, %v1736
        %v1738 = vsub.f32 1.0, %v1737
        %v1739 = vmul.f32 %v1736, %v1738
        %v1740 = vadd.f32 %v1736, %v1739
        %vm1741 = vweird.f32 %v1668
        %vm1742 = vweird.f32 %v1736
        %vm1743 = vmor %vm1741, %vm1742
        %v1744 = vsel %vm1743, %v1736, %v1740
        %v1745 = vand.u32 2147483647, %v1668
        %vm1746 = vcmp.eq.f32.partialorder %v1745, 8.507059e+37
        %v1747 = vand.u32 %v1668, 2147483648
        %v1748 = vor.u32 1.1754944e-38, %v1747
        %v1749 = vsel %vm1746, %v1748, %v1744
        %v1750 = vmul.f32 %v1719, %v1749
        %1751 = vrot.lane.b32.xlu0 %v1279, 104
        %v1752 = vpop.permute.xlu0 %1751
        %1753 = vrot.lane.b32.xlu0 %v1279, 72
        %v1754 = vpop.permute.xlu0 %1753
        %v1755 = vsel %vm1287, %v1752, 0
        %v1757 = vsel %vm1287, %v1754, 0
        %1759 = vmatpush.xpose.msra.mxu0 0.0
        %1760 = vmatpush.xpose.msra.mxu0 0.0
        %1761 = vmatpush.xpose.msra.mxu0 0.0
        %1762 = vmatpush.xpose.msra.mxu0 0.0
        %1763 = vmatpush.xpose.msra.mxu0 0.0
        %1764 = vmatpush.xpose.msra.mxu0 0.0
        %1765 = vmatpush.xpose.msra.mxu0 0.0
        %1766 = vmatpush.xpose.msra.mxu0 0.0
        %1767 = vmatpush.xpose.msra.mxu0 0.0
        %1768 = vmatpush.xpose.msra.mxu0 0.0
        %1769 = vmatpush.xpose.msra.mxu0 0.0
        %1770 = vmatpush.xpose.msra.mxu0 0.0
        %1771 = vmatpush.xpose.msra.mxu0 0.0
        %1772 = vmatpush.xpose.msra.mxu0 0.0
        %1773 = vmatpush.xpose.msra.mxu0 0.0
        %1774 = vmatpush.xpose.msra.mxu0 %v1757
        %1775 = vmatmul.f32.gmra.mxu0 %v1755
        %v1776 = vpop.f32.mrf.mxu0
        %v1777 = vadd.f32 0.0, %v1776
        %1778 = vdwg.mxu0
        %1779 = vrot.lane.b32.xlu0 %v1282, 104
        %v1780 = vpop.permute.xlu0 %1779
        %1781 = vrot.lane.b32.xlu0 %v1282, 72
        %v1782 = vpop.permute.xlu0 %1781
        %v1783 = vsel %vm1287, %v1780, 0
        %v1785 = vsel %vm1287, %v1782, 0
        %1787 = vmatpush.xpose.msra.mxu0 0.0
        %1788 = vmatpush.xpose.msra.mxu0 0.0
        %1789 = vmatpush.xpose.msra.mxu0 0.0
        %1790 = vmatpush.xpose.msra.mxu0 0.0
        %1791 = vmatpush.xpose.msra.mxu0 0.0
        %1792 = vmatpush.xpose.msra.mxu0 0.0
        %1793 = vmatpush.xpose.msra.mxu0 0.0
        %1794 = vmatpush.xpose.msra.mxu0 0.0
        %1795 = vmatpush.xpose.msra.mxu0 0.0
        %1796 = vmatpush.xpose.msra.mxu0 0.0
        %1797 = vmatpush.xpose.msra.mxu0 0.0
        %1798 = vmatpush.xpose.msra.mxu0 0.0
        %1799 = vmatpush.xpose.msra.mxu0 0.0
        %1800 = vmatpush.xpose.msra.mxu0 0.0
        %1801 = vmatpush.xpose.msra.mxu0 0.0
        %1802 = vmatpush.xpose.msra.mxu0 %v1785
        %1803 = vmatmul.f32.gmra.mxu0 %v1783
        %v1804 = vpop.f32.mrf.mxu0
        %v1805 = vadd.f32 0.0, %v1804
        %1806 = vdwg.mxu0
        %v1807 = vsel %vm1287, %v1777, -inf
        %1808 = vmax.xlane.f32.xlu0 %v1807
        %v1809 = vpop.xlane.xlu0 %1808
        %v1810 = vsel %vm1287, %v1805, -inf
        %1811 = vmax.xlane.f32.xlu0 %v1810
        %v1812 = vpop.xlane.xlu0 %1811
        %v1813 = vsub.f32 %v1777, %v1809
        %v1814 = vsub.f32 %v1805, %v1812
        %v1815 = vmul.f32 %v1813, 1.442695
        %v1816 = vpow.pop %v1815
        %v1817 = vmul.f32 %v1814, 1.442695
        %v1818 = vpow.pop %v1817
        %v1819 = vsel %vm1287, %v1816, 0.0
        %1820 = vadd.xlane.f32.xlu0 %v1819
        %v1821 = vpop.xlane.xlu0 %1820
        %v1822 = vsel %vm1287, %v1818, 0.0
        %1823 = vadd.xlane.f32.xlu0 %v1822
        %v1824 = vpop.xlane.xlu0 %1823
        %1825 = vrot.lane.b32.xlu0 %v1279, 40
        %v1826 = vpop.permute.xlu0 %1825
        %v1829 = vsel %vm1287, %v1816, 0
        %1831 = vmatpush.msra.mxu0 0.0
        %1832 = vmatpush.msra.mxu0 0.0
        %1833 = vmatpush.msra.mxu0 0.0
        %1834 = vmatpush.msra.mxu0 0.0
        %1835 = vmatpush.msra.mxu0 0.0
        %1836 = vmatpush.msra.mxu0 0.0
        %1837 = vmatpush.msra.mxu0 0.0
        %1838 = vmatpush.msra.mxu0 0.0
        %1839 = vmatpush.msra.mxu0 0.0
        %1840 = vmatpush.msra.mxu0 0.0
        %1841 = vmatpush.msra.mxu0 0.0
        %1842 = vmatpush.msra.mxu0 0.0
        %1843 = vmatpush.msra.mxu0 0.0
        %1844 = vmatpush.msra.mxu0 0.0
        %1845 = vmatpush.msra.mxu0 0.0
        %1846 = vmatpush.msra.mxu0 %v1826
        %1847 = vmatmul.f32.gmra.mxu0 %v1829
        %v1848 = vpop.f32.mrf.mxu0
        %v1849 = vadd.f32 0.0, %v1848
        %1850 = vdwg.mxu0
        %1851 = vrot.lane.b32.xlu0 %v1282, 40
        %v1852 = vpop.permute.xlu0 %1851
        %v1855 = vsel %vm1287, %v1818, 0
        %1857 = vmatpush.msra.mxu0 0.0
        %1858 = vmatpush.msra.mxu0 0.0
        %1859 = vmatpush.msra.mxu0 0.0
        %1860 = vmatpush.msra.mxu0 0.0
        %1861 = vmatpush.msra.mxu0 0.0
        %1862 = vmatpush.msra.mxu0 0.0
        %1863 = vmatpush.msra.mxu0 0.0
        %1864 = vmatpush.msra.mxu0 0.0
        %1865 = vmatpush.msra.mxu0 0.0
        %1866 = vmatpush.msra.mxu0 0.0
        %1867 = vmatpush.msra.mxu0 0.0
        %1868 = vmatpush.msra.mxu0 0.0
        %1869 = vmatpush.msra.mxu0 0.0
        %1870 = vmatpush.msra.mxu0 0.0
        %1871 = vmatpush.msra.mxu0 0.0
        %1872 = vmatpush.msra.mxu0 %v1852
        %1873 = vmatmul.f32.gmra.mxu0 %v1855
        %v1874 = vpop.f32.mrf.mxu0
        %v1875 = vadd.f32 0.0, %v1874
        %1876 = vdwg.mxu0
        %v1877 = vrcp.pop %v1821
        %v1878 = vmul.f32 %v1821, %v1877
        %v1879 = vsub.f32 1.0, %v1878
        %v1880 = vmul.f32 %v1877, %v1879
        %v1881 = vadd.f32 %v1877, %v1880
        %vm1882 = vweird.f32 %v1821
        %vm1883 = vweird.f32 %v1877
        %vm1884 = vmor %vm1882, %vm1883
        %v1885 = vsel %vm1884, %v1877, %v1881
        %v1886 = vand.u32 2147483647, %v1821
        %vm1887 = vcmp.eq.f32.partialorder %v1886, 8.507059e+37
        %v1888 = vand.u32 %v1821, 2147483648
        %v1889 = vor.u32 1.1754944e-38, %v1888
        %v1890 = vsel %vm1887, %v1889, %v1885
        %v1891 = vmul.f32 %v1849, %v1890
        %v1892 = vrcp.pop %v1824
        %v1893 = vmul.f32 %v1824, %v1892
        %v1894 = vsub.f32 1.0, %v1893
        %v1895 = vmul.f32 %v1892, %v1894
        %v1896 = vadd.f32 %v1892, %v1895
        %vm1897 = vweird.f32 %v1824
        %vm1898 = vweird.f32 %v1892
        %vm1899 = vmor %vm1897, %vm1898
        %v1900 = vsel %vm1899, %v1892, %v1896
        %v1901 = vand.u32 2147483647, %v1824
        %vm1902 = vcmp.eq.f32.partialorder %v1901, 8.507059e+37
        %v1903 = vand.u32 %v1824, 2147483648
        %v1904 = vor.u32 1.1754944e-38, %v1903
        %v1905 = vsel %vm1902, %v1904, %v1900
        %v1906 = vmul.f32 %v1875, %v1905
        %1909 = vrot.lane.b32.xlu0 %v1579, 8
        %v1910 = vpop.permute.xlu0 %1909
        %1911 = vrot.lane.b32.xlu0 %v1594, 8
        %v1912 = vpop.permute.xlu0 %1911
        %1917 = vrot.lane.b32.xlu0 %v1735, 16
        %v1918 = vpop.permute.xlu0 %1917
        %1919 = vrot.lane.b32.xlu0 %v1750, 16
        %v1920 = vpop.permute.xlu0 %1919
        %1925 = vrot.lane.b32.xlu0 %v1891, 24
        %v1926 = vpop.permute.xlu0 %1925
        %1927 = vrot.lane.b32.xlu0 %v1906, 24
        %v1928 = vpop.permute.xlu0 %1927
        %v1931 = vsel %vm1287, %v1423, %v1910
        %v1932 = vsel %vm1287, %v1438, %v1912
        %vm1933 = vcmask 130048
        %v1934 = vsel %vm1933, %v1931, %v1918
        %v1935 = vsel %vm1933, %v1932, %v1920
        %vm1936 = vcmask 195584
        %v1937 = vsel %vm1936, %v1934, %v1926
        %v1938 = vsel %vm1936, %v1935, %v1928
        %v1939 = vld [vmem:[%s567] sm:$0xff]
        %v1940 = vld [vmem:[%s567 + $0x8] sm:$0xff]
        %v1941 = vld [vmem:[%s567 + $0x10] sm:$0xff]
        %v1942 = vld [vmem:[%s567 + $0x18] sm:$0xff]
        %v1943 = vld [vmem:[%s570] sm:$0x1]
        %v1945 = vperm.slane %v1943, 0
        %v1948 = vsel %vm1254, %v1937, 0
        %v1951 = vsel %vm1254, %v1938, 0
        %1953 = vmatpush.msra.mxu0 0.0
        %1954 = vmatpush.msra.mxu0 0.0
        %1955 = vmatpush.msra.mxu0 0.0
        %1956 = vmatpush.msra.mxu0 0.0
        %1957 = vmatpush.msra.mxu0 0.0
        %1958 = vmatpush.msra.mxu0 0.0
        %1959 = vmatpush.msra.mxu0 0.0
        %1960 = vmatpush.msra.mxu0 0.0
        %1961 = vmatpush.msra.mxu0 0.0
        %1962 = vmatpush.msra.mxu0 0.0
        %1963 = vmatpush.msra.mxu0 0.0
        %1964 = vmatpush.msra.mxu0 0.0
        %1965 = vmatpush.msra.mxu0 %v1942
        %1966 = vmatpush.msra.mxu0 %v1941
        %1967 = vmatpush.msra.mxu0 %v1940
        %1968 = vmatpush.msra.mxu0 %v1939
        %1969 = vmatmul.f32.gmra.mxu0 %v1948
        %v1970 = vpop.f32.mrf.mxu0
        %v1971 = vadd.f32 %v1945, %v1970
        %1972 = vmatmul.f32.gmra.mxu0 %v1951
        %v1973 = vpop.f32.mrf.mxu0
        %v1974 = vadd.f32 %v1945, %v1973
        %1975 = vdwg.mxu0
        %v1976 = vadd.f32 %v1244, %v1971
        %v1977 = vadd.f32 %v1245, %v1974
        %v1978 = vld [vmem:[%s573] sm:$0x1]
        %v1979 = vld [vmem:[%s576] sm:$0x1]
        %v1980 = vsel %vm1254, %v1976, 0.0
        %1981 = vadd.xlane.f32.xlu0 %v1980
        %v1982 = vpop.xlane.xlu0 %1981
        %v1983 = vsel %vm1254, %v1977, 0.0
        %1984 = vadd.xlane.f32.xlu0 %v1983
        %v1985 = vpop.xlane.xlu0 %1984
        %v1986 = vrcp.pop 32.0
        %v1987 = vmul.f32 32.0, %v1986
        %v1988 = vsub.f32 1.0, %v1987
        %v1989 = vmul.f32 %v1986, %v1988
        %v1990 = vadd.f32 %v1986, %v1989
        %vm1991 = vweird.f32 %v1986
        %v1992 = vsel %vm1991, %v1986, %v1990
        %v1993 = vmul.f32 %v1982, %v1992
        %v1994 = vmul.f32 %v1985, %v1992
        %v1995 = vsub.f32 %v1976, %v1993
        %v1996 = vsub.f32 %v1977, %v1994
        %v1997 = vmul.f32 %v1995, %v1995
        %v1998 = vmul.f32 %v1996, %v1996
        %v1999 = vsel %vm1254, %v1997, 0.0
        %2000 = vadd.xlane.f32.xlu0 %v1999
        %v2001 = vpop.xlane.xlu0 %2000
        %v2002 = vsel %vm1254, %v1998, 0.0
        %2003 = vadd.xlane.f32.xlu0 %v2002
        %v2004 = vpop.xlane.xlu0 %2003
        %v2005 = vmul.f32 %v2001, %v1992
        %v2006 = vmul.f32 %v2004, %v1992
        %v2007 = vadd.f32 %v2005, 1e-05
        %v2008 = vadd.f32 %v2006, 1e-05
        %v2009 = vrsqrt.pop %v2007
        %v2010 = vmul.f32 %v2009, %v2007
        %v2011 = vmul.f32 %v2010, %v2009
        %v2012 = vmul.f32 0.5, %v2011
        %v2013 = vsub.f32 1.5, %v2012
        %v2014 = vmul.f32 %v2009, %v2013
        %vm2015 = vweird.f32 %v2007
        %vm2016 = vweird.f32 %v2009
        %vm2017 = vmor %vm2015, %vm2016
        %v2018 = vsel %vm2017, %v2009, %v2014
        %v2019 = vrsqrt.pop %v2008
        %v2020 = vmul.f32 %v2019, %v2008
        %v2021 = vmul.f32 %v2020, %v2019
        %v2022 = vmul.f32 0.5, %v2021
        %v2023 = vsub.f32 1.5, %v2022
        %v2024 = vmul.f32 %v2019, %v2023
        %vm2025 = vweird.f32 %v2008
        %vm2026 = vweird.f32 %v2019
        %vm2027 = vmor %vm2025, %vm2026
        %v2028 = vsel %vm2027, %v2019, %v2024
        %v2029 = vmul.f32 %v1995, %v2018
        %v2030 = vmul.f32 %v1996, %v2028
        %v2032 = vperm.slane %v1978, 0
        %v2034 = vmul.f32 %v2029, %v2032
        %v2035 = vmul.f32 %v2030, %v2032
        %v2037 = vperm.slane %v1979, 0
        %v2039 = vadd.f32 %v2034, %v2037
        %v2040 = vadd.f32 %v2035, %v2037
        %v2041 = vld [vmem:[%s581] sm:$0xff]
        %v2042 = vld [vmem:[%s581 + $0x8] sm:$0xff]
        %v2043 = vld [vmem:[%s581 + $0x10] sm:$0xff]
        %v2044 = vld [vmem:[%s581 + $0x18] sm:$0xff]
        %v2045 = vld [vmem:[%s584] sm:$0x1]
        %v2047 = vperm.slane %v2045, 0
        %v2050 = vsel %vm1254, %v2039, 0
        %v2053 = vsel %vm1254, %v2040, 0
        %2055 = vmatpush.msra.mxu0 0.0
        %2056 = vmatpush.msra.mxu0 0.0
        %2057 = vmatpush.msra.mxu0 0.0
        %2058 = vmatpush.msra.mxu0 0.0
        %2059 = vmatpush.msra.mxu0 0.0
        %2060 = vmatpush.msra.mxu0 0.0
        %2061 = vmatpush.msra.mxu0 0.0
        %2062 = vmatpush.msra.mxu0 0.0
        %2063 = vmatpush.msra.mxu0 0.0
        %2064 = vmatpush.msra.mxu0 0.0
        %2065 = vmatpush.msra.mxu0 0.0
        %2066 = vmatpush.msra.mxu0 0.0
        %2067 = vmatpush.msra.mxu0 %v2044
        %2068 = vmatpush.msra.mxu0 %v2043
        %2069 = vmatpush.msra.mxu0 %v2042
        %2070 = vmatpush.msra.mxu0 %v2041
        %2071 = vmatmul.f32.gmra.mxu0 %v2050
        %v2072 = vpop.f32.mrf.mxu0
        %v2073 = vadd.f32 %v2047, %v2072
        %2074 = vmatmul.f32.gmra.mxu0 %v2053
        %v2075 = vpop.f32.mrf.mxu0
        %v2076 = vadd.f32 %v2047, %v2075
        %2077 = vdwg.mxu0
        %v2078 = vmax.f32 %v2073, 0.0
        %v2079 = vmax.f32 %v2076, 0.0
        %v2080 = vld [vmem:[%s589] sm:$0xff]
        %v2081 = vld [vmem:[%s589 + $0x8] sm:$0xff]
        %v2082 = vld [vmem:[%s589 + $0x10] sm:$0xff]
        %v2083 = vld [vmem:[%s589 + $0x18] sm:$0xff]
        %v2084 = vld [vmem:[%s589 + $0x20] sm:$0xff]
        %v2085 = vld [vmem:[%s589 + $0x28] sm:$0xff]
        %v2086 = vld [vmem:[%s589 + $0x30] sm:$0xff]
        %v2087 = vld [vmem:[%s589 + $0x38] sm:$0xff]
        %v2088 = vld [vmem:[%s592] sm:$0x1]
        %v2090 = vperm.slane %v2088, 0
        %vm2092 = vcmask 523264
        %v2094 = vsel %vm2092, %v2078, 0
        %v2097 = vsel %vm2092, %v2079, 0
        %2099 = vmatpush.msra.mxu0 0.0
        %2100 = vmatpush.msra.mxu0 0.0
        %2101 = vmatpush.msra.mxu0 0.0
        %2102 = vmatpush.msra.mxu0 0.0
        %2103 = vmatpush.msra.mxu0 0.0
        %2104 = vmatpush.msra.mxu0 0.0
        %2105 = vmatpush.msra.mxu0 0.0
        %2106 = vmatpush.msra.mxu0 0.0
        %2107 = vmatpush.msra.mxu0 %v2087
        %2108 = vmatpush.msra.mxu0 %v2086
        %2109 = vmatpush.msra.mxu0 %v2085
        %2110 = vmatpush.msra.mxu0 %v2084
        %2111 = vmatpush.msra.mxu0 %v2083
        %2112 = vmatpush.msra.mxu0 %v2082
        %2113 = vmatpush.msra.mxu0 %v2081
        %2114 = vmatpush.msra.mxu0 %v2080
        %2115 = vmatmul.f32.gmra.mxu0 %v2094
        %v2116 = vpop.f32.mrf.mxu0
        %v2117 = vadd.f32 %v2090, %v2116
        %2118 = vmatmul.f32.gmra.mxu0 %v2097
        %v2119 = vpop.f32.mrf.mxu0
        %v2120 = vadd.f32 %v2090, %v2119
        %2121 = vdwg.mxu0
        %v2122 = vadd.f32 %v2039, %v2117
        %v2123 = vadd.f32 %v2040, %v2120
        %v2124 = vld [vmem:[%s595] sm:$0x1]
        %v2125 = vld [vmem:[%s598] sm:$0x1]
        %v2126 = vsel %vm1254, %v2122, 0.0
        %2127 = vadd.xlane.f32.xlu0 %v2126
        %v2128 = vpop.xlane.xlu0 %2127
        %v2129 = vsel %vm1254, %v2123, 0.0
        %2130 = vadd.xlane.f32.xlu0 %v2129
        %v2131 = vpop.xlane.xlu0 %2130
        %v2132 = vmul.f32 %v2128, %v1992
        %v2133 = vmul.f32 %v2131, %v1992
        %v2134 = vsub.f32 %v2122, %v2132
        %v2135 = vsub.f32 %v2123, %v2133
        %v2136 = vmul.f32 %v2134, %v2134
        %v2137 = vmul.f32 %v2135, %v2135
        %v2138 = vsel %vm1254, %v2136, 0.0
        %2139 = vadd.xlane.f32.xlu0 %v2138
        %v2140 = vpop.xlane.xlu0 %2139
        %v2141 = vsel %vm1254, %v2137, 0.0
        %2142 = vadd.xlane.f32.xlu0 %v2141
        %v2143 = vpop.xlane.xlu0 %2142
        %v2144 = vmul.f32 %v2140, %v1992
        %v2145 = vmul.f32 %v2143, %v1992
        %v2146 = vadd.f32 %v2144, 1e-05
        %v2147 = vadd.f32 %v2145, 1e-05
        %v2148 = vrsqrt.pop %v2146
        %v2149 = vmul.f32 %v2148, %v2146
        %v2150 = vmul.f32 %v2149, %v2148
        %v2151 = vmul.f32 0.5, %v2150
        %v2152 = vsub.f32 1.5, %v2151
        %v2153 = vmul.f32 %v2148, %v2152
        %vm2154 = vweird.f32 %v2146
        %vm2155 = vweird.f32 %v2148
        %vm2156 = vmor %vm2154, %vm2155
        %v2157 = vsel %vm2156, %v2148, %v2153
        %v2158 = vrsqrt.pop %v2147
        %v2159 = vmul.f32 %v2158, %v2147
        %v2160 = vmul.f32 %v2159, %v2158
        %v2161 = vmul.f32 0.5, %v2160
        %v2162 = vsub.f32 1.5, %v2161
        %v2163 = vmul.f32 %v2158, %v2162
        %vm2164 = vweird.f32 %v2147
        %vm2165 = vweird.f32 %v2158
        %vm2166 = vmor %vm2164, %vm2165
        %v2167 = vsel %vm2166, %v2158, %v2163
        %v2168 = vmul.f32 %v2134, %v2157
        %v2169 = vmul.f32 %v2135, %v2167
        %v2171 = vperm.slane %v2124, 0
        %v2173 = vmul.f32 %v2168, %v2171
        %v2174 = vmul.f32 %v2169, %v2171
        %v2176 = vperm.slane %v2125, 0
        %v2178 = vadd.f32 %v2173, %v2176
        %v2179 = vadd.f32 %v2174, %v2176
        %2180 = vst.msk [vmem:[#allocation2] sm:$0xff] %vm1254, %v2178
        %2181 = vst.msk [vmem:[#allocation2 + $0x8] sm:$0xff] %vm1254, %v2179
        %p2182 = scmp.eq.s32.totalorder %s39, 1
        // Predicated region
        $region553: #{tpu_custom_call.1} parent=67 // pred_check
          %p2183 = pneg %p2182
        $region554: #{tpu_custom_call.1} parent=67 // pred_check_branch
          %2185 = sbr.rel (%p2183) target = $region556
        $region555: #{tpu_custom_call.1} parent=67 // pred_region
          %2186 = vst.msk [vmem:[#allocation6] sm:$0xff] %vm1254, %v2178
          %2187 = vst.msk [vmem:[#allocation6 + $0x8] sm:$0xff] %vm1254, %v2179
        $region556: #{tpu_custom_call.1} parent=67 // pred_fallthru
          _
        // Predicated region
        $region557: #{tpu_custom_call.1} parent=67 // pred_check
          %p2188 = pneg %p376
        $region558: #{tpu_custom_call.1} parent=67 // pred_check_branch
          %2190 = sbr.rel (%p2188) target = $region560
        $region559: #{tpu_custom_call.1} parent=67 // pred_region
          %s2191 = smul.u32 2, %s38
          %2193 = vsyncadd [#allocation7], 0
          %s2194 = smul.addr %s2191, 8
          %s2195 = scalar_lea.hbm %s14, %s2194
          %s2196 = sshll.u32 [#allocation6], 4
          %s2197 = int_to_ptr.vmem [resolvable:$true] %s2196
          %s2198 = sshll.u32 %s2195, 4
          %s2199 = int_to_ptr.hbm [resolvable:$true] %s2198
          %2204 = dma.vmem_to_hbm [thread:$0]  %s2197, 256, %s2199, [#allocation7], 128, 128, 8
        $region560: #{tpu_custom_call.1} parent=67 // pred_fallthru
          _
        // Predicated region
        $region561: #{tpu_custom_call.1} parent=67 // pred_check
          %p2205 = pneg %p376
        $region562: #{tpu_custom_call.1} parent=67 // pred_check_branch
          %2207 = sbr.rel (%p2205) target = $region564
        $region563: #{tpu_custom_call.1} parent=67 // pred_region
          %2209 = dma.done [#allocation7], 256
        $region564: #{tpu_custom_call.1} parent=67 // pred_fallthru
          _
      $region68: #{tpu_custom_call.1} parent=5 // pred_fallthru
        _
      %p2210 = scmp.le.s32.totalorder 2, %s29
      // Predicated region
      $region565: #{tpu_custom_call.1} parent=5 // pred_check
        %p2211 = pneg %p2210
      $region566: #{tpu_custom_call.1} parent=5 // pred_check_branch
        %2213 = sbr.rel (%p2211) target = $region568
      $region567: #{tpu_custom_call.1} parent=5 // pred_region
        %s2214 = ssub.s32 %s29, 2
      $region568: #{tpu_custom_call.1} parent=5 // pred_fallthru
        _
    $region6: #{tpu_custom_call.1} parent=1 // loop_footer
      %s33 = sadd.s32 1, %s29
    $region7: #{tpu_custom_call.1} parent=1 // loop_footer_branch
      %28 = sbr.rel target = $region3
    $region8: #{tpu_custom_call.1} parent=1 // loop_exit
      _
    %2215 = vsyncpa [#allocation7], 1
    %s2216 = scalar_lea.sflag [#allocation7], 1
    %2217 = vsyncpa %s2216, 1
  %2218 = vsyncmov [#allocation3]
  %s2219 = vpop.sfrf %2218
  %p2220 = scmp.eq.s32.totalorder %s2219, 0
  %p2221 = pneg %p2220
  %2223 = shalt.err (%p2221)

</llo_original>
